<compile_context>
chip_gen: v6e
topology: v6e:2x2x1
jax: 0.10.0
libtpu: 0.0.40
codegen_flags: <defaults>
</compile_context>

<pallas_src>
import functools

import jax
import jax.numpy as jnp
from jax.experimental import pallas as pl
from jax.experimental.pallas import tpu as pltpu

LANE = 128


def _round_up(x, m):
    return ((x + m - 1) // m) * m


def _cdiv(a, b):
    return -(-a // b)


# -----------------------------------------------------------------------------
# Pallas kernel 1: M-tiled matmul + bias + ReLU, bf16 output (conv1 via im2col)
# -----------------------------------------------------------------------------
def _conv_mm_kernel(x_ref, w_ref, b_ref, o_ref):
    # bf16 x bf16 -> f32 on the MXU; bias + ReLU epilogue in f32; store bf16.
    acc = jnp.dot(x_ref[...], w_ref[...], preferred_element_type=jnp.float32)
    o_ref[...] = jnp.maximum(acc + b_ref[...], 0.0).astype(o_ref.dtype)


def matmul_bias_relu_bf16(x_bf16, w_bf16, b_f32, *, tm_max=1024):
    """relu(x @ w + b) -> bf16.  x:[M,K] bf16, w:[K,Npad] bf16, b:[1,Npad] f32.

    Grid over M only; K and the 128-padded N stay whole (lane-dense, unmasked
    stores).  tm <= ceil(M/2) guarantees >= 2 grid steps whenever M allows so
    the "parallel" axis can split across v7x's two TensorCores; tm_max=1024
    amortizes per-grid-step overhead at training batches while staying far
    under every generation's scoped VMEM limit.
    """
    M, K = x_bf16.shape
    K2, Npad = w_bf16.shape
    assert K == K2 and Npad % LANE == 0

    tm = min(tm_max, _round_up(max(1, _cdiv(M, 2)), 16))   # 16: bf16 sublanes
    Mp = _round_up(M, tm)
    if Mp != M:
        x_bf16 = jnp.pad(x_bf16, ((0, Mp - M), (0, 0)))

    out = pl.pallas_call(
        _conv_mm_kernel,
        out_shape=jax.ShapeDtypeStruct((Mp, Npad), jnp.bfloat16),
        grid_spec=pltpu.PrefetchScalarGridSpec(
            num_scalar_prefetch=0,
            grid=(Mp // tm,),
            in_specs=[
                pl.BlockSpec((tm, K), lambda i: (i, 0)),
                # Weight/bias have constant index maps; they are tiny (<0.1 MB)
                # so the default double-buffering cost is negligible.
                pl.BlockSpec((K, Npad), lambda i: (0, 0)),
                pl.BlockSpec((1, Npad), lambda i: (0, 0)),
            ],
            out_specs=pl.BlockSpec((tm, Npad), lambda i: (i, 0)),
        ),
        compiler_params=pltpu.CompilerParams(
            dimension_semantics=("parallel",)),
    )(x_bf16, w_bf16, b_f32)
    return out[:M]


# -----------------------------------------------------------------------------
# Pallas kernel 2: fused tail = conv2 + conv3 + noisy1 + ReLU + noisy2 + softmax
# -----------------------------------------------------------------------------
def _tail_kernel(p2_ref, w2_ref, b2_ref, w3_ref, b3_ref,
                 wn1_ref, bn1_ref, wn2_ref, bn2_ref, o_ref, *, num_actions):
    k2 = w2_ref.shape[0]          # conv2 patch width (kh*kw*Cin = 512)
    n_pos = w3_ref.shape[0]       # conv2 output positions == conv3 taps (9)

    # conv2 (per output position) + conv3 accumulated as a sum of small matmuls
    # so no in-kernel reshape is needed; all intermediates stay in VMEM.
    acc3 = None
    for p in range(n_pos):
        xp = p2_ref[:, p * k2:(p + 1) * k2]                 # (tb, 512) bf16
        h2p = jnp.maximum(
            jnp.dot(xp, w2_ref[...], preferred_element_type=jnp.float32)
            + b2_ref[...], 0.0)                             # conv2 + ReLU, f32
        c = jnp.dot(h2p.astype(w3_ref.dtype), w3_ref[p],
                    preferred_element_type=jnp.float32)
        acc3 = c if acc3 is None else acc3 + c
    feat = jnp.maximum(acc3 + b3_ref[...], 0.0)             # conv3 + ReLU (B,64)

    h = jnp.dot(feat.astype(wn1_ref.dtype), wn1_ref[...],
                preferred_element_type=jnp.float32) + bn1_ref[...]
    h = jnp.maximum(h, 0.0)                                 # noisy1 + ReLU
    logits = jnp.dot(h.astype(wn2_ref.dtype), wn2_ref[...],
                     preferred_element_type=jnp.float32) + bn2_ref[...]

    # Per-action atom softmax over lane-aligned 128-wide blocks.  Padded lanes
    # carry bias -1e30 -> exp underflows to exactly 0, so max / sum are exact on
    # the valid atoms.  Final store is full-width and unmasked (lane-dense).
    pieces = []
    for a in range(num_actions):
        blk = logits[:, a * LANE:(a + 1) * LANE]
        m = jnp.max(blk, axis=-1, keepdims=True)
        e = jnp.exp(blk - m)
        s = jnp.sum(e, axis=-1, keepdims=True)
        pieces.append(e / s)      # exact divide: sums to 1 within f32 rounding
    o_ref[...] = jnp.concatenate(pieces, axis=-1)


def fused_tail(p2, w2, b2, w3, b3, wn1, bn1, wn2, bn2, *, num_actions):
    """conv2+conv3+noisy1+ReLU+noisy2+softmax in one pallas_call.

    p2: (B, n_pos * 512) bf16 conv2 patches (position-blocked feature layout).
    Output: (B, num_actions * 128) f32, each action's atoms lane-aligned.
    """
    B, PK = p2.shape
    assert PK == w3.shape[0] * w2.shape[0]
    n_out = num_actions * LANE

    tb = min(128, _round_up(max(1, _cdiv(B, 2)), 8))
    Bp = _round_up(B, tb)
    if Bp != B:
        p2 = jnp.pad(p2, ((0, Bp - B), (0, 0)))

    const2 = lambda i: (0, 0)
    const3 = lambda i: (0, 0, 0)
    out = pl.pallas_call(
        functools.partial(_tail_kernel, num_actions=num_actions),
        out_shape=jax.ShapeDtypeStruct((Bp, n_out), jnp.float32),
        grid_spec=pltpu.PrefetchScalarGridSpec(
            num_scalar_prefetch=0,
            grid=(Bp // tb,),
            in_specs=[
                pl.BlockSpec((tb, PK), lambda i: (i, 0)),
                pl.BlockSpec(w2.shape, const2),
                pl.BlockSpec(b2.shape, const2),
                pl.BlockSpec(w3.shape, const3),
                pl.BlockSpec(b3.shape, const2),
                pl.BlockSpec(wn1.shape, const2),
                pl.BlockSpec(bn1.shape, const2),
                pl.BlockSpec(wn2.shape, const2),
                pl.BlockSpec(bn2.shape, const2),
            ],
            out_specs=pl.BlockSpec((tb, n_out), lambda i: (i, 0)),
        ),
        compiler_params=pltpu.CompilerParams(
            dimension_semantics=("parallel",)),
    )(p2, w2, b2, w3, b3, wn1, bn1, wn2, bn2)
    return out[:B]


# -----------------------------------------------------------------------------
# Glue: NHWC im2col (slices/stack/reshape only; fuses into one XLA op under jit)
# -----------------------------------------------------------------------------
def _im2col_nhwc(x, kh, kw, stride):
    """x: (B, H, W, C) NHWC -> (B*OH*OW, kh*kw*C), feature order (kh, kw, C)."""
    B, H, W, C = x.shape
    OH = (H - kh) // stride + 1
    OW = (W - kw) // stride + 1
    cols = []
    for i in range(kh):
        for j in range(kw):
            cols.append(x[:, i:i + stride * OH:stride, j:j + stride * OW:stride, :])
    p = jnp.stack(cols, axis=3)                      # (B, OH, OW, kh*kw, C)
    return p.reshape(B * OH * OW, kh * kw * C), OH, OW


# -----------------------------------------------------------------------------
# RainbowCnnDQN (no dueling head, per the ablation module)
# -----------------------------------------------------------------------------
class RainbowCnnDQNPallas:
    def __init__(self, input_shape, num_actions, num_atoms, Vmin, Vmax, key):
        self.input_shape = input_shape      # (C, H, W), torch convention
        self.num_actions = num_actions
        self.num_atoms = num_atoms
        self.Vmin, self.Vmax = Vmin, Vmax
        assert num_atoms <= LANE

        C, H, W = input_shape
        osz = lambda s, k, st: (s - k) // st + 1
        oh1, ow1 = osz(H, 8, 4), osz(W, 8, 4)
        oh2, ow2 = osz(oh1, 4, 2), osz(ow1, 4, 2)
        oh3, ow3 = osz(oh2, 3, 1), osz(ow2, 3, 1)
        self.feature_size = 64 * oh3 * ow3
        # Fused conv2+conv3+head tail requires conv3's output to be 1x1 spatial
        # (its 3x3 receptive field covers conv2's whole 3x3 output).
        # TODO(synk): geometries with larger conv3 output (e.g. 84x84 frames)
        # need an unfused conv2/conv3 path; not implemented here.
        assert (oh3, ow3) == (1, 1), (oh3, ow3)

        ks = jax.random.split(key, 10)
        init = lambda k, shape, scale=0.05: scale * jax.random.normal(
            k, shape, dtype=jnp.float32)

        # ---- raw parameters in the PyTorch layouts --------------------------
        conv1_w = init(ks[0], (32, C, 8, 8));  conv1_b = init(ks[1], (32,))
        conv2_w = init(ks[2], (64, 32, 4, 4)); conv2_b = init(ks[3], (64,))
        conv3_w = init(ks[4], (64, 64, 3, 3)); conv3_b = init(ks[5], (64,))
        noisy1_w = init(ks[6], (512, self.feature_size))      # (out, in)
        noisy1_b = init(ks[7], (512,))
        noisy2_w = init(ks[8], (num_atoms * num_actions, 512))
        noisy2_b = init(ks[9], (num_atoms * num_actions,))

        # ---- one-time prep: layout match, lane pad, bf16 cast ----------------
        def conv_w2d(w, scale=1.0):
            cout, cin, kh, kw = w.shape
            # (Cout,Cin,kh,kw) -> (kh,kw,Cin,Cout) -> (kh*kw*Cin, Cout): matches
            # the NHWC im2col feature order (kh, kw, C).
            return (w * scale).transpose(2, 3, 1, 0).reshape(kh * kw * cin, cout)

        def bias_row(b):
            return b.reshape(1, -1).astype(jnp.float32)

        w1 = conv_w2d(conv1_w, scale=1.0 / 255.0)             # x/255 folded in
        w1 = jnp.pad(w1, ((0, 0), (0, LANE - 32))).astype(jnp.bfloat16)
        b1 = bias_row(jnp.pad(conv1_b, (0, LANE - 32)))

        # conv3 as 9 taps of (64_in, 64_out); tap p == conv2 output position p.
        w3 = conv_w2d(conv3_w).reshape(3 * 3, 64, 64).astype(jnp.bfloat16)

        # noisy2: pad each action's atom block to a 128-lane boundary; padded
        # weight columns are zero, padded bias is -1e30 (softmax ignores them).
        wn2 = noisy2_w.T.reshape(512, num_actions, num_atoms)
        wn2 = jnp.pad(wn2, ((0, 0), (0, 0), (0, LANE - num_atoms)))
        wn2 = wn2.reshape(512, num_actions * LANE).astype(jnp.bfloat16)
        bn2 = noisy2_b.reshape(num_actions, num_atoms)
        bn2 = jnp.pad(bn2, ((0, 0), (0, LANE - num_atoms)), constant_values=-1e30)
        bn2 = bn2.reshape(1, num_actions * LANE).astype(jnp.float32)

        # conv3 output is 1x1 spatial -> torch's NCHW flatten is pure channel
        # order, so noisy1 only needs a transpose (no (c,h,w)->(h,w,c) permute).
        self.params = {
            "conv1_w": w1, "conv1_b": b1,
            "conv2_w": conv_w2d(conv2_w).astype(jnp.bfloat16),    # (512, 64)
            "conv2_b": bias_row(conv2_b),
            "conv3_w": w3,                                        # (9, 64, 64)
            "conv3_b": bias_row(conv3_b),
            "noisy1_w": noisy1_w.T.astype(jnp.bfloat16),          # (64, 512)
            "noisy1_b": bias_row(noisy1_b),
            "noisy2_w": wn2,                                      # (512, A*128)
            "noisy2_b": bn2,
        }
        self._forward = jax.jit(self._forward_impl)

    def _forward_impl(self, params, x):
        B = x.shape[0]
        h = x.transpose(0, 2, 3, 1).astype(jnp.bfloat16)      # NCHW -> NHWC
        # conv1 + ReLU: im2col (fused XLA slices) + Pallas matmul, bf16 out.
        p1, oh1, ow1 = _im2col_nhwc(h, 8, 8, 4)
        y1 = matmul_bias_relu_bf16(p1, params["conv1_w"], params["conv1_b"])
        h = y1[:, :32].reshape(B, oh1, ow1, 32)               # stays NHWC, bf16
        # conv2 patches, laid out (B, position-blocked features); everything
        # downstream of conv1 runs in one fused Pallas call.
        p2, oh2, ow2 = _im2col_nhwc(h, 4, 4, 2)
        p2 = p2.reshape(B, oh2 * ow2 * 4 * 4 * 32)
        probs = fused_tail(p2,
                           params["conv2_w"], params["conv2_b"],
                           params["conv3_w"], params["conv3_b"],
                           params["noisy1_w"], params["noisy1_b"],
                           params["noisy2_w"], params["noisy2_b"],
                           num_actions=self.num_actions)
        # Slice the lane-padded atom blocks back to (B, A, Z).
        return probs.reshape(B, self.num_actions, LANE)[:, :, :self.num_atoms]

    def __call__(self, x):
        return self._forward(self.params, x)


if __name__ == "__main__":
    key = jax.random.PRNGKey(0)
    k_param, k_input = jax.random.split(key)

    # Small shapes: 4-channel 36x36 frame stack -> conv stack yields 1x1x64 feats.
    batch = 2
    input_shape = (4, 36, 36)
    num_actions = 4
    num_atoms = 8
    Vmin, Vmax = -10.0, 10.0

    model = RainbowCnnDQNPallas(input_shape, num_actions, num_atoms, Vmin, Vmax,
                                k_param)

    x = jax.random.uniform(k_input, (batch,) + input_shape, dtype=jnp.float32,
                           minval=0.0, maxval=255.0)

    out = jax.block_until_ready(model(x))

    assert out.shape == (batch, num_actions, num_atoms), out.shape
    # distribution over atoms must sum to 1 per (batch, action)
    sums = jnp.sum(out, axis=-1)
    assert bool(jnp.all(jnp.abs(sums - 1.0) < 1e-4)), sums

    print("KERNEL_OK")
</pallas_src>

<mosaic_0001>
module attributes {stable_mosaic.version = 11 : i64} {
  func.func @_conv_mm_kernel(%arg0: i32, %arg1: memref<64x256xbf16, #tpu.memory_space<vmem>>, %arg2: memref<256x128xbf16, #tpu.memory_space<vmem>>, %arg3: memref<1x128xf32, #tpu.memory_space<vmem>>, %arg4: memref<64x128xbf16, #tpu.memory_space<vmem>>) attributes {dimension_semantics = [#tpu.dimension_semantics<parallel>], iteration_bounds = array<i64: 2>, scalar_prefetch = 0 : i64, scratch_operands = 0 : i64, tpu.core_type = #tpu.core_type<tc>, window_params = [{transform_indices = @transform_0, window_bounds = array<i64: 64, 256>}, {pipeline_mode = #tpu.pipeline_mode<synchronous>, transform_indices = @transform_1, window_bounds = array<i64: 256, 128>}, {pipeline_mode = #tpu.pipeline_mode<synchronous>, transform_indices = @transform_2, window_bounds = array<i64: 1, 128>}, {transform_indices = @transform_3, window_bounds = array<i64: 64, 128>}]} {
    %c0 = arith.constant 0 : index
    %c0_0 = arith.constant 0 : index
    %0 = vector.load %arg1[%c0, %c0_0] : memref<64x256xbf16, #tpu.memory_space<vmem>>, vector<64x256xbf16>
    %c0_1 = arith.constant 0 : index
    %c0_2 = arith.constant 0 : index
    %1 = vector.load %arg2[%c0_1, %c0_2] : memref<256x128xbf16, #tpu.memory_space<vmem>>, vector<256x128xbf16>
    %cst = arith.constant dense<0.000000e+00> : vector<64x128xf32>
    %2 = tpu.matmul %0, %1, %cst {dimension_numbers = #tpu.dot_dimension_numbers<[1], [0], [0], [1], [0, 0, 1, 1], [], []>} : vector<64x256xbf16>, vector<256x128xbf16>, vector<64x128xf32> -> vector<64x128xf32>
    %c0_3 = arith.constant 0 : index
    %c0_4 = arith.constant 0 : index
    %3 = vector.load %arg3[%c0_3, %c0_4] : memref<1x128xf32, #tpu.memory_space<vmem>>, vector<1x128xf32>
    %4 = vector.broadcast %3 : vector<1x128xf32> to vector<64x128xf32>
    %5 = arith.addf %2, %4 : vector<64x128xf32>
    %cst_5 = arith.constant 0.000000e+00 : f32
    %6 = vector.broadcast %cst_5 : f32 to vector<64x128xf32>
    %7 = arith.maximumf %5, %6 : vector<64x128xf32>
    %8 = arith.truncf %7 : vector<64x128xf32> to vector<64x128xbf16>
    %c0_6 = arith.constant 0 : index
    %c0_7 = arith.constant 0 : index
    %9 = vector.load %arg4[%c0_6, %c0_7] : memref<64x128xbf16, #tpu.memory_space<vmem>>, vector<64x128xbf16>
    tpu.vector_store %arg4[%c0_6, %c0_7], %8 {strides = array<i32>} : memref<64x128xbf16, #tpu.memory_space<vmem>>, vector<64x128xbf16>,
    return
  }
  func.func @transform_0(%arg0: i32) -> (i32, i32) {
    %c0_i32 = arith.constant 0 : i32
    %c0_i32_0 = arith.constant 0 : i32
    return %arg0, %c0_i32 : i32, i32
  }
  func.func @transform_1(%arg0: i32) -> (i32, i32) {
    %c0_i32 = arith.constant 0 : i32
    %c0_i32_0 = arith.constant 0 : i32
    %c0_i32_1 = arith.constant 0 : i32
    return %c0_i32, %c0_i32_0 : i32, i32
  }
  func.func @transform_2(%arg0: i32) -> (i32, i32) {
    %c0_i32 = arith.constant 0 : i32
    %c0_i32_0 = arith.constant 0 : i32
    %c0_i32_1 = arith.constant 0 : i32
    return %c0_i32, %c0_i32_0 : i32, i32
  }
  func.func @transform_3(%arg0: i32) -> (i32, i32) {
    %c0_i32 = arith.constant 0 : i32
    %c0_i32_0 = arith.constant 0 : i32
    return %arg0, %c0_i32 : i32, i32
  }
}

module attributes {stable_mosaic.version = 11 : i64} {
  func.func @_tail_kernel(%arg0: i32, %arg1: memref<8x4608xbf16, #tpu.memory_space<vmem>>, %arg2: memref<512x64xbf16, #tpu.memory_space<vmem>>, %arg3: memref<1x64xf32, #tpu.memory_space<vmem>>, %arg4: memref<9x64x64xbf16, #tpu.memory_space<vmem>>, %arg5: memref<1x64xf32, #tpu.memory_space<vmem>>, %arg6: memref<64x512xbf16, #tpu.memory_space<vmem>>, %arg7: memref<1x512xf32, #tpu.memory_space<vmem>>, %arg8: memref<512x512xbf16, #tpu.memory_space<vmem>>, %arg9: memref<1x512xf32, #tpu.memory_space<vmem>>, %arg10: memref<8x512xf32, #tpu.memory_space<vmem>>) attributes {dimension_semantics = [#tpu.dimension_semantics<parallel>], iteration_bounds = array<i64: 1>, scalar_prefetch = 0 : i64, scratch_operands = 0 : i64, tpu.core_type = #tpu.core_type<tc>, window_params = [{transform_indices = @transform_0, window_bounds = array<i64: 8, 4608>}, {pipeline_mode = #tpu.pipeline_mode<synchronous>, transform_indices = @transform_1, window_bounds = array<i64: 512, 64>}, {pipeline_mode = #tpu.pipeline_mode<synchronous>, transform_indices = @transform_2, window_bounds = array<i64: 1, 64>}, {pipeline_mode = #tpu.pipeline_mode<synchronous>, transform_indices = @transform_3, window_bounds = array<i64: 9, 64, 64>}, {pipeline_mode = #tpu.pipeline_mode<synchronous>, transform_indices = @transform_4, window_bounds = array<i64: 1, 64>}, {pipeline_mode = #tpu.pipeline_mode<synchronous>, transform_indices = @transform_5, window_bounds = array<i64: 64, 512>}, {pipeline_mode = #tpu.pipeline_mode<synchronous>, transform_indices = @transform_6, window_bounds = array<i64: 1, 512>}, {pipeline_mode = #tpu.pipeline_mode<synchronous>, transform_indices = @transform_7, window_bounds = array<i64: 512, 512>}, {pipeline_mode = #tpu.pipeline_mode<synchronous>, transform_indices = @transform_8, window_bounds = array<i64: 1, 512>}, {transform_indices = @transform_9, window_bounds = array<i64: 8, 512>}]} {
    %c0 = arith.constant 0 : index
    %c0_0 = arith.constant 0 : index
    %0 = vector.load %arg1[%c0, %c0_0] : memref<8x4608xbf16, #tpu.memory_space<vmem>>, vector<8x512xbf16>
    %c0_1 = arith.constant 0 : index
    %c0_2 = arith.constant 0 : index
    %1 = vector.load %arg2[%c0_1, %c0_2] : memref<512x64xbf16, #tpu.memory_space<vmem>>, vector<512x64xbf16>
    %cst = arith.constant dense<0.000000e+00> : vector<8x64xf32>
    %2 = tpu.matmul %0, %1, %cst {dimension_numbers = #tpu.dot_dimension_numbers<[1], [0], [0], [1], [0, 0, 1, 1], [], []>} : vector<8x512xbf16>, vector<512x64xbf16>, vector<8x64xf32> -> vector<8x64xf32>
    %c0_3 = arith.constant 0 : index
    %c0_4 = arith.constant 0 : index
    %3 = vector.load %arg3[%c0_3, %c0_4] : memref<1x64xf32, #tpu.memory_space<vmem>>, vector<1x64xf32>
    %4 = vector.broadcast %3 : vector<1x64xf32> to vector<8x64xf32>
    %5 = arith.addf %2, %4 : vector<8x64xf32>
    %cst_5 = arith.constant 0.000000e+00 : f32
    %6 = vector.broadcast %cst_5 : f32 to vector<8x64xf32>
    %7 = arith.maximumf %5, %6 : vector<8x64xf32>
    %8 = arith.truncf %7 : vector<8x64xf32> to vector<8x64xbf16>
    %c0_6 = arith.constant 0 : index
    %c0_7 = arith.constant 0 : index
    %c0_8 = arith.constant 0 : index
    %9 = vector.load %arg4[%c0_6, %c0_7, %c0_8] : memref<9x64x64xbf16, #tpu.memory_space<vmem>>, vector<1x64x64xbf16>
    %10 = vector.shape_cast %9 : vector<1x64x64xbf16> to vector<64x64xbf16>
    %cst_9 = arith.constant dense<0.000000e+00> : vector<8x64xf32>
    %11 = tpu.matmul %8, %10, %cst_9 {dimension_numbers = #tpu.dot_dimension_numbers<[1], [0], [0], [1], [0, 0, 1, 1], [], []>} : vector<8x64xbf16>, vector<64x64xbf16>, vector<8x64xf32> -> vector<8x64xf32>
    %c0_10 = arith.constant 0 : index
    %c512 = arith.constant 512 : index
    %12 = vector.load %arg1[%c0_10, %c512] : memref<8x4608xbf16, #tpu.memory_space<vmem>>, vector<8x512xbf16>
    %c0_11 = arith.constant 0 : index
    %c0_12 = arith.constant 0 : index
    %13 = vector.load %arg2[%c0_11, %c0_12] : memref<512x64xbf16, #tpu.memory_space<vmem>>, vector<512x64xbf16>
    %cst_13 = arith.constant dense<0.000000e+00> : vector<8x64xf32>
    %14 = tpu.matmul %12, %13, %cst_13 {dimension_numbers = #tpu.dot_dimension_numbers<[1], [0], [0], [1], [0, 0, 1, 1], [], []>} : vector<8x512xbf16>, vector<512x64xbf16>, vector<8x64xf32> -> vector<8x64xf32>
    %c0_14 = arith.constant 0 : index
    %c0_15 = arith.constant 0 : index
    %15 = vector.load %arg3[%c0_14, %c0_15] : memref<1x64xf32, #tpu.memory_space<vmem>>, vector<1x64xf32>
    %16 = vector.broadcast %15 : vector<1x64xf32> to vector<8x64xf32>
    %17 = arith.addf %14, %16 : vector<8x64xf32>
    %cst_16 = arith.constant 0.000000e+00 : f32
    %18 = vector.broadcast %cst_16 : f32 to vector<8x64xf32>
    %19 = arith.maximumf %17, %18 : vector<8x64xf32>
    %20 = arith.truncf %19 : vector<8x64xf32> to vector<8x64xbf16>
    %c1 = arith.constant 1 : index
    %c0_17 = arith.constant 0 : index
    %c0_18 = arith.constant 0 : index
    %21 = vector.load %arg4[%c1, %c0_17, %c0_18] : memref<9x64x64xbf16, #tpu.memory_space<vmem>>, vector<1x64x64xbf16>
    %22 = vector.shape_cast %21 : vector<1x64x64xbf16> to vector<64x64xbf16>
    %cst_19 = arith.constant dense<0.000000e+00> : vector<8x64xf32>
    %23 = tpu.matmul %20, %22, %cst_19 {dimension_numbers = #tpu.dot_dimension_numbers<[1], [0], [0], [1], [0, 0, 1, 1], [], []>} : vector<8x64xbf16>, vector<64x64xbf16>, vector<8x64xf32> -> vector<8x64xf32>
    %24 = arith.addf %11, %23 : vector<8x64xf32>
    %c0_20 = arith.constant 0 : index
    %c1024 = arith.constant 1024 : index
    %25 = vector.load %arg1[%c0_20, %c1024] : memref<8x4608xbf16, #tpu.memory_space<vmem>>, vector<8x512xbf16>
    %c0_21 = arith.constant 0 : index
    %c0_22 = arith.constant 0 : index
    %26 = vector.load %arg2[%c0_21, %c0_22] : memref<512x64xbf16, #tpu.memory_space<vmem>>, vector<512x64xbf16>
    %cst_23 = arith.constant dense<0.000000e+00> : vector<8x64xf32>
    %27 = tpu.matmul %25, %26, %cst_23 {dimension_numbers = #tpu.dot_dimension_numbers<[1], [0], [0], [1], [0, 0, 1, 1], [], []>} : vector<8x512xbf16>, vector<512x64xbf16>, vector<8x64xf32> -> vector<8x64xf32>
    %c0_24 = arith.constant 0 : index
    %c0_25 = arith.constant 0 : index
    %28 = vector.load %arg3[%c0_24, %c0_25] : memref<1x64xf32, #tpu.memory_space<vmem>>, vector<1x64xf32>
    %29 = vector.broadcast %28 : vector<1x64xf32> to vector<8x64xf32>
    %30 = arith.addf %27, %29 : vector<8x64xf32>
    %cst_26 = arith.constant 0.000000e+00 : f32
    %31 = vector.broadcast %cst_26 : f32 to vector<8x64xf32>
    %32 = arith.maximumf %30, %31 : vector<8x64xf32>
    %33 = arith.truncf %32 : vector<8x64xf32> to vector<8x64xbf16>
    %c2 = arith.constant 2 : index
    %c0_27 = arith.constant 0 : index
    %c0_28 = arith.constant 0 : index
    %34 = vector.load %arg4[%c2, %c0_27, %c0_28] : memref<9x64x64xbf16, #tpu.memory_space<vmem>>, vector<1x64x64xbf16>
    %35 = vector.shape_cast %34 : vector<1x64x64xbf16> to vector<64x64xbf16>
    %cst_29 = arith.constant dense<0.000000e+00> : vector<8x64xf32>
    %36 = tpu.matmul %33, %35, %cst_29 {dimension_numbers = #tpu.dot_dimension_numbers<[1], [0], [0], [1], [0, 0, 1, 1], [], []>} : vector<8x64xbf16>, vector<64x64xbf16>, vector<8x64xf32> -> vector<8x64xf32>
    %37 = arith.addf %24, %36 : vector<8x64xf32>
    %c0_30 = arith.constant 0 : index
    %c1536 = arith.constant 1536 : index
    %38 = vector.load %arg1[%c0_30, %c1536] : memref<8x4608xbf16, #tpu.memory_space<vmem>>, vector<8x512xbf16>
    %c0_31 = arith.constant 0 : index
    %c0_32 = arith.constant 0 : index
    %39 = vector.load %arg2[%c0_31, %c0_32] : memref<512x64xbf16, #tpu.memory_space<vmem>>, vector<512x64xbf16>
    %cst_33 = arith.constant dense<0.000000e+00> : vector<8x64xf32>
    %40 = tpu.matmul %38, %39, %cst_33 {dimension_numbers = #tpu.dot_dimension_numbers<[1], [0], [0], [1], [0, 0, 1, 1], [], []>} : vector<8x512xbf16>, vector<512x64xbf16>, vector<8x64xf32> -> vector<8x64xf32>
    %c0_34 = arith.constant 0 : index
    %c0_35 = arith.constant 0 : index
    %41 = vector.load %arg3[%c0_34, %c0_35] : memref<1x64xf32, #tpu.memory_space<vmem>>, vector<1x64xf32>
    %42 = vector.broadcast %41 : vector<1x64xf32> to vector<8x64xf32>
    %43 = arith.addf %40, %42 : vector<8x64xf32>
    %cst_36 = arith.constant 0.000000e+00 : f32
    %44 = vector.broadcast %cst_36 : f32 to vector<8x64xf32>
    %45 = arith.maximumf %43, %44 : vector<8x64xf32>
    %46 = arith.truncf %45 : vector<8x64xf32> to vector<8x64xbf16>
    %c3 = arith.constant 3 : index
    %c0_37 = arith.constant 0 : index
    %c0_38 = arith.constant 0 : index
    %47 = vector.load %arg4[%c3, %c0_37, %c0_38] : memref<9x64x64xbf16, #tpu.memory_space<vmem>>, vector<1x64x64xbf16>
    %48 = vector.shape_cast %47 : vector<1x64x64xbf16> to vector<64x64xbf16>
    %cst_39 = arith.constant dense<0.000000e+00> : vector<8x64xf32>
    %49 = tpu.matmul %46, %48, %cst_39 {dimension_numbers = #tpu.dot_dimension_numbers<[1], [0], [0], [1], [0, 0, 1, 1], [], []>} : vector<8x64xbf16>, vector<64x64xbf16>, vector<8x64xf32> -> vector<8x64xf32>
    %50 = arith.addf %37, %49 : vector<8x64xf32>
    %c0_40 = arith.constant 0 : index
    %c2048 = arith.constant 2048 : index
    %51 = vector.load %arg1[%c0_40, %c2048] : memref<8x4608xbf16, #tpu.memory_space<vmem>>, vector<8x512xbf16>
    %c0_41 = arith.constant 0 : index
    %c0_42 = arith.constant 0 : index
    %52 = vector.load %arg2[%c0_41, %c0_42] : memref<512x64xbf16, #tpu.memory_space<vmem>>, vector<512x64xbf16>
    %cst_43 = arith.constant dense<0.000000e+00> : vector<8x64xf32>
    %53 = tpu.matmul %51, %52, %cst_43 {dimension_numbers = #tpu.dot_dimension_numbers<[1], [0], [0], [1], [0, 0, 1, 1], [], []>} : vector<8x512xbf16>, vector<512x64xbf16>, vector<8x64xf32> -> vector<8x64xf32>
    %c0_44 = arith.constant 0 : index
    %c0_45 = arith.constant 0 : index
    %54 = vector.load %arg3[%c0_44, %c0_45] : memref<1x64xf32, #tpu.memory_space<vmem>>, vector<1x64xf32>
    %55 = vector.broadcast %54 : vector<1x64xf32> to vector<8x64xf32>
    %56 = arith.addf %53, %55 : vector<8x64xf32>
    %cst_46 = arith.constant 0.000000e+00 : f32
    %57 = vector.broadcast %cst_46 : f32 to vector<8x64xf32>
    %58 = arith.maximumf %56, %57 : vector<8x64xf32>
    %59 = arith.truncf %58 : vector<8x64xf32> to vector<8x64xbf16>
    %c4 = arith.constant 4 : index
    %c0_47 = arith.constant 0 : index
    %c0_48 = arith.constant 0 : index
    %60 = vector.load %arg4[%c4, %c0_47, %c0_48] : memref<9x64x64xbf16, #tpu.memory_space<vmem>>, vector<1x64x64xbf16>
    %61 = vector.shape_cast %60 : vector<1x64x64xbf16> to vector<64x64xbf16>
    %cst_49 = arith.constant dense<0.000000e+00> : vector<8x64xf32>
    %62 = tpu.matmul %59, %61, %cst_49 {dimension_numbers = #tpu.dot_dimension_numbers<[1], [0], [0], [1], [0, 0, 1, 1], [], []>} : vector<8x64xbf16>, vector<64x64xbf16>, vector<8x64xf32> -> vector<8x64xf32>
    %63 = arith.addf %50, %62 : vector<8x64xf32>
    %c0_50 = arith.constant 0 : index
    %c2560 = arith.constant 2560 : index
    %64 = vector.load %arg1[%c0_50, %c2560] : memref<8x4608xbf16, #tpu.memory_space<vmem>>, vector<8x512xbf16>
    %c0_51 = arith.constant 0 : index
    %c0_52 = arith.constant 0 : index
    %65 = vector.load %arg2[%c0_51, %c0_52] : memref<512x64xbf16, #tpu.memory_space<vmem>>, vector<512x64xbf16>
    %cst_53 = arith.constant dense<0.000000e+00> : vector<8x64xf32>
    %66 = tpu.matmul %64, %65, %cst_53 {dimension_numbers = #tpu.dot_dimension_numbers<[1], [0], [0], [1], [0, 0, 1, 1], [], []>} : vector<8x512xbf16>, vector<512x64xbf16>, vector<8x64xf32> -> vector<8x64xf32>
    %c0_54 = arith.constant 0 : index
    %c0_55 = arith.constant 0 : index
    %67 = vector.load %arg3[%c0_54, %c0_55] : memref<1x64xf32, #tpu.memory_space<vmem>>, vector<1x64xf32>
    %68 = vector.broadcast %67 : vector<1x64xf32> to vector<8x64xf32>
    %69 = arith.addf %66, %68 : vector<8x64xf32>
    %cst_56 = arith.constant 0.000000e+00 : f32
    %70 = vector.broadcast %cst_56 : f32 to vector<8x64xf32>
    %71 = arith.maximumf %69, %70 : vector<8x64xf32>
    %72 = arith.truncf %71 : vector<8x64xf32> to vector<8x64xbf16>
    %c5 = arith.constant 5 : index
    %c0_57 = arith.constant 0 : index
    %c0_58 = arith.constant 0 : index
    %73 = vector.load %arg4[%c5, %c0_57, %c0_58] : memref<9x64x64xbf16, #tpu.memory_space<vmem>>, vector<1x64x64xbf16>
    %74 = vector.shape_cast %73 : vector<1x64x64xbf16> to vector<64x64xbf16>
    %cst_59 = arith.constant dense<0.000000e+00> : vector<8x64xf32>
    %75 = tpu.matmul %72, %74, %cst_59 {dimension_numbers = #tpu.dot_dimension_numbers<[1], [0], [0], [1], [0, 0, 1, 1], [], []>} : vector<8x64xbf16>, vector<64x64xbf16>, vector<8x64xf32> -> vector<8x64xf32>
    %76 = arith.addf %63, %75 : vector<8x64xf32>
    %c0_60 = arith.constant 0 : index
    %c3072 = arith.constant 3072 : index
    %77 = vector.load %arg1[%c0_60, %c3072] : memref<8x4608xbf16, #tpu.memory_space<vmem>>, vector<8x512xbf16>
    %c0_61 = arith.constant 0 : index
    %c0_62 = arith.constant 0 : index
    %78 = vector.load %arg2[%c0_61, %c0_62] : memref<512x64xbf16, #tpu.memory_space<vmem>>, vector<512x64xbf16>
    %cst_63 = arith.constant dense<0.000000e+00> : vector<8x64xf32>
    %79 = tpu.matmul %77, %78, %cst_63 {dimension_numbers = #tpu.dot_dimension_numbers<[1], [0], [0], [1], [0, 0, 1, 1], [], []>} : vector<8x512xbf16>, vector<512x64xbf16>, vector<8x64xf32> -> vector<8x64xf32>
    %c0_64 = arith.constant 0 : index
    %c0_65 = arith.constant 0 : index
    %80 = vector.load %arg3[%c0_64, %c0_65] : memref<1x64xf32, #tpu.memory_space<vmem>>, vector<1x64xf32>
    %81 = vector.broadcast %80 : vector<1x64xf32> to vector<8x64xf32>
    %82 = arith.addf %79, %81 : vector<8x64xf32>
    %cst_66 = arith.constant 0.000000e+00 : f32
    %83 = vector.broadcast %cst_66 : f32 to vector<8x64xf32>
    %84 = arith.maximumf %82, %83 : vector<8x64xf32>
    %85 = arith.truncf %84 : vector<8x64xf32> to vector<8x64xbf16>
    %c6 = arith.constant 6 : index
    %c0_67 = arith.constant 0 : index
    %c0_68 = arith.constant 0 : index
    %86 = vector.load %arg4[%c6, %c0_67, %c0_68] : memref<9x64x64xbf16, #tpu.memory_space<vmem>>, vector<1x64x64xbf16>
    %87 = vector.shape_cast %86 : vector<1x64x64xbf16> to vector<64x64xbf16>
    %cst_69 = arith.constant dense<0.000000e+00> : vector<8x64xf32>
    %88 = tpu.matmul %85, %87, %cst_69 {dimension_numbers = #tpu.dot_dimension_numbers<[1], [0], [0], [1], [0, 0, 1, 1], [], []>} : vector<8x64xbf16>, vector<64x64xbf16>, vector<8x64xf32> -> vector<8x64xf32>
    %89 = arith.addf %76, %88 : vector<8x64xf32>
    %c0_70 = arith.constant 0 : index
    %c3584 = arith.constant 3584 : index
    %90 = vector.load %arg1[%c0_70, %c3584] : memref<8x4608xbf16, #tpu.memory_space<vmem>>, vector<8x512xbf16>
    %c0_71 = arith.constant 0 : index
    %c0_72 = arith.constant 0 : index
    %91 = vector.load %arg2[%c0_71, %c0_72] : memref<512x64xbf16, #tpu.memory_space<vmem>>, vector<512x64xbf16>
    %cst_73 = arith.constant dense<0.000000e+00> : vector<8x64xf32>
    %92 = tpu.matmul %90, %91, %cst_73 {dimension_numbers = #tpu.dot_dimension_numbers<[1], [0], [0], [1], [0, 0, 1, 1], [], []>} : vector<8x512xbf16>, vector<512x64xbf16>, vector<8x64xf32> -> vector<8x64xf32>
    %c0_74 = arith.constant 0 : index
    %c0_75 = arith.constant 0 : index
    %93 = vector.load %arg3[%c0_74, %c0_75] : memref<1x64xf32, #tpu.memory_space<vmem>>, vector<1x64xf32>
    %94 = vector.broadcast %93 : vector<1x64xf32> to vector<8x64xf32>
    %95 = arith.addf %92, %94 : vector<8x64xf32>
    %cst_76 = arith.constant 0.000000e+00 : f32
    %96 = vector.broadcast %cst_76 : f32 to vector<8x64xf32>
    %97 = arith.maximumf %95, %96 : vector<8x64xf32>
    %98 = arith.truncf %97 : vector<8x64xf32> to vector<8x64xbf16>
    %c7 = arith.constant 7 : index
    %c0_77 = arith.constant 0 : index
    %c0_78 = arith.constant 0 : index
    %99 = vector.load %arg4[%c7, %c0_77, %c0_78] : memref<9x64x64xbf16, #tpu.memory_space<vmem>>, vector<1x64x64xbf16>
    %100 = vector.shape_cast %99 : vector<1x64x64xbf16> to vector<64x64xbf16>
    %cst_79 = arith.constant dense<0.000000e+00> : vector<8x64xf32>
    %101 = tpu.matmul %98, %100, %cst_79 {dimension_numbers = #tpu.dot_dimension_numbers<[1], [0], [0], [1], [0, 0, 1, 1], [], []>} : vector<8x64xbf16>, vector<64x64xbf16>, vector<8x64xf32> -> vector<8x64xf32>
    %102 = arith.addf %89, %101 : vector<8x64xf32>
    %c0_80 = arith.constant 0 : index
    %c4096 = arith.constant 4096 : index
    %103 = vector.load %arg1[%c0_80, %c4096] : memref<8x4608xbf16, #tpu.memory_space<vmem>>, vector<8x512xbf16>
    %c0_81 = arith.constant 0 : index
    %c0_82 = arith.constant 0 : index
    %104 = vector.load %arg2[%c0_81, %c0_82] : memref<512x64xbf16, #tpu.memory_space<vmem>>, vector<512x64xbf16>
    %cst_83 = arith.constant dense<0.000000e+00> : vector<8x64xf32>
    %105 = tpu.matmul %103, %104, %cst_83 {dimension_numbers = #tpu.dot_dimension_numbers<[1], [0], [0], [1], [0, 0, 1, 1], [], []>} : vector<8x512xbf16>, vector<512x64xbf16>, vector<8x64xf32> -> vector<8x64xf32>
    %c0_84 = arith.constant 0 : index
    %c0_85 = arith.constant 0 : index
    %106 = vector.load %arg3[%c0_84, %c0_85] : memref<1x64xf32, #tpu.memory_space<vmem>>, vector<1x64xf32>
    %107 = vector.broadcast %106 : vector<1x64xf32> to vector<8x64xf32>
    %108 = arith.addf %105, %107 : vector<8x64xf32>
    %cst_86 = arith.constant 0.000000e+00 : f32
    %109 = vector.broadcast %cst_86 : f32 to vector<8x64xf32>
    %110 = arith.maximumf %108, %109 : vector<8x64xf32>
    %111 = arith.truncf %110 : vector<8x64xf32> to vector<8x64xbf16>
    %c8 = arith.constant 8 : index
    %c0_87 = arith.constant 0 : index
    %c0_88 = arith.constant 0 : index
    %112 = vector.load %arg4[%c8, %c0_87, %c0_88] : memref<9x64x64xbf16, #tpu.memory_space<vmem>>, vector<1x64x64xbf16>
    %113 = vector.shape_cast %112 : vector<1x64x64xbf16> to vector<64x64xbf16>
    %cst_89 = arith.constant dense<0.000000e+00> : vector<8x64xf32>
    %114 = tpu.matmul %111, %113, %cst_89 {dimension_numbers = #tpu.dot_dimension_numbers<[1], [0], [0], [1], [0, 0, 1, 1], [], []>} : vector<8x64xbf16>, vector<64x64xbf16>, vector<8x64xf32> -> vector<8x64xf32>
    %115 = arith.addf %102, %114 : vector<8x64xf32>
    %c0_90 = arith.constant 0 : index
    %c0_91 = arith.constant 0 : index
    %116 = vector.load %arg5[%c0_90, %c0_91] : memref<1x64xf32, #tpu.memory_space<vmem>>, vector<1x64xf32>
    %117 = vector.broadcast %116 : vector<1x64xf32> to vector<8x64xf32>
    %118 = arith.addf %115, %117 : vector<8x64xf32>
    %cst_92 = arith.constant 0.000000e+00 : f32
    %119 = vector.broadcast %cst_92 : f32 to vector<8x64xf32>
    %120 = arith.maximumf %118, %119 : vector<8x64xf32>
    %121 = arith.truncf %120 : vector<8x64xf32> to vector<8x64xbf16>
    %c0_93 = arith.constant 0 : index
    %c0_94 = arith.constant 0 : index
    %122 = vector.load %arg6[%c0_93, %c0_94] : memref<64x512xbf16, #tpu.memory_space<vmem>>, vector<64x512xbf16>
    %cst_95 = arith.constant dense<0.000000e+00> : vector<8x512xf32>
    %123 = tpu.matmul %121, %122, %cst_95 {dimension_numbers = #tpu.dot_dimension_numbers<[1], [0], [0], [1], [0, 0, 1, 1], [], []>} : vector<8x64xbf16>, vector<64x512xbf16>, vector<8x512xf32> -> vector<8x512xf32>
    %c0_96 = arith.constant 0 : index
    %c0_97 = arith.constant 0 : index
    %124 = vector.load %arg7[%c0_96, %c0_97] : memref<1x512xf32, #tpu.memory_space<vmem>>, vector<1x512xf32>
    %125 = vector.broadcast %124 : vector<1x512xf32> to vector<8x512xf32>
    %126 = arith.addf %123, %125 : vector<8x512xf32>
    %cst_98 = arith.constant 0.000000e+00 : f32
    %127 = vector.broadcast %cst_98 : f32 to vector<8x512xf32>
    %128 = arith.maximumf %126, %127 : vector<8x512xf32>
    %129 = arith.truncf %128 : vector<8x512xf32> to vector<8x512xbf16>
    %c0_99 = arith.constant 0 : index
    %c0_100 = arith.constant 0 : index
    %130 = vector.load %arg8[%c0_99, %c0_100] : memref<512x512xbf16, #tpu.memory_space<vmem>>, vector<512x512xbf16>
    %cst_101 = arith.constant dense<0.000000e+00> : vector<8x512xf32>
    %131 = tpu.matmul %129, %130, %cst_101 {dimension_numbers = #tpu.dot_dimension_numbers<[1], [0], [0], [1], [0, 0, 1, 1], [], []>} : vector<8x512xbf16>, vector<512x512xbf16>, vector<8x512xf32> -> vector<8x512xf32>
    %c0_102 = arith.constant 0 : index
    %c0_103 = arith.constant 0 : index
    %132 = vector.load %arg9[%c0_102, %c0_103] : memref<1x512xf32, #tpu.memory_space<vmem>>, vector<1x512xf32>
    %133 = vector.broadcast %132 : vector<1x512xf32> to vector<8x512xf32>
    %134 = arith.addf %131, %133 : vector<8x512xf32>
    %135 = vector.extract_strided_slice %134 {offsets = [0, 0], sizes = [8, 128], strides = [1, 1]} : vector<8x512xf32> to vector<8x128xf32>
    %cst_104 = arith.constant dense<0xFF800000> : vector<8xf32>
    %136 = vector.multi_reduction <maximumf>, %135, %cst_104 [1] : vector<8x128xf32> to vector<8xf32>
    %137 = vector.shape_cast %136 : vector<8xf32> to vector<8x1xf32>
    %138 = vector.broadcast %137 : vector<8x1xf32> to vector<8x128xf32>
    %139 = arith.subf %135, %138 : vector<8x128xf32>
    %140 = math.exp %139 : vector<8x128xf32>
    %cst_105 = arith.constant dense<0.000000e+00> : vector<8xf32>
    %141 = vector.multi_reduction <add>, %140, %cst_105 [1] : vector<8x128xf32> to vector<8xf32>
    %142 = vector.shape_cast %141 : vector<8xf32> to vector<8x1xf32>
    %143 = vector.broadcast %142 : vector<8x1xf32> to vector<8x128xf32>
    %144 = arith.divf %140, %143 : vector<8x128xf32>
    %145 = vector.extract_strided_slice %134 {offsets = [0, 128], sizes = [8, 128], strides = [1, 1]} : vector<8x512xf32> to vector<8x128xf32>
    %cst_106 = arith.constant dense<0xFF800000> : vector<8xf32>
    %146 = vector.multi_reduction <maximumf>, %145, %cst_106 [1] : vector<8x128xf32> to vector<8xf32>
    %147 = vector.shape_cast %146 : vector<8xf32> to vector<8x1xf32>
    %148 = vector.broadcast %147 : vector<8x1xf32> to vector<8x128xf32>
    %149 = arith.subf %145, %148 : vector<8x128xf32>
    %150 = math.exp %149 : vector<8x128xf32>
    %cst_107 = arith.constant dense<0.000000e+00> : vector<8xf32>
    %151 = vector.multi_reduction <add>, %150, %cst_107 [1] : vector<8x128xf32> to vector<8xf32>
    %152 = vector.shape_cast %151 : vector<8xf32> to vector<8x1xf32>
    %153 = vector.broadcast %152 : vector<8x1xf32> to vector<8x128xf32>
    %154 = arith.divf %150, %153 : vector<8x128xf32>
    %155 = vector.extract_strided_slice %134 {offsets = [0, 256], sizes = [8, 128], strides = [1, 1]} : vector<8x512xf32> to vector<8x128xf32>
    %cst_108 = arith.constant dense<0xFF800000> : vector<8xf32>
    %156 = vector.multi_reduction <maximumf>, %155, %cst_108 [1] : vector<8x128xf32> to vector<8xf32>
    %157 = vector.shape_cast %156 : vector<8xf32> to vector<8x1xf32>
    %158 = vector.broadcast %157 : vector<8x1xf32> to vector<8x128xf32>
    %159 = arith.subf %155, %158 : vector<8x128xf32>
    %160 = math.exp %159 : vector<8x128xf32>
    %cst_109 = arith.constant dense<0.000000e+00> : vector<8xf32>
    %161 = vector.multi_reduction <add>, %160, %cst_109 [1] : vector<8x128xf32> to vector<8xf32>
    %162 = vector.shape_cast %161 : vector<8xf32> to vector<8x1xf32>
    %163 = vector.broadcast %162 : vector<8x1xf32> to vector<8x128xf32>
    %164 = arith.divf %160, %163 : vector<8x128xf32>
    %165 = vector.extract_strided_slice %134 {offsets = [0, 384], sizes = [8, 128], strides = [1, 1]} : vector<8x512xf32> to vector<8x128xf32>
    %cst_110 = arith.constant dense<0xFF800000> : vector<8xf32>
    %166 = vector.multi_reduction <maximumf>, %165, %cst_110 [1] : vector<8x128xf32> to vector<8xf32>
    %167 = vector.shape_cast %166 : vector<8xf32> to vector<8x1xf32>
    %168 = vector.broadcast %167 : vector<8x1xf32> to vector<8x128xf32>
    %169 = arith.subf %165, %168 : vector<8x128xf32>
    %170 = math.exp %169 : vector<8x128xf32>
    %cst_111 = arith.constant dense<0.000000e+00> : vector<8xf32>
    %171 = vector.multi_reduction <add>, %170, %cst_111 [1] : vector<8x128xf32> to vector<8xf32>
    %172 = vector.shape_cast %171 : vector<8xf32> to vector<8x1xf32>
    %173 = vector.broadcast %172 : vector<8x1xf32> to vector<8x128xf32>
    %174 = arith.divf %170, %173 : vector<8x128xf32>
    %175 = tpu.concatenate %144, %154, %164, %174 in 1 : vector<8x128xf32>, vector<8x128xf32>, vector<8x128xf32>, vector<8x128xf32> -> vector<8x512xf32>
    %c0_112 = arith.constant 0 : index
    %c0_113 = arith.constant 0 : index
    %176 = vector.load %arg10[%c0_112, %c0_113] : memref<8x512xf32, #tpu.memory_space<vmem>>, vector<8x512xf32>
    tpu.vector_store %arg10[%c0_112, %c0_113], %175 {strides = array<i32>} : memref<8x512xf32, #tpu.memory_space<vmem>>, vector<8x512xf32>,
    return
  }
  func.func @transform_0(%arg0: i32) -> (i32, i32) {
    %c0_i32 = arith.constant 0 : i32
    %c0_i32_0 = arith.constant 0 : i32
    return %arg0, %c0_i32 : i32, i32
  }
  func.func @transform_1(%arg0: i32) -> (i32, i32) {
    %c0_i32 = arith.constant 0 : i32
    %c0_i32_0 = arith.constant 0 : i32
    %c0_i32_1 = arith.constant 0 : i32
    return %c0_i32, %c0_i32_0 : i32, i32
  }
  func.func @transform_2(%arg0: i32) -> (i32, i32) {
    %c0_i32 = arith.constant 0 : i32
    %c0_i32_0 = arith.constant 0 : i32
    %c0_i32_1 = arith.constant 0 : i32
    return %c0_i32, %c0_i32_0 : i32, i32
  }
  func.func @transform_3(%arg0: i32) -> (i32, i32, i32) {
    %c0_i32 = arith.constant 0 : i32
    %c0_i32_0 = arith.constant 0 : i32
    %c0_i32_1 = arith.constant 0 : i32
    %c0_i32_2 = arith.constant 0 : i32
    return %c0_i32, %c0_i32_0, %c0_i32_1 : i32, i32, i32
  }
  func.func @transform_4(%arg0: i32) -> (i32, i32) {
    %c0_i32 = arith.constant 0 : i32
    %c0_i32_0 = arith.constant 0 : i32
    %c0_i32_1 = arith.constant 0 : i32
    return %c0_i32, %c0_i32_0 : i32, i32
  }
  func.func @transform_5(%arg0: i32) -> (i32, i32) {
    %c0_i32 = arith.constant 0 : i32
    %c0_i32_0 = arith.constant 0 : i32
    %c0_i32_1 = arith.constant 0 : i32
    return %c0_i32, %c0_i32_0 : i32, i32
  }
  func.func @transform_6(%arg0: i32) -> (i32, i32) {
    %c0_i32 = arith.constant 0 : i32
    %c0_i32_0 = arith.constant 0 : i32
    %c0_i32_1 = arith.constant 0 : i32
    return %c0_i32, %c0_i32_0 : i32, i32
  }
  func.func @transform_7(%arg0: i32) -> (i32, i32) {
    %c0_i32 = arith.constant 0 : i32
    %c0_i32_0 = arith.constant 0 : i32
    %c0_i32_1 = arith.constant 0 : i32
    return %c0_i32, %c0_i32_0 : i32, i32
  }
  func.func @transform_8(%arg0: i32) -> (i32, i32) {
    %c0_i32 = arith.constant 0 : i32
    %c0_i32_0 = arith.constant 0 : i32
    %c0_i32_1 = arith.constant 0 : i32
    return %c0_i32, %c0_i32_0 : i32, i32
  }
  func.func @transform_9(%arg0: i32) -> (i32, i32) {
    %c0_i32 = arith.constant 0 : i32
    %c0_i32_0 = arith.constant 0 : i32
    return %arg0, %c0_i32 : i32, i32
  }
}

</mosaic_0001>

<llo_original>
// kernel: _forward_impl.2
$region0: #{_forward_impl.2}
  #allocation0 [shape = 'u32[]', space=smem, size = 0x4, offset = 0x4, fixed_abs, tag = 'smem constant byte address 0x4 - core index']
  #allocation1 [shape = 'u32[144,128]{1,0:T(1,128)}', space=vmem, size = 0x12000, scoped, tag = 'internal scratch']
  %s0 = inlined_call_operand.vmem [shape: bf16[128,256], index: 0, kind: input, shape index: {}]
  %s1 = inlined_call_operand.vmem [shape: bf16[256,128], index: 1, kind: input, shape index: {}]
  %s2 = inlined_call_operand.vmem [shape: f32[1,128], index: 2, kind: input, shape index: {}]
  %s3 = inlined_call_operand.vmem [shape: bf16[128,128], index: 3, kind: output, shape index: {}]
  %s4 = sld [smem:[#allocation0]]
  $region45: #{_forward_impl.2} parent=0
    _
  %s6 = ssub.s32 1, %s4
  %s7 = scalar_select 0, %s6, %s4
  loop: start=0, step=1, limit=4
  $region2: #{_forward_impl.2} parent=0 // loop_pre_header
    _
  $region3: #{_forward_impl.2} parent=0 // loop_header
    %s9 = sphi 0, %s13
    %p10 = scmp.ge.s32.totalorder %s9, 4
    %s19 = sphi 0, %s21
    %s22 = sphi 0, %s19
    %s23 = sphi 0, %s22
    %s39 = sphi 0, %s23
    %s43 = sphi 0, %s43
    %s45 = sphi 0, %s43
    %s46 = sphi 0, %s45
    %s60 = sphi 0, %s46
    %s64 = sphi 0, %s64
    %s66 = sphi 0, %s64
    %s67 = sphi 0, %s66
    %s81 = sphi 0, %s67
    %s87 = sphi 0, %s89
    %s90 = sphi 0, %s87
    %s91 = sphi 0, %s90
    %s107 = sphi 0, %s91
  $region4: #{_forward_impl.2} parent=0 // loop_header_branch
    %12 = sbr.rel (%p10) target = $region8
  $region5: #{_forward_impl.2} parent=0 // loop_body
    %s14 = ssub.s32 %s9, 1
    %s15 = ssub.s32 %s9, 2
    %s16 = sadd.s32 %s9, 1
    %s17 = ssub.s32 %s9, %s16
    %p18 = scmp.eq.s32.totalorder %s17, 0
    %s20 = sadd.s32 %s19, 1
    %s21 = scalar_select %p18, %s19, %s20
    %p24 = pneg %p18
    %p25 = scmp.eq.s32.totalorder %s9, 1
    %p26 = por %p24, %p25
    %p27 = scmp.ne.s32.totalorder %s19, %s22
    %p28 = scmp.eq.s32.totalorder %s9, 0
    %p29 = por %p27, %p28
    %p30 = scmp.ne.s32.totalorder %s19, %s22
    %p31 = scmp.eq.s32.totalorder %s14, 1
    %p32 = por %p30, %p31
    %p33 = scmp.ne.s32.totalorder %s22, %s23
    %p34 = scmp.eq.s32.totalorder %s14, 0
    %p35 = por %p33, %p34
    %p36 = scmp.ne.s32.totalorder %s22, %s23
    %p37 = scmp.eq.s32.totalorder %s15, 1
    %p38 = por %p36, %p37
    %p40 = scmp.ne.s32.totalorder %s23, %s39
    %p41 = scmp.eq.s32.totalorder %s15, 0
    %p42 = por %p40, %p41
    %s44 = sadd.s32 %s43, 1
    %p47 = scmp.eq.s32.totalorder %s9, 1
    %p48 = scmp.ne.s32.totalorder %s43, %s45
    %p49 = scmp.eq.s32.totalorder %s9, 0
    %p50 = por %p48, %p49
    %p51 = scmp.ne.s32.totalorder %s43, %s45
    %p52 = scmp.eq.s32.totalorder %s14, 1
    %p53 = por %p51, %p52
    %p54 = scmp.ne.s32.totalorder %s45, %s46
    %p55 = scmp.eq.s32.totalorder %s14, 0
    %p56 = por %p54, %p55
    %p57 = scmp.ne.s32.totalorder %s45, %s46
    %p58 = scmp.eq.s32.totalorder %s15, 1
    %p59 = por %p57, %p58
    %p61 = scmp.ne.s32.totalorder %s46, %s60
    %p62 = scmp.eq.s32.totalorder %s15, 0
    %p63 = por %p61, %p62
    %s65 = sadd.s32 %s64, 1
    %p68 = scmp.eq.s32.totalorder %s9, 1
    %p69 = scmp.ne.s32.totalorder %s64, %s66
    %p70 = scmp.eq.s32.totalorder %s9, 0
    %p71 = por %p69, %p70
    %p72 = scmp.ne.s32.totalorder %s64, %s66
    %p73 = scmp.eq.s32.totalorder %s14, 1
    %p74 = por %p72, %p73
    %p75 = scmp.ne.s32.totalorder %s66, %s67
    %p76 = scmp.eq.s32.totalorder %s14, 0
    %p77 = por %p75, %p76
    %p78 = scmp.ne.s32.totalorder %s66, %s67
    %p79 = scmp.eq.s32.totalorder %s15, 1
    %p80 = por %p78, %p79
    %p82 = scmp.ne.s32.totalorder %s67, %s81
    %p83 = scmp.eq.s32.totalorder %s15, 0
    %p84 = por %p82, %p83
    %s85 = ssub.s32 %s9, %s16
    %p86 = scmp.eq.s32.totalorder %s85, 0
    %s88 = sadd.s32 %s87, 1
    %s89 = scalar_select %p86, %s87, %s88
    %p92 = pneg %p86
    %p93 = scmp.eq.s32.totalorder %s9, 1
    %p94 = por %p92, %p93
    %p95 = scmp.ne.s32.totalorder %s87, %s90
    %p96 = scmp.eq.s32.totalorder %s9, 0
    %p97 = por %p95, %p96
    %p98 = scmp.ne.s32.totalorder %s87, %s90
    %p99 = scmp.eq.s32.totalorder %s14, 1
    %p100 = por %p98, %p99
    %p101 = scmp.ne.s32.totalorder %s90, %s91
    %p102 = scmp.eq.s32.totalorder %s14, 0
    %p103 = por %p101, %p102
    %p104 = scmp.ne.s32.totalorder %s90, %s91
    %p105 = scmp.eq.s32.totalorder %s15, 1
    %p106 = por %p104, %p105
    %p108 = scmp.ne.s32.totalorder %s91, %s107
    %p109 = scmp.eq.s32.totalorder %s15, 0
    %p110 = por %p108, %p109
    %p111 = scmp.le.s32.totalorder 1, %s9
    %p112 = scmp.lt.s32.totalorder %s9, 3
    %p113 = pnand %p111, %p112
    %p114 = pneg %p113
    // Predicated region
    $region9: #{_forward_impl.2} parent=5 // pred_check
      _
    $region10: #{_forward_impl.2} parent=5 // pred_check_branch
      %116 = sbr.rel (%p113) target = $region12
    $region11: #{_forward_impl.2} parent=5 // pred_region
      %s117 = ssub.s32 %s9, 1
      // Predicated region
      $region13: #{_forward_impl.2} parent=11 // pred_check
        %p118 = pneg %p56
      $region14: #{_forward_impl.2} parent=11 // pred_check_branch
        %120 = sbr.rel (%p118) target = $region16
      $region15: #{_forward_impl.2} parent=11 // pred_region
        _
      $region16: #{_forward_impl.2} parent=11 // pred_fallthru
        _
      // Predicated region
      $region17: #{_forward_impl.2} parent=11 // pred_check
        %p121 = pneg %p77
      $region18: #{_forward_impl.2} parent=11 // pred_check_branch
        %123 = sbr.rel (%p121) target = $region20
      $region19: #{_forward_impl.2} parent=11 // pred_region
        _
      $region20: #{_forward_impl.2} parent=11 // pred_fallthru
        _
    $region12: #{_forward_impl.2} parent=5 // pred_fallthru
      _
    %p124 = scmp.lt.s32.totalorder %s9, 2
    // Predicated region
    $region21: #{_forward_impl.2} parent=5 // pred_check
      %p125 = pneg %p124
    $region22: #{_forward_impl.2} parent=5 // pred_check_branch
      %127 = sbr.rel (%p125) target = $region24
    $region23: #{_forward_impl.2} parent=5 // pred_region
      // Predicated region
      $region25: #{_forward_impl.2} parent=23 // pred_check
        %p128 = pneg %p29
      $region26: #{_forward_impl.2} parent=23 // pred_check_branch
        %130 = sbr.rel (%p128) target = $region28
      $region27: #{_forward_impl.2} parent=23 // pred_region
        %s131 = smul.u32 8, %s9
        %p132 = scmp.lt.s32.totalorder %s131, 15
        %s133 = scalar_select %p132, %s131, 15
        %s134 = smul.addr %s133, 2
        %s135 = smul.addr %s134, 4
        %s136 = scalar_lea.vmem %s0, %s135
        %s137 = smul.u32 8, %s9
      $region28: #{_forward_impl.2} parent=23 // pred_fallthru
        _
    $region24: #{_forward_impl.2} parent=5 // pred_fallthru
      _
    %p138 = scmp.le.s32.totalorder 1, %s9
    %p139 = scmp.lt.s32.totalorder %s9, 3
    %p140 = pnand %p138, %p139
    %p141 = pneg %p140
    // Predicated region
    $region29: #{_forward_impl.2} parent=5 // pred_check
      _
    $region30: #{_forward_impl.2} parent=5 // pred_check_branch
      %143 = sbr.rel (%p140) target = $region32
    $region31: #{_forward_impl.2} parent=5 // pred_region
      %s144 = ssub.s32 %s9, 1
      %s145 = smul.u32 8, %s14
      %p146 = scmp.lt.s32.totalorder %s145, 15
      %s147 = scalar_select %p146, %s145, 15
      %s148 = smul.addr %s147, 2
      %s149 = smul.addr %s148, 4
      %s150 = scalar_lea.vmem %s0, %s149
      %p151 = pneg %p35
      %p152 = pneg %p32
      %p153 = pneg %p56
      %p154 = pneg %p53
      %p155 = pneg %p77
      %p156 = pneg %p74
      %p157 = pneg %p103
      %p158 = pneg %p100
      %s159 = smul.u32 8, %s14
      %p160 = scmp.lt.s32.totalorder %s159, 15
      %s161 = scalar_select %p160, %s159, 15
      %s162 = smul.addr %s161, 4
      %s163 = scalar_lea.vmem %s3, %s162
      %s164 = smul.u32 8, %s14
      %p165 = scmp.lt.s32.totalorder %s164, 15
      %s166 = scalar_select %p165, %s164, 15
      %s167 = smul.addr %s166, 2
      %s168 = smul.addr %s167, 4
      %s169 = scalar_lea.vmem %s0, %s168
      %s170 = smul.u32 8, %s14
      %s171 = smul.u32 8, %s14
      %p172 = scmp.lt.s32.totalorder %s171, 15
      %s173 = scalar_select %p172, %s171, 15
      %s174 = smul.addr %s173, 4
      %s175 = scalar_lea.vmem %s3, %s174
      %s176 = smul.u32 8, %s14
      %v178 = vld [vmem:[%s169] sm:$0xff]
      %v179 = vld [vmem:[%s169 + $0x8] sm:$0xff]
      %v180 = vld [vmem:[%s169 + $0x10] sm:$0xff]
      %v181 = vld [vmem:[%s169 + $0x18] sm:$0xff]
      %v182 = vld [vmem:[%s169 + $0x20] sm:$0xff]
      %v183 = vld [vmem:[%s169 + $0x28] sm:$0xff]
      %v184 = vld [vmem:[%s169 + $0x30] sm:$0xff]
      %v185 = vld [vmem:[%s169 + $0x38] sm:$0xff]
      %v186 = vld [vmem:[%s1] sm:$0xf]
      %v187 = vld [vmem:[%s1 + $0x4] sm:$0xf]
      %v188 = vld [vmem:[%s1 + $0x8] sm:$0xf]
      %v189 = vld [vmem:[%s1 + $0xc] sm:$0xf]
      %v190 = vld [vmem:[%s1 + $0x10] sm:$0xf]
      %v191 = vld [vmem:[%s1 + $0x14] sm:$0xf]
      %v192 = vld [vmem:[%s1 + $0x18] sm:$0xf]
      %v193 = vld [vmem:[%s1 + $0x1c] sm:$0xf]
      %v194 = vld [vmem:[%s1 + $0x20] sm:$0xf]
      %v195 = vld [vmem:[%s1 + $0x24] sm:$0xf]
      %v196 = vld [vmem:[%s1 + $0x28] sm:$0xf]
      %v197 = vld [vmem:[%s1 + $0x2c] sm:$0xf]
      %v198 = vld [vmem:[%s1 + $0x30] sm:$0xf]
      %v199 = vld [vmem:[%s1 + $0x34] sm:$0xf]
      %v200 = vld [vmem:[%s1 + $0x38] sm:$0xf]
      %v201 = vld [vmem:[%s1 + $0x3c] sm:$0xf]
      %v202 = vld [vmem:[%s1 + $0x40] sm:$0xf]
      %v203 = vld [vmem:[%s1 + $0x44] sm:$0xf]
      %v204 = vld [vmem:[%s1 + $0x48] sm:$0xf]
      %v205 = vld [vmem:[%s1 + $0x4c] sm:$0xf]
      %v206 = vld [vmem:[%s1 + $0x50] sm:$0xf]
      %v207 = vld [vmem:[%s1 + $0x54] sm:$0xf]
      %v208 = vld [vmem:[%s1 + $0x58] sm:$0xf]
      %v209 = vld [vmem:[%s1 + $0x5c] sm:$0xf]
      %v210 = vld [vmem:[%s1 + $0x60] sm:$0xf]
      %v211 = vld [vmem:[%s1 + $0x64] sm:$0xf]
      %v212 = vld [vmem:[%s1 + $0x68] sm:$0xf]
      %v213 = vld [vmem:[%s1 + $0x6c] sm:$0xf]
      %v214 = vld [vmem:[%s1 + $0x70] sm:$0xf]
      %v215 = vld [vmem:[%s1 + $0x74] sm:$0xf]
      %v216 = vld [vmem:[%s1 + $0x78] sm:$0xf]
      %v217 = vld [vmem:[%s1 + $0x7c] sm:$0xf]
      %v218 = vld [vmem:[%s2] sm:$0x1]
      %v220 = vlaneseq
      %v221 = vshrl.u32 %v220, 7
      %v222 = vsub.s32 0, %v221
      %v223 = vrot.slane %v218, %v222
      %v233 = vunpack.c.l.b16 %v178
      %v234 = vunpack.c.h.b16 %v178
      %v235 = vunpack.c.l.b16 %v179
      %v236 = vunpack.c.h.b16 %v179
      %v237 = vunpack.c.l.b16 %v180
      %v238 = vunpack.c.h.b16 %v180
      %v239 = vunpack.c.l.b16 %v181
      %v240 = vunpack.c.h.b16 %v181
      %v241 = vunpack.c.l.b16 %v182
      %v242 = vunpack.c.h.b16 %v182
      %v243 = vunpack.c.l.b16 %v183
      %v244 = vunpack.c.h.b16 %v183
      %v245 = vunpack.c.l.b16 %v184
      %v246 = vunpack.c.h.b16 %v184
      %v247 = vunpack.c.l.b16 %v185
      %v248 = vunpack.c.h.b16 %v185
      %v249 = vpack.c.b16 %v235, %v233
      %v250 = vpack.c.b16 %v236, %v234
      %v251 = vpack.c.b16 %v239, %v237
      %v252 = vpack.c.b16 %v240, %v238
      %v253 = vpack.c.b16 %v243, %v241
      %v254 = vpack.c.b16 %v244, %v242
      %v255 = vpack.c.b16 %v247, %v245
      %v256 = vpack.c.b16 %v248, %v246
      %v297 = vunpack.c.l.b16 %v186
      %v298 = vunpack.c.l.b16 %v187
      %v299 = vunpack.c.l.b16 %v188
      %v300 = vunpack.c.l.b16 %v189
      %v301 = vunpack.c.l.b16 %v190
      %v302 = vunpack.c.l.b16 %v191
      %v303 = vunpack.c.l.b16 %v192
      %v304 = vunpack.c.l.b16 %v193
      %v305 = vunpack.c.l.b16 %v194
      %v306 = vunpack.c.l.b16 %v195
      %v307 = vunpack.c.l.b16 %v196
      %v308 = vunpack.c.l.b16 %v197
      %v309 = vunpack.c.l.b16 %v198
      %v310 = vunpack.c.l.b16 %v199
      %v311 = vunpack.c.l.b16 %v200
      %v312 = vunpack.c.l.b16 %v201
      %v313 = vunpack.c.l.b16 %v202
      %v314 = vunpack.c.l.b16 %v203
      %v315 = vunpack.c.l.b16 %v204
      %v316 = vunpack.c.l.b16 %v205
      %v317 = vunpack.c.l.b16 %v206
      %v318 = vunpack.c.l.b16 %v207
      %v319 = vunpack.c.l.b16 %v208
      %v320 = vunpack.c.l.b16 %v209
      %v321 = vunpack.c.l.b16 %v210
      %v322 = vunpack.c.l.b16 %v211
      %v323 = vunpack.c.l.b16 %v212
      %v324 = vunpack.c.l.b16 %v213
      %v325 = vunpack.c.l.b16 %v214
      %v326 = vunpack.c.l.b16 %v215
      %v327 = vunpack.c.l.b16 %v216
      %v328 = vunpack.c.l.b16 %v217
      %v329 = vpack.c.b16 %v298, %v297
      %v330 = vpack.c.b16 %v300, %v299
      %v331 = vpack.c.b16 %v302, %v301
      %v332 = vpack.c.b16 %v304, %v303
      %v333 = vpack.c.b16 %v306, %v305
      %v334 = vpack.c.b16 %v308, %v307
      %v335 = vpack.c.b16 %v310, %v309
      %v336 = vpack.c.b16 %v312, %v311
      %v337 = vpack.c.b16 %v314, %v313
      %v338 = vpack.c.b16 %v316, %v315
      %v339 = vpack.c.b16 %v318, %v317
      %v340 = vpack.c.b16 %v320, %v319
      %v341 = vpack.c.b16 %v322, %v321
      %v342 = vpack.c.b16 %v324, %v323
      %v343 = vpack.c.b16 %v326, %v325
      %v344 = vpack.c.b16 %v328, %v327
      %361 = vmatprep.subr.bf16.mxu0 0
      %362 = vmatpush1.bf16.msra.mxu0 %v336
      %363 = vmatprep.subr.bf16.mxu0 0
      %364 = vmatpush1.bf16.msra.mxu0 %v335
      %365 = vmatprep.subr.bf16.mxu0 0
      %366 = vmatpush1.bf16.msra.mxu0 %v334
      %367 = vmatprep.subr.bf16.mxu0 0
      %368 = vmatpush1.bf16.msra.mxu0 %v333
      %369 = vmatprep.subr.bf16.mxu0 0
      %370 = vmatpush1.bf16.msra.mxu0 %v332
      %371 = vmatprep.subr.bf16.mxu0 0
      %372 = vmatpush1.bf16.msra.mxu0 %v331
      %373 = vmatprep.subr.bf16.mxu0 0
      %374 = vmatpush1.bf16.msra.mxu0 %v330
      %375 = vmatprep.subr.bf16.mxu0 0
      %376 = vmatpush1.bf16.msra.mxu0 %v329
      %377 = vmatprep.subr.bf16.mxu0 0
      %378 = vmatpush2.bf16.msra.mxu0 %v344
      %379 = vmatprep.subr.bf16.mxu0 0
      %380 = vmatpush2.bf16.msra.mxu0 %v343
      %381 = vmatprep.subr.bf16.mxu0 0
      %382 = vmatpush2.bf16.msra.mxu0 %v342
      %383 = vmatprep.subr.bf16.mxu0 0
      %384 = vmatpush2.bf16.msra.mxu0 %v341
      %385 = vmatprep.subr.bf16.mxu0 0
      %386 = vmatpush2.bf16.msra.mxu0 %v340
      %387 = vmatprep.subr.bf16.mxu0 0
      %388 = vmatpush2.bf16.msra.mxu0 %v339
      %389 = vmatprep.subr.bf16.mxu0 0
      %390 = vmatpush2.bf16.msra.mxu0 %v338
      %391 = vmatprep.subr.bf16.mxu0 0
      %392 = vmatpush2.bf16.msra.mxu0 %v337
      %393 = vmatprep.mubr.bf16.mxu0 %v250
      %394 = vmatmul.mubr.bf16.gmra.mxu0 %v249
      %v395 = vpop.f32.mrf.mxu0
      %v396 = vadd.f32 %v223, %v395
      %v397 = vpop.f32.mrf.mxu0
      %v398 = vpop.f32.mrf.mxu0
      %v399 = vadd.f32 %v223, %v398
      %v400 = vpop.f32.mrf.mxu0
      %401 = vmatprep.mubr.bf16.mxu0 %v252
      %402 = vmatmul.mubr.bf16.gmra.mxu0 %v251
      %v403 = vpop.f32.mrf.mxu0
      %v404 = vadd.f32 %v223, %v403
      %v405 = vpop.f32.mrf.mxu0
      %v406 = vpop.f32.mrf.mxu0
      %v407 = vadd.f32 %v223, %v406
      %v408 = vpop.f32.mrf.mxu0
      %409 = vmatprep.mubr.bf16.mxu0 %v254
      %410 = vmatmul.mubr.bf16.gmra.mxu0 %v253
      %v411 = vpop.f32.mrf.mxu0
      %v412 = vadd.f32 %v223, %v411
      %v413 = vpop.f32.mrf.mxu0
      %v414 = vpop.f32.mrf.mxu0
      %v415 = vadd.f32 %v223, %v414
      %v416 = vpop.f32.mrf.mxu0
      %417 = vmatprep.mubr.bf16.mxu0 %v256
      %418 = vmatmul.mubr.bf16.gmra.mxu0 %v255
      %v419 = vpop.f32.mrf.mxu0
      %v420 = vadd.f32 %v223, %v419
      %v421 = vpop.f32.mrf.mxu0
      %v422 = vpop.f32.mrf.mxu0
      %v423 = vadd.f32 %v223, %v422
      %v424 = vpop.f32.mrf.mxu0
      %425 = vdwg.mxu0
      %v426 = vmax.f32 %v396, 0.0
      %v427 = vmax.f32 %v399, 0.0
      %v428 = vmax.f32 %v404, 0.0
      %v429 = vmax.f32 %v407, 0.0
      %v430 = vmax.f32 %v412, 0.0
      %v431 = vmax.f32 %v415, 0.0
      %v432 = vmax.f32 %v420, 0.0
      %v433 = vmax.f32 %v423, 0.0
      %v434 = vpack.c.bf16 %v427, %v426
      %v435 = vpack.c.bf16 %v429, %v428
      %v436 = vpack.c.bf16 %v431, %v430
      %v437 = vpack.c.bf16 %v433, %v432
      %v442 = vunpack.c.l.b16 %v434
      %v443 = vunpack.c.h.b16 %v434
      %v444 = vunpack.c.l.b16 %v435
      %v445 = vunpack.c.h.b16 %v435
      %v446 = vunpack.c.l.b16 %v436
      %v447 = vunpack.c.h.b16 %v436
      %v448 = vunpack.c.l.b16 %v437
      %v449 = vunpack.c.h.b16 %v437
      %v450 = vpack.c.b16 %v442, %v442
      %v451 = vpack.c.b16 %v443, %v443
      %v452 = vpack.c.b16 %v444, %v444
      %v453 = vpack.c.b16 %v445, %v445
      %v454 = vpack.c.b16 %v446, %v446
      %v455 = vpack.c.b16 %v447, %v447
      %v456 = vpack.c.b16 %v448, %v448
      %v457 = vpack.c.b16 %v449, %v449
      %466 = vst [vmem:[%s175] sm:$0xf] %v450
      %467 = vst [vmem:[%s175 + $0x4] sm:$0xf] %v451
      %468 = vst [vmem:[%s175 + $0x8] sm:$0xf] %v452
      %469 = vst [vmem:[%s175 + $0xc] sm:$0xf] %v453
      %470 = vst [vmem:[%s175 + $0x10] sm:$0xf] %v454
      %471 = vst [vmem:[%s175 + $0x14] sm:$0xf] %v455
      %472 = vst [vmem:[%s175 + $0x18] sm:$0xf] %v456
      %473 = vst [vmem:[%s175 + $0x1c] sm:$0xf] %v457
      %s474 = smul.u32 8, %s14
      %p475 = scmp.lt.s32.totalorder %s474, 15
      %s476 = scalar_select %p475, %s474, 15
      %s477 = smul.addr %s476, 4
      %s478 = scalar_lea.vmem %s3, %s477
      // Predicated region
      $region33: #{_forward_impl.2} parent=31 // pred_check
        %p479 = pneg %p100
      $region34: #{_forward_impl.2} parent=31 // pred_check_branch
        %481 = sbr.rel (%p479) target = $region36
      $region35: #{_forward_impl.2} parent=31 // pred_region
        %s482 = smul.u32 8, %s14
      $region36: #{_forward_impl.2} parent=31 // pred_fallthru
        _
    $region32: #{_forward_impl.2} parent=5 // pred_fallthru
      _
    %p483 = scmp.le.s32.totalorder 2, %s9
    // Predicated region
    $region37: #{_forward_impl.2} parent=5 // pred_check
      %p484 = pneg %p483
    $region38: #{_forward_impl.2} parent=5 // pred_check_branch
      %486 = sbr.rel (%p484) target = $region40
    $region39: #{_forward_impl.2} parent=5 // pred_region
      %s487 = ssub.s32 %s9, 2
      // Predicated region
      $region41: #{_forward_impl.2} parent=39 // pred_check
        %p488 = pneg %p106
      $region42: #{_forward_impl.2} parent=39 // pred_check_branch
        %490 = sbr.rel (%p488) target = $region44
      $region43: #{_forward_impl.2} parent=39 // pred_region
        %s491 = smul.u32 8, %s15
        %p492 = scmp.lt.s32.totalorder %s491, 15
        %s493 = scalar_select %p492, %s491, 15
        %s494 = smul.addr %s493, 4
        %s495 = scalar_lea.vmem %s3, %s494
      $region44: #{_forward_impl.2} parent=39 // pred_fallthru
        _
    $region40: #{_forward_impl.2} parent=5 // pred_fallthru
      _
  $region6: #{_forward_impl.2} parent=0 // loop_footer
    %s13 = sadd.s32 1, %s9
  $region7: #{_forward_impl.2} parent=0 // loop_footer_branch
    %8 = sbr.rel target = $region3
  $region8: #{_forward_impl.2} parent=0 // loop_exit
    _

// kernel: _forward_impl.3
$region0: #{_forward_impl.3}
  #allocation0 [shape = 'u32[]', space=smem, size = 0x4, offset = 0x4, fixed_abs, tag = 'smem constant byte address 0x4 - core index']
  #allocation1 [shape = 'u32[144,128]{1,0:T(1,128)}', space=vmem, size = 0x12000, scoped, tag = 'internal scratch']
  %s0 = inlined_call_operand.vmem [shape: bf16[8,4608], index: 0, kind: input, shape index: {}]
  %s1 = inlined_call_operand.vmem [shape: bf16[512,64], index: 1, kind: input, shape index: {}]
  %s2 = inlined_call_operand.vmem [shape: f32[1,64], index: 2, kind: input, shape index: {}]
  %s3 = inlined_call_operand.vmem [shape: bf16[9,64,64], index: 3, kind: input, shape index: {}]
  %s4 = inlined_call_operand.vmem [shape: f32[1,64], index: 4, kind: input, shape index: {}]
  %s5 = inlined_call_operand.vmem [shape: bf16[64,512], index: 5, kind: input, shape index: {}]
  %s6 = inlined_call_operand.vmem [shape: f32[1,512], index: 6, kind: input, shape index: {}]
  %s7 = inlined_call_operand.vmem [shape: bf16[512,512], index: 7, kind: input, shape index: {}]
  %s8 = inlined_call_operand.vmem [shape: f32[1,512], index: 8, kind: input, shape index: {}]
  %s9 = inlined_call_operand.vmem [shape: f32[8,512], index: 9, kind: output, shape index: {}]
  %s10 = sld [smem:[#allocation0]]
  $region46: #{_forward_impl.3} parent=0
    _
  %s12 = ssub.s32 1, %s10
  %s13 = scalar_select 0, %s12, %s10
  // Predicated region
  $region2: #{_forward_impl.3} parent=0 // pred_check
    _
  $region3: #{_forward_impl.3} parent=0 // pred_check_branch
    %15 = sbr.rel (0) target = $region5
  $region4: #{_forward_impl.3} parent=0 // pred_region
    _
  $region5: #{_forward_impl.3} parent=0 // pred_fallthru
    _
  // Predicated region
  $region6: #{_forward_impl.3} parent=0 // pred_check
    _
  $region7: #{_forward_impl.3} parent=0 // pred_check_branch
    %17 = sbr.rel (0) target = $region9
  $region8: #{_forward_impl.3} parent=0 // pred_region
    _
  $region9: #{_forward_impl.3} parent=0 // pred_fallthru
    _
  // Predicated region
  $region10: #{_forward_impl.3} parent=0 // pred_check
    _
  $region11: #{_forward_impl.3} parent=0 // pred_check_branch
    %19 = sbr.rel (0) target = $region13
  $region12: #{_forward_impl.3} parent=0 // pred_region
    _
  $region13: #{_forward_impl.3} parent=0 // pred_fallthru
    _
  // Predicated region
  $region14: #{_forward_impl.3} parent=0 // pred_check
    _
  $region15: #{_forward_impl.3} parent=0 // pred_check_branch
    %21 = sbr.rel (0) target = $region17
  $region16: #{_forward_impl.3} parent=0 // pred_region
    _
  $region17: #{_forward_impl.3} parent=0 // pred_fallthru
    _
  // Predicated region
  $region18: #{_forward_impl.3} parent=0 // pred_check
    _
  $region19: #{_forward_impl.3} parent=0 // pred_check_branch
    %23 = sbr.rel (0) target = $region21
  $region20: #{_forward_impl.3} parent=0 // pred_region
    _
  $region21: #{_forward_impl.3} parent=0 // pred_fallthru
    _
  // Predicated region
  $region22: #{_forward_impl.3} parent=0 // pred_check
    _
  $region23: #{_forward_impl.3} parent=0 // pred_check_branch
    %25 = sbr.rel (0) target = $region25
  $region24: #{_forward_impl.3} parent=0 // pred_region
    _
  $region25: #{_forward_impl.3} parent=0 // pred_fallthru
    _
  // Predicated region
  $region26: #{_forward_impl.3} parent=0 // pred_check
    _
  $region27: #{_forward_impl.3} parent=0 // pred_check_branch
    %27 = sbr.rel (0) target = $region29
  $region28: #{_forward_impl.3} parent=0 // pred_region
    _
  $region29: #{_forward_impl.3} parent=0 // pred_fallthru
    _
  // Predicated region
  $region30: #{_forward_impl.3} parent=0 // pred_check
    _
  $region31: #{_forward_impl.3} parent=0 // pred_check_branch
    %29 = sbr.rel (0) target = $region33
  $region32: #{_forward_impl.3} parent=0 // pred_region
    _
  $region33: #{_forward_impl.3} parent=0 // pred_fallthru
    _
  // Predicated region
  $region34: #{_forward_impl.3} parent=0 // pred_check
    _
  $region35: #{_forward_impl.3} parent=0 // pred_check_branch
    %31 = sbr.rel (0) target = $region37
  $region36: #{_forward_impl.3} parent=0 // pred_region
    _
  $region37: #{_forward_impl.3} parent=0 // pred_fallthru
    _
  %v33 = vld [vmem:[%s0] sm:$0xff]
  %v34 = vld [vmem:[%s0 + $0x8] sm:$0xff]
  %v35 = vld [vmem:[%s1] sm:$0xf]
  %v36 = vld [vmem:[%s1 + $0x4] sm:$0xf]
  %v37 = vld [vmem:[%s1 + $0x8] sm:$0xf]
  %v38 = vld [vmem:[%s1 + $0xc] sm:$0xf]
  %v39 = vld [vmem:[%s1 + $0x10] sm:$0xf]
  %v40 = vld [vmem:[%s1 + $0x14] sm:$0xf]
  %v41 = vld [vmem:[%s1 + $0x18] sm:$0xf]
  %v42 = vld [vmem:[%s1 + $0x1c] sm:$0xf]
  %v43 = vld [vmem:[%s1 + $0x20] sm:$0xf]
  %v44 = vld [vmem:[%s1 + $0x24] sm:$0xf]
  %v45 = vld [vmem:[%s1 + $0x28] sm:$0xf]
  %v46 = vld [vmem:[%s1 + $0x2c] sm:$0xf]
  %v47 = vld [vmem:[%s1 + $0x30] sm:$0xf]
  %v48 = vld [vmem:[%s1 + $0x34] sm:$0xf]
  %v49 = vld [vmem:[%s1 + $0x38] sm:$0xf]
  %v50 = vld [vmem:[%s1 + $0x3c] sm:$0xf]
  %v51 = vld [vmem:[%s1 + $0x40] sm:$0xf]
  %v52 = vld [vmem:[%s1 + $0x44] sm:$0xf]
  %v53 = vld [vmem:[%s1 + $0x48] sm:$0xf]
  %v54 = vld [vmem:[%s1 + $0x4c] sm:$0xf]
  %v55 = vld [vmem:[%s1 + $0x50] sm:$0xf]
  %v56 = vld [vmem:[%s1 + $0x54] sm:$0xf]
  %v57 = vld [vmem:[%s1 + $0x58] sm:$0xf]
  %v58 = vld [vmem:[%s1 + $0x5c] sm:$0xf]
  %v59 = vld [vmem:[%s1 + $0x60] sm:$0xf]
  %v60 = vld [vmem:[%s1 + $0x64] sm:$0xf]
  %v61 = vld [vmem:[%s1 + $0x68] sm:$0xf]
  %v62 = vld [vmem:[%s1 + $0x6c] sm:$0xf]
  %v63 = vld [vmem:[%s1 + $0x70] sm:$0xf]
  %v64 = vld [vmem:[%s1 + $0x74] sm:$0xf]
  %v65 = vld [vmem:[%s1 + $0x78] sm:$0xf]
  %v66 = vld [vmem:[%s1 + $0x7c] sm:$0xf]
  %v67 = vld [vmem:[%s1 + $0x80] sm:$0xf]
  %v68 = vld [vmem:[%s1 + $0x84] sm:$0xf]
  %v69 = vld [vmem:[%s1 + $0x88] sm:$0xf]
  %v70 = vld [vmem:[%s1 + $0x8c] sm:$0xf]
  %v71 = vld [vmem:[%s1 + $0x90] sm:$0xf]
  %v72 = vld [vmem:[%s1 + $0x94] sm:$0xf]
  %v73 = vld [vmem:[%s1 + $0x98] sm:$0xf]
  %v74 = vld [vmem:[%s1 + $0x9c] sm:$0xf]
  %v75 = vld [vmem:[%s1 + $0xa0] sm:$0xf]
  %v76 = vld [vmem:[%s1 + $0xa4] sm:$0xf]
  %v77 = vld [vmem:[%s1 + $0xa8] sm:$0xf]
  %v78 = vld [vmem:[%s1 + $0xac] sm:$0xf]
  %v79 = vld [vmem:[%s1 + $0xb0] sm:$0xf]
  %v80 = vld [vmem:[%s1 + $0xb4] sm:$0xf]
  %v81 = vld [vmem:[%s1 + $0xb8] sm:$0xf]
  %v82 = vld [vmem:[%s1 + $0xbc] sm:$0xf]
  %v83 = vld [vmem:[%s1 + $0xc0] sm:$0xf]
  %v84 = vld [vmem:[%s1 + $0xc4] sm:$0xf]
  %v85 = vld [vmem:[%s1 + $0xc8] sm:$0xf]
  %v86 = vld [vmem:[%s1 + $0xcc] sm:$0xf]
  %v87 = vld [vmem:[%s1 + $0xd0] sm:$0xf]
  %v88 = vld [vmem:[%s1 + $0xd4] sm:$0xf]
  %v89 = vld [vmem:[%s1 + $0xd8] sm:$0xf]
  %v90 = vld [vmem:[%s1 + $0xdc] sm:$0xf]
  %v91 = vld [vmem:[%s1 + $0xe0] sm:$0xf]
  %v92 = vld [vmem:[%s1 + $0xe4] sm:$0xf]
  %v93 = vld [vmem:[%s1 + $0xe8] sm:$0xf]
  %v94 = vld [vmem:[%s1 + $0xec] sm:$0xf]
  %v95 = vld [vmem:[%s1 + $0xf0] sm:$0xf]
  %v96 = vld [vmem:[%s1 + $0xf4] sm:$0xf]
  %v97 = vld [vmem:[%s1 + $0xf8] sm:$0xf]
  %v98 = vld [vmem:[%s1 + $0xfc] sm:$0xf]
  %v99 = vld [vmem:[%s2] sm:$0x1]
  %v101 = vlaneseq
  %v102 = vshrl.u32 %v101, 7
  %v103 = vsub.s32 0, %v102
  %v104 = vrot.slane %v99, %v103
  %v108 = vunpack.c.l.b16 %v33
  %v109 = vunpack.c.h.b16 %v33
  %v110 = vunpack.c.l.b16 %v34
  %v111 = vunpack.c.h.b16 %v34
  %v112 = vpack.c.b16 %v108, %v108
  %v113 = vpack.c.b16 %v109, %v109
  %v114 = vpack.c.b16 %v110, %v110
  %v115 = vpack.c.b16 %v111, %v111
  %v184 = vunpack.c.l.b16 %v35
  %v185 = vunpack.c.l.b16 %v36
  %v186 = vunpack.c.l.b16 %v37
  %v187 = vunpack.c.l.b16 %v38
  %v188 = vunpack.c.l.b16 %v39
  %v189 = vunpack.c.l.b16 %v40
  %v190 = vunpack.c.l.b16 %v41
  %v191 = vunpack.c.l.b16 %v42
  %v192 = vunpack.c.l.b16 %v43
  %v193 = vunpack.c.l.b16 %v44
  %v194 = vunpack.c.l.b16 %v45
  %v195 = vunpack.c.l.b16 %v46
  %v196 = vunpack.c.l.b16 %v47
  %v197 = vunpack.c.l.b16 %v48
  %v198 = vunpack.c.l.b16 %v49
  %v199 = vunpack.c.l.b16 %v50
  %v200 = vunpack.c.l.b16 %v51
  %v201 = vunpack.c.l.b16 %v52
  %v202 = vunpack.c.l.b16 %v53
  %v203 = vunpack.c.l.b16 %v54
  %v204 = vunpack.c.l.b16 %v55
  %v205 = vunpack.c.l.b16 %v56
  %v206 = vunpack.c.l.b16 %v57
  %v207 = vunpack.c.l.b16 %v58
  %v208 = vunpack.c.l.b16 %v59
  %v209 = vunpack.c.l.b16 %v60
  %v210 = vunpack.c.l.b16 %v61
  %v211 = vunpack.c.l.b16 %v62
  %v212 = vunpack.c.l.b16 %v63
  %v213 = vunpack.c.l.b16 %v64
  %v214 = vunpack.c.l.b16 %v65
  %v215 = vunpack.c.l.b16 %v66
  %v216 = vunpack.c.l.b16 %v67
  %v217 = vunpack.c.l.b16 %v68
  %v218 = vunpack.c.l.b16 %v69
  %v219 = vunpack.c.l.b16 %v70
  %v220 = vunpack.c.l.b16 %v71
  %v221 = vunpack.c.l.b16 %v72
  %v222 = vunpack.c.l.b16 %v73
  %v223 = vunpack.c.l.b16 %v74
  %v224 = vunpack.c.l.b16 %v75
  %v225 = vunpack.c.l.b16 %v76
  %v226 = vunpack.c.l.b16 %v77
  %v227 = vunpack.c.l.b16 %v78
  %v228 = vunpack.c.l.b16 %v79
  %v229 = vunpack.c.l.b16 %v80
  %v230 = vunpack.c.l.b16 %v81
  %v231 = vunpack.c.l.b16 %v82
  %v232 = vunpack.c.l.b16 %v83
  %v233 = vunpack.c.l.b16 %v84
  %v234 = vunpack.c.l.b16 %v85
  %v235 = vunpack.c.l.b16 %v86
  %v236 = vunpack.c.l.b16 %v87
  %v237 = vunpack.c.l.b16 %v88
  %v238 = vunpack.c.l.b16 %v89
  %v239 = vunpack.c.l.b16 %v90
  %v240 = vunpack.c.l.b16 %v91
  %v241 = vunpack.c.l.b16 %v92
  %v242 = vunpack.c.l.b16 %v93
  %v243 = vunpack.c.l.b16 %v94
  %v244 = vunpack.c.l.b16 %v95
  %v245 = vunpack.c.l.b16 %v96
  %v246 = vunpack.c.l.b16 %v97
  %v247 = vunpack.c.l.b16 %v98
  %v248 = vpack.c.b16 %v185, %v184
  %v249 = vpack.c.b16 %v187, %v186
  %v250 = vpack.c.b16 %v189, %v188
  %v251 = vpack.c.b16 %v191, %v190
  %v252 = vpack.c.b16 %v193, %v192
  %v253 = vpack.c.b16 %v195, %v194
  %v254 = vpack.c.b16 %v197, %v196
  %v255 = vpack.c.b16 %v199, %v198
  %v256 = vpack.c.b16 %v201, %v200
  %v257 = vpack.c.b16 %v203, %v202
  %v258 = vpack.c.b16 %v205, %v204
  %v259 = vpack.c.b16 %v207, %v206
  %v260 = vpack.c.b16 %v209, %v208
  %v261 = vpack.c.b16 %v211, %v210
  %v262 = vpack.c.b16 %v213, %v212
  %v263 = vpack.c.b16 %v215, %v214
  %v264 = vpack.c.b16 %v217, %v216
  %v265 = vpack.c.b16 %v219, %v218
  %v266 = vpack.c.b16 %v221, %v220
  %v267 = vpack.c.b16 %v223, %v222
  %v268 = vpack.c.b16 %v225, %v224
  %v269 = vpack.c.b16 %v227, %v226
  %v270 = vpack.c.b16 %v229, %v228
  %v271 = vpack.c.b16 %v231, %v230
  %v272 = vpack.c.b16 %v233, %v232
  %v273 = vpack.c.b16 %v235, %v234
  %v274 = vpack.c.b16 %v237, %v236
  %v275 = vpack.c.b16 %v239, %v238
  %v276 = vpack.c.b16 %v241, %v240
  %v277 = vpack.c.b16 %v243, %v242
  %v278 = vpack.c.b16 %v245, %v244
  %v279 = vpack.c.b16 %v247, %v246
  %312 = vmatprep.subr.bf16.mxu0 0
  %313 = vmatpush1.bf16.msra.mxu0 %v255
  %314 = vmatprep.subr.bf16.mxu0 0
  %315 = vmatpush1.bf16.msra.mxu0 %v254
  %316 = vmatprep.subr.bf16.mxu0 0
  %317 = vmatpush1.bf16.msra.mxu0 %v253
  %318 = vmatprep.subr.bf16.mxu0 0
  %319 = vmatpush1.bf16.msra.mxu0 %v252
  %320 = vmatprep.subr.bf16.mxu0 0
  %321 = vmatpush1.bf16.msra.mxu0 %v251
  %322 = vmatprep.subr.bf16.mxu0 0
  %323 = vmatpush1.bf16.msra.mxu0 %v250
  %324 = vmatprep.subr.bf16.mxu0 0
  %325 = vmatpush1.bf16.msra.mxu0 %v249
  %326 = vmatprep.subr.bf16.mxu0 0
  %327 = vmatpush1.bf16.msra.mxu0 %v248
  %328 = vmatprep.subr.bf16.mxu0 0
  %329 = vmatpush2.bf16.msra.mxu0 %v263
  %330 = vmatprep.subr.bf16.mxu0 0
  %331 = vmatpush2.bf16.msra.mxu0 %v262
  %332 = vmatprep.subr.bf16.mxu0 0
  %333 = vmatpush2.bf16.msra.mxu0 %v261
  %334 = vmatprep.subr.bf16.mxu0 0
  %335 = vmatpush2.bf16.msra.mxu0 %v260
  %336 = vmatprep.subr.bf16.mxu0 0
  %337 = vmatpush2.bf16.msra.mxu0 %v259
  %338 = vmatprep.subr.bf16.mxu0 0
  %339 = vmatpush2.bf16.msra.mxu0 %v258
  %340 = vmatprep.subr.bf16.mxu0 0
  %341 = vmatpush2.bf16.msra.mxu0 %v257
  %342 = vmatprep.subr.bf16.mxu0 0
  %343 = vmatpush2.bf16.msra.mxu0 %v256
  %344 = vmatprep.mubr.bf16.mxu0 %v113
  %345 = vmatmul.mubr.bf16.gmra.mxu0 %v112
  %v346 = vpop.f32.mrf.mxu0
  %v347 = vadd.f32 %v104, %v346
  %v348 = vpop.f32.mrf.mxu0
  %v349 = vpop.f32.mrf.mxu0
  %v350 = vpop.f32.mrf.mxu0
  %351 = vdwg.mxu0
  %352 = vmatprep.subr.bf16.mxu0 0
  %353 = vmatpush1.bf16.msra.mxu0 %v271
  %354 = vmatprep.subr.bf16.mxu0 0
  %355 = vmatpush1.bf16.msra.mxu0 %v270
  %356 = vmatprep.subr.bf16.mxu0 0
  %357 = vmatpush1.bf16.msra.mxu0 %v269
  %358 = vmatprep.subr.bf16.mxu0 0
  %359 = vmatpush1.bf16.msra.mxu0 %v268
  %360 = vmatprep.subr.bf16.mxu0 0
  %361 = vmatpush1.bf16.msra.mxu0 %v267
  %362 = vmatprep.subr.bf16.mxu0 0
  %363 = vmatpush1.bf16.msra.mxu0 %v266
  %364 = vmatprep.subr.bf16.mxu0 0
  %365 = vmatpush1.bf16.msra.mxu0 %v265
  %366 = vmatprep.subr.bf16.mxu0 0
  %367 = vmatpush1.bf16.msra.mxu0 %v264
  %368 = vmatprep.subr.bf16.mxu0 0
  %369 = vmatpush2.bf16.msra.mxu0 %v279
  %370 = vmatprep.subr.bf16.mxu0 0
  %371 = vmatpush2.bf16.msra.mxu0 %v278
  %372 = vmatprep.subr.bf16.mxu0 0
  %373 = vmatpush2.bf16.msra.mxu0 %v277
  %374 = vmatprep.subr.bf16.mxu0 0
  %375 = vmatpush2.bf16.msra.mxu0 %v276
  %376 = vmatprep.subr.bf16.mxu0 0
  %377 = vmatpush2.bf16.msra.mxu0 %v275
  %378 = vmatprep.subr.bf16.mxu0 0
  %379 = vmatpush2.bf16.msra.mxu0 %v274
  %380 = vmatprep.subr.bf16.mxu0 0
  %381 = vmatpush2.bf16.msra.mxu0 %v273
  %382 = vmatprep.subr.bf16.mxu0 0
  %383 = vmatpush2.bf16.msra.mxu0 %v272
  %384 = vmatprep.mubr.bf16.mxu0 %v115
  %385 = vmatmul.mubr.bf16.gmra.mxu0 %v114
  %v386 = vpop.f32.mrf.mxu0
  %v387 = vadd.f32 %v347, %v386
  %v388 = vpop.f32.mrf.mxu0
  %v389 = vpop.f32.mrf.mxu0
  %v390 = vpop.f32.mrf.mxu0
  %391 = vdwg.mxu0
  %v392 = vmax.f32 %v387, 0.0
  %v393 = vpack.c.bf16 %v392, %v392
  %v394 = vld [vmem:[%s3] sm:$0xf]
  %v395 = vld [vmem:[%s3 + $0x4] sm:$0xf]
  %v396 = vld [vmem:[%s3 + $0x8] sm:$0xf]
  %v397 = vld [vmem:[%s3 + $0xc] sm:$0xf]
  %v398 = vld [vmem:[%s3 + $0x10] sm:$0xf]
  %v399 = vld [vmem:[%s3 + $0x14] sm:$0xf]
  %v400 = vld [vmem:[%s3 + $0x18] sm:$0xf]
  %v401 = vld [vmem:[%s3 + $0x1c] sm:$0xf]
  %v402 = vld [vmem:[%s0 + $0x10] sm:$0xff]
  %v403 = vld [vmem:[%s0 + $0x18] sm:$0xff]
  %v406 = vunpack.c.l.b16 %v402
  %v407 = vunpack.c.h.b16 %v402
  %v408 = vunpack.c.l.b16 %v403
  %v409 = vunpack.c.h.b16 %v403
  %v410 = vpack.c.b16 %v406, %v406
  %v411 = vpack.c.b16 %v407, %v407
  %v412 = vpack.c.b16 %v408, %v408
  %v413 = vpack.c.b16 %v409, %v409
  %418 = vmatprep.subr.bf16.mxu0 0
  %419 = vmatpush1.bf16.msra.mxu0 %v255
  %420 = vmatprep.subr.bf16.mxu0 0
  %421 = vmatpush1.bf16.msra.mxu0 %v254
  %422 = vmatprep.subr.bf16.mxu0 0
  %423 = vmatpush1.bf16.msra.mxu0 %v253
  %424 = vmatprep.subr.bf16.mxu0 0
  %425 = vmatpush1.bf16.msra.mxu0 %v252
  %426 = vmatprep.subr.bf16.mxu0 0
  %427 = vmatpush1.bf16.msra.mxu0 %v251
  %428 = vmatprep.subr.bf16.mxu0 0
  %429 = vmatpush1.bf16.msra.mxu0 %v250
  %430 = vmatprep.subr.bf16.mxu0 0
  %431 = vmatpush1.bf16.msra.mxu0 %v249
  %432 = vmatprep.subr.bf16.mxu0 0
  %433 = vmatpush1.bf16.msra.mxu0 %v248
  %434 = vmatprep.subr.bf16.mxu0 0
  %435 = vmatpush2.bf16.msra.mxu0 %v263
  %436 = vmatprep.subr.bf16.mxu0 0
  %437 = vmatpush2.bf16.msra.mxu0 %v262
  %438 = vmatprep.subr.bf16.mxu0 0
  %439 = vmatpush2.bf16.msra.mxu0 %v261
  %440 = vmatprep.subr.bf16.mxu0 0
  %441 = vmatpush2.bf16.msra.mxu0 %v260
  %442 = vmatprep.subr.bf16.mxu0 0
  %443 = vmatpush2.bf16.msra.mxu0 %v259
  %444 = vmatprep.subr.bf16.mxu0 0
  %445 = vmatpush2.bf16.msra.mxu0 %v258
  %446 = vmatprep.subr.bf16.mxu0 0
  %447 = vmatpush2.bf16.msra.mxu0 %v257
  %448 = vmatprep.subr.bf16.mxu0 0
  %449 = vmatpush2.bf16.msra.mxu0 %v256
  %450 = vmatprep.mubr.bf16.mxu0 %v411
  %451 = vmatmul.mubr.bf16.gmra.mxu0 %v410
  %v452 = vpop.f32.mrf.mxu0
  %v453 = vadd.f32 %v104, %v452
  %v454 = vpop.f32.mrf.mxu0
  %v455 = vpop.f32.mrf.mxu0
  %v456 = vpop.f32.mrf.mxu0
  %457 = vdwg.mxu0
  %458 = vmatprep.subr.bf16.mxu0 0
  %459 = vmatpush1.bf16.msra.mxu0 %v271
  %460 = vmatprep.subr.bf16.mxu0 0
  %461 = vmatpush1.bf16.msra.mxu0 %v270
  %462 = vmatprep.subr.bf16.mxu0 0
  %463 = vmatpush1.bf16.msra.mxu0 %v269
  %464 = vmatprep.subr.bf16.mxu0 0
  %465 = vmatpush1.bf16.msra.mxu0 %v268
  %466 = vmatprep.subr.bf16.mxu0 0
  %467 = vmatpush1.bf16.msra.mxu0 %v267
  %468 = vmatprep.subr.bf16.mxu0 0
  %469 = vmatpush1.bf16.msra.mxu0 %v266
  %470 = vmatprep.subr.bf16.mxu0 0
  %471 = vmatpush1.bf16.msra.mxu0 %v265
  %472 = vmatprep.subr.bf16.mxu0 0
  %473 = vmatpush1.bf16.msra.mxu0 %v264
  %474 = vmatprep.subr.bf16.mxu0 0
  %475 = vmatpush2.bf16.msra.mxu0 %v279
  %476 = vmatprep.subr.bf16.mxu0 0
  %477 = vmatpush2.bf16.msra.mxu0 %v278
  %478 = vmatprep.subr.bf16.mxu0 0
  %479 = vmatpush2.bf16.msra.mxu0 %v277
  %480 = vmatprep.subr.bf16.mxu0 0
  %481 = vmatpush2.bf16.msra.mxu0 %v276
  %482 = vmatprep.subr.bf16.mxu0 0
  %483 = vmatpush2.bf16.msra.mxu0 %v275
  %484 = vmatprep.subr.bf16.mxu0 0
  %485 = vmatpush2.bf16.msra.mxu0 %v274
  %486 = vmatprep.subr.bf16.mxu0 0
  %487 = vmatpush2.bf16.msra.mxu0 %v273
  %488 = vmatprep.subr.bf16.mxu0 0
  %489 = vmatpush2.bf16.msra.mxu0 %v272
  %490 = vmatprep.mubr.bf16.mxu0 %v413
  %491 = vmatmul.mubr.bf16.gmra.mxu0 %v412
  %v492 = vpop.f32.mrf.mxu0
  %v493 = vadd.f32 %v453, %v492
  %v494 = vpop.f32.mrf.mxu0
  %v495 = vpop.f32.mrf.mxu0
  %v496 = vpop.f32.mrf.mxu0
  %497 = vdwg.mxu0
  %v498 = vmax.f32 %v493, 0.0
  %v499 = vpack.c.bf16 %v498, %v498
  %s500 = scalar_lea.vmem %s3, 32
  %v501 = vld [vmem:[%s500] sm:$0xf]
  %v502 = vld [vmem:[%s500 + $0x4] sm:$0xf]
  %v503 = vld [vmem:[%s500 + $0x8] sm:$0xf]
  %v504 = vld [vmem:[%s500 + $0xc] sm:$0xf]
  %v505 = vld [vmem:[%s500 + $0x10] sm:$0xf]
  %v506 = vld [vmem:[%s500 + $0x14] sm:$0xf]
  %v507 = vld [vmem:[%s500 + $0x18] sm:$0xf]
  %v508 = vld [vmem:[%s500 + $0x1c] sm:$0xf]
  %v517 = vunpack.c.l.b16 %v501
  %v518 = vunpack.c.l.b16 %v502
  %v519 = vunpack.c.l.b16 %v503
  %v520 = vunpack.c.l.b16 %v504
  %v521 = vunpack.c.l.b16 %v505
  %v522 = vunpack.c.l.b16 %v506
  %v523 = vunpack.c.l.b16 %v507
  %v524 = vunpack.c.l.b16 %v508
  %v525 = vpack.c.b16 %v518, %v517
  %v526 = vpack.c.b16 %v520, %v519
  %v527 = vpack.c.b16 %v522, %v521
  %v528 = vpack.c.b16 %v524, %v523
  %vm533 = vcmask 523264
  %v535 = vsel %vm533, %v499, 0
  %537 = vmatprep.subr.bf16.mxu0 0
  %538 = vmatpush1.bf16.msra.mxu0 0
  %539 = vmatprep.subr.bf16.mxu0 0
  %540 = vmatpush1.bf16.msra.mxu0 0
  %541 = vmatprep.subr.bf16.mxu0 0
  %542 = vmatpush1.bf16.msra.mxu0 0
  %543 = vmatprep.subr.bf16.mxu0 0
  %544 = vmatpush1.bf16.msra.mxu0 0
  %545 = vmatprep.subr.bf16.mxu0 0
  %546 = vmatpush1.bf16.msra.mxu0 %v528
  %547 = vmatprep.subr.bf16.mxu0 0
  %548 = vmatpush1.bf16.msra.mxu0 %v527
  %549 = vmatprep.subr.bf16.mxu0 0
  %550 = vmatpush1.bf16.msra.mxu0 %v526
  %551 = vmatprep.subr.bf16.mxu0 0
  %552 = vmatpush1.bf16.msra.mxu0 %v525
  %553 = vmatprep.subr.bf16.mxu0 0
  %554 = vmatpush2.bf16.msra.mxu0 0
  %555 = vmatprep.subr.bf16.mxu0 0
  %556 = vmatpush2.bf16.msra.mxu0 0
  %557 = vmatprep.subr.bf16.mxu0 0
  %558 = vmatpush2.bf16.msra.mxu0 0
  %559 = vmatprep.subr.bf16.mxu0 0
  %560 = vmatpush2.bf16.msra.mxu0 0
  %561 = vmatprep.subr.bf16.mxu0 0
  %562 = vmatpush2.bf16.msra.mxu0 0
  %563 = vmatprep.subr.bf16.mxu0 0
  %564 = vmatpush2.bf16.msra.mxu0 0
  %565 = vmatprep.subr.bf16.mxu0 0
  %566 = vmatpush2.bf16.msra.mxu0 0
  %567 = vmatprep.subr.bf16.mxu0 0
  %568 = vmatpush2.bf16.msra.mxu0 0
  %569 = vmatprep.mubr.bf16.mxu0 0
  %570 = vmatmul.mubr.bf16.gmra.mxu0 %v535
  %v571 = vpop.f32.mrf.mxu0
  %v572 = vadd.f32 0.0, %v571
  %v573 = vpop.f32.mrf.mxu0
  %v574 = vpop.f32.mrf.mxu0
  %v575 = vpop.f32.mrf.mxu0
  %576 = vdwg.mxu0
  %v585 = vunpack.c.l.b16 %v394
  %v586 = vunpack.c.l.b16 %v395
  %v587 = vunpack.c.l.b16 %v396
  %v588 = vunpack.c.l.b16 %v397
  %v589 = vunpack.c.l.b16 %v398
  %v590 = vunpack.c.l.b16 %v399
  %v591 = vunpack.c.l.b16 %v400
  %v592 = vunpack.c.l.b16 %v401
  %v593 = vpack.c.b16 %v586, %v585
  %v594 = vpack.c.b16 %v588, %v587
  %v595 = vpack.c.b16 %v590, %v589
  %v596 = vpack.c.b16 %v592, %v591
  %v602 = vsel %vm533, %v393, 0
  %604 = vmatprep.subr.bf16.mxu0 0
  %605 = vmatpush1.bf16.msra.mxu0 0
  %606 = vmatprep.subr.bf16.mxu0 0
  %607 = vmatpush1.bf16.msra.mxu0 0
  %608 = vmatprep.subr.bf16.mxu0 0
  %609 = vmatpush1.bf16.msra.mxu0 0
  %610 = vmatprep.subr.bf16.mxu0 0
  %611 = vmatpush1.bf16.msra.mxu0 0
  %612 = vmatprep.subr.bf16.mxu0 0
  %613 = vmatpush1.bf16.msra.mxu0 %v596
  %614 = vmatprep.subr.bf16.mxu0 0
  %615 = vmatpush1.bf16.msra.mxu0 %v595
  %616 = vmatprep.subr.bf16.mxu0 0
  %617 = vmatpush1.bf16.msra.mxu0 %v594
  %618 = vmatprep.subr.bf16.mxu0 0
  %619 = vmatpush1.bf16.msra.mxu0 %v593
  %620 = vmatprep.subr.bf16.mxu0 0
  %621 = vmatpush2.bf16.msra.mxu0 0
  %622 = vmatprep.subr.bf16.mxu0 0
  %623 = vmatpush2.bf16.msra.mxu0 0
  %624 = vmatprep.subr.bf16.mxu0 0
  %625 = vmatpush2.bf16.msra.mxu0 0
  %626 = vmatprep.subr.bf16.mxu0 0
  %627 = vmatpush2.bf16.msra.mxu0 0
  %628 = vmatprep.subr.bf16.mxu0 0
  %629 = vmatpush2.bf16.msra.mxu0 0
  %630 = vmatprep.subr.bf16.mxu0 0
  %631 = vmatpush2.bf16.msra.mxu0 0
  %632 = vmatprep.subr.bf16.mxu0 0
  %633 = vmatpush2.bf16.msra.mxu0 0
  %634 = vmatprep.subr.bf16.mxu0 0
  %635 = vmatpush2.bf16.msra.mxu0 0
  %636 = vmatprep.mubr.bf16.mxu0 0
  %637 = vmatmul.mubr.bf16.gmra.mxu0 %v602
  %v638 = vpop.f32.mrf.mxu0
  %v639 = vadd.f32 %v572, %v638
  %v640 = vpop.f32.mrf.mxu0
  %v641 = vpop.f32.mrf.mxu0
  %v642 = vpop.f32.mrf.mxu0
  %643 = vdwg.mxu0
  %v644 = vld [vmem:[%s0 + $0x20] sm:$0xff]
  %v645 = vld [vmem:[%s0 + $0x28] sm:$0xff]
  %v648 = vunpack.c.l.b16 %v644
  %v649 = vunpack.c.h.b16 %v644
  %v650 = vunpack.c.l.b16 %v645
  %v651 = vunpack.c.h.b16 %v645
  %v652 = vpack.c.b16 %v648, %v648
  %v653 = vpack.c.b16 %v649, %v649
  %v654 = vpack.c.b16 %v650, %v650
  %v655 = vpack.c.b16 %v651, %v651
  %660 = vmatprep.subr.bf16.mxu0 0
  %661 = vmatpush1.bf16.msra.mxu0 %v255
  %662 = vmatprep.subr.bf16.mxu0 0
  %663 = vmatpush1.bf16.msra.mxu0 %v254
  %664 = vmatprep.subr.bf16.mxu0 0
  %665 = vmatpush1.bf16.msra.mxu0 %v253
  %666 = vmatprep.subr.bf16.mxu0 0
  %667 = vmatpush1.bf16.msra.mxu0 %v252
  %668 = vmatprep.subr.bf16.mxu0 0
  %669 = vmatpush1.bf16.msra.mxu0 %v251
  %670 = vmatprep.subr.bf16.mxu0 0
  %671 = vmatpush1.bf16.msra.mxu0 %v250
  %672 = vmatprep.subr.bf16.mxu0 0
  %673 = vmatpush1.bf16.msra.mxu0 %v249
  %674 = vmatprep.subr.bf16.mxu0 0
  %675 = vmatpush1.bf16.msra.mxu0 %v248
  %676 = vmatprep.subr.bf16.mxu0 0
  %677 = vmatpush2.bf16.msra.mxu0 %v263
  %678 = vmatprep.subr.bf16.mxu0 0
  %679 = vmatpush2.bf16.msra.mxu0 %v262
  %680 = vmatprep.subr.bf16.mxu0 0
  %681 = vmatpush2.bf16.msra.mxu0 %v261
  %682 = vmatprep.subr.bf16.mxu0 0
  %683 = vmatpush2.bf16.msra.mxu0 %v260
  %684 = vmatprep.subr.bf16.mxu0 0
  %685 = vmatpush2.bf16.msra.mxu0 %v259
  %686 = vmatprep.subr.bf16.mxu0 0
  %687 = vmatpush2.bf16.msra.mxu0 %v258
  %688 = vmatprep.subr.bf16.mxu0 0
  %689 = vmatpush2.bf16.msra.mxu0 %v257
  %690 = vmatprep.subr.bf16.mxu0 0
  %691 = vmatpush2.bf16.msra.mxu0 %v256
  %692 = vmatprep.mubr.bf16.mxu0 %v653
  %693 = vmatmul.mubr.bf16.gmra.mxu0 %v652
  %v694 = vpop.f32.mrf.mxu0
  %v695 = vadd.f32 %v104, %v694
  %v696 = vpop.f32.mrf.mxu0
  %v697 = vpop.f32.mrf.mxu0
  %v698 = vpop.f32.mrf.mxu0
  %699 = vdwg.mxu0
  %700 = vmatprep.subr.bf16.mxu0 0
  %701 = vmatpush1.bf16.msra.mxu0 %v271
  %702 = vmatprep.subr.bf16.mxu0 0
  %703 = vmatpush1.bf16.msra.mxu0 %v270
  %704 = vmatprep.subr.bf16.mxu0 0
  %705 = vmatpush1.bf16.msra.mxu0 %v269
  %706 = vmatprep.subr.bf16.mxu0 0
  %707 = vmatpush1.bf16.msra.mxu0 %v268
  %708 = vmatprep.subr.bf16.mxu0 0
  %709 = vmatpush1.bf16.msra.mxu0 %v267
  %710 = vmatprep.subr.bf16.mxu0 0
  %711 = vmatpush1.bf16.msra.mxu0 %v266
  %712 = vmatprep.subr.bf16.mxu0 0
  %713 = vmatpush1.bf16.msra.mxu0 %v265
  %714 = vmatprep.subr.bf16.mxu0 0
  %715 = vmatpush1.bf16.msra.mxu0 %v264
  %716 = vmatprep.subr.bf16.mxu0 0
  %717 = vmatpush2.bf16.msra.mxu0 %v279
  %718 = vmatprep.subr.bf16.mxu0 0
  %719 = vmatpush2.bf16.msra.mxu0 %v278
  %720 = vmatprep.subr.bf16.mxu0 0
  %721 = vmatpush2.bf16.msra.mxu0 %v277
  %722 = vmatprep.subr.bf16.mxu0 0
  %723 = vmatpush2.bf16.msra.mxu0 %v276
  %724 = vmatprep.subr.bf16.mxu0 0
  %725 = vmatpush2.bf16.msra.mxu0 %v275
  %726 = vmatprep.subr.bf16.mxu0 0
  %727 = vmatpush2.bf16.msra.mxu0 %v274
  %728 = vmatprep.subr.bf16.mxu0 0
  %729 = vmatpush2.bf16.msra.mxu0 %v273
  %730 = vmatprep.subr.bf16.mxu0 0
  %731 = vmatpush2.bf16.msra.mxu0 %v272
  %732 = vmatprep.mubr.bf16.mxu0 %v655
  %733 = vmatmul.mubr.bf16.gmra.mxu0 %v654
  %v734 = vpop.f32.mrf.mxu0
  %v735 = vadd.f32 %v695, %v734
  %v736 = vpop.f32.mrf.mxu0
  %v737 = vpop.f32.mrf.mxu0
  %v738 = vpop.f32.mrf.mxu0
  %739 = vdwg.mxu0
  %v740 = vmax.f32 %v735, 0.0
  %v741 = vpack.c.bf16 %v740, %v740
  %s742 = scalar_lea.vmem %s3, 64
  %v743 = vld [vmem:[%s742] sm:$0xf]
  %v744 = vld [vmem:[%s742 + $0x4] sm:$0xf]
  %v745 = vld [vmem:[%s742 + $0x8] sm:$0xf]
  %v746 = vld [vmem:[%s742 + $0xc] sm:$0xf]
  %v747 = vld [vmem:[%s742 + $0x10] sm:$0xf]
  %v748 = vld [vmem:[%s742 + $0x14] sm:$0xf]
  %v749 = vld [vmem:[%s742 + $0x18] sm:$0xf]
  %v750 = vld [vmem:[%s742 + $0x1c] sm:$0xf]
  %v759 = vunpack.c.l.b16 %v743
  %v760 = vunpack.c.l.b16 %v744
  %v761 = vunpack.c.l.b16 %v745
  %v762 = vunpack.c.l.b16 %v746
  %v763 = vunpack.c.l.b16 %v747
  %v764 = vunpack.c.l.b16 %v748
  %v765 = vunpack.c.l.b16 %v749
  %v766 = vunpack.c.l.b16 %v750
  %v767 = vpack.c.b16 %v760, %v759
  %v768 = vpack.c.b16 %v762, %v761
  %v769 = vpack.c.b16 %v764, %v763
  %v770 = vpack.c.b16 %v766, %v765
  %v776 = vsel %vm533, %v741, 0
  %778 = vmatprep.subr.bf16.mxu0 0
  %779 = vmatpush1.bf16.msra.mxu0 0
  %780 = vmatprep.subr.bf16.mxu0 0
  %781 = vmatpush1.bf16.msra.mxu0 0
  %782 = vmatprep.subr.bf16.mxu0 0
  %783 = vmatpush1.bf16.msra.mxu0 0
  %784 = vmatprep.subr.bf16.mxu0 0
  %785 = vmatpush1.bf16.msra.mxu0 0
  %786 = vmatprep.subr.bf16.mxu0 0
  %787 = vmatpush1.bf16.msra.mxu0 %v770
  %788 = vmatprep.subr.bf16.mxu0 0
  %789 = vmatpush1.bf16.msra.mxu0 %v769
  %790 = vmatprep.subr.bf16.mxu0 0
  %791 = vmatpush1.bf16.msra.mxu0 %v768
  %792 = vmatprep.subr.bf16.mxu0 0
  %793 = vmatpush1.bf16.msra.mxu0 %v767
  %794 = vmatprep.subr.bf16.mxu0 0
  %795 = vmatpush2.bf16.msra.mxu0 0
  %796 = vmatprep.subr.bf16.mxu0 0
  %797 = vmatpush2.bf16.msra.mxu0 0
  %798 = vmatprep.subr.bf16.mxu0 0
  %799 = vmatpush2.bf16.msra.mxu0 0
  %800 = vmatprep.subr.bf16.mxu0 0
  %801 = vmatpush2.bf16.msra.mxu0 0
  %802 = vmatprep.subr.bf16.mxu0 0
  %803 = vmatpush2.bf16.msra.mxu0 0
  %804 = vmatprep.subr.bf16.mxu0 0
  %805 = vmatpush2.bf16.msra.mxu0 0
  %806 = vmatprep.subr.bf16.mxu0 0
  %807 = vmatpush2.bf16.msra.mxu0 0
  %808 = vmatprep.subr.bf16.mxu0 0
  %809 = vmatpush2.bf16.msra.mxu0 0
  %810 = vmatprep.mubr.bf16.mxu0 0
  %811 = vmatmul.mubr.bf16.gmra.mxu0 %v776
  %v812 = vpop.f32.mrf.mxu0
  %v813 = vadd.f32 0.0, %v812
  %v814 = vpop.f32.mrf.mxu0
  %v815 = vpop.f32.mrf.mxu0
  %v816 = vpop.f32.mrf.mxu0
  %817 = vdwg.mxu0
  %v818 = vadd.f32 %v639, %v813
  %v819 = vld [vmem:[%s0 + $0x30] sm:$0xff]
  %v820 = vld [vmem:[%s0 + $0x38] sm:$0xff]
  %v823 = vunpack.c.l.b16 %v819
  %v824 = vunpack.c.h.b16 %v819
  %v825 = vunpack.c.l.b16 %v820
  %v826 = vunpack.c.h.b16 %v820
  %v827 = vpack.c.b16 %v823, %v823
  %v828 = vpack.c.b16 %v824, %v824
  %v829 = vpack.c.b16 %v825, %v825
  %v830 = vpack.c.b16 %v826, %v826
  %835 = vmatprep.subr.bf16.mxu0 0
  %836 = vmatpush1.bf16.msra.mxu0 %v255
  %837 = vmatprep.subr.bf16.mxu0 0
  %838 = vmatpush1.bf16.msra.mxu0 %v254
  %839 = vmatprep.subr.bf16.mxu0 0
  %840 = vmatpush1.bf16.msra.mxu0 %v253
  %841 = vmatprep.subr.bf16.mxu0 0
  %842 = vmatpush1.bf16.msra.mxu0 %v252
  %843 = vmatprep.subr.bf16.mxu0 0
  %844 = vmatpush1.bf16.msra.mxu0 %v251
  %845 = vmatprep.subr.bf16.mxu0 0
  %846 = vmatpush1.bf16.msra.mxu0 %v250
  %847 = vmatprep.subr.bf16.mxu0 0
  %848 = vmatpush1.bf16.msra.mxu0 %v249
  %849 = vmatprep.subr.bf16.mxu0 0
  %850 = vmatpush1.bf16.msra.mxu0 %v248
  %851 = vmatprep.subr.bf16.mxu0 0
  %852 = vmatpush2.bf16.msra.mxu0 %v263
  %853 = vmatprep.subr.bf16.mxu0 0
  %854 = vmatpush2.bf16.msra.mxu0 %v262
  %855 = vmatprep.subr.bf16.mxu0 0
  %856 = vmatpush2.bf16.msra.mxu0 %v261
  %857 = vmatprep.subr.bf16.mxu0 0
  %858 = vmatpush2.bf16.msra.mxu0 %v260
  %859 = vmatprep.subr.bf16.mxu0 0
  %860 = vmatpush2.bf16.msra.mxu0 %v259
  %861 = vmatprep.subr.bf16.mxu0 0
  %862 = vmatpush2.bf16.msra.mxu0 %v258
  %863 = vmatprep.subr.bf16.mxu0 0
  %864 = vmatpush2.bf16.msra.mxu0 %v257
  %865 = vmatprep.subr.bf16.mxu0 0
  %866 = vmatpush2.bf16.msra.mxu0 %v256
  %867 = vmatprep.mubr.bf16.mxu0 %v828
  %868 = vmatmul.mubr.bf16.gmra.mxu0 %v827
  %v869 = vpop.f32.mrf.mxu0
  %v870 = vadd.f32 %v104, %v869
  %v871 = vpop.f32.mrf.mxu0
  %v872 = vpop.f32.mrf.mxu0
  %v873 = vpop.f32.mrf.mxu0
  %874 = vdwg.mxu0
  %875 = vmatprep.subr.bf16.mxu0 0
  %876 = vmatpush1.bf16.msra.mxu0 %v271
  %877 = vmatprep.subr.bf16.mxu0 0
  %878 = vmatpush1.bf16.msra.mxu0 %v270
  %879 = vmatprep.subr.bf16.mxu0 0
  %880 = vmatpush1.bf16.msra.mxu0 %v269
  %881 = vmatprep.subr.bf16.mxu0 0
  %882 = vmatpush1.bf16.msra.mxu0 %v268
  %883 = vmatprep.subr.bf16.mxu0 0
  %884 = vmatpush1.bf16.msra.mxu0 %v267
  %885 = vmatprep.subr.bf16.mxu0 0
  %886 = vmatpush1.bf16.msra.mxu0 %v266
  %887 = vmatprep.subr.bf16.mxu0 0
  %888 = vmatpush1.bf16.msra.mxu0 %v265
  %889 = vmatprep.subr.bf16.mxu0 0
  %890 = vmatpush1.bf16.msra.mxu0 %v264
  %891 = vmatprep.subr.bf16.mxu0 0
  %892 = vmatpush2.bf16.msra.mxu0 %v279
  %893 = vmatprep.subr.bf16.mxu0 0
  %894 = vmatpush2.bf16.msra.mxu0 %v278
  %895 = vmatprep.subr.bf16.mxu0 0
  %896 = vmatpush2.bf16.msra.mxu0 %v277
  %897 = vmatprep.subr.bf16.mxu0 0
  %898 = vmatpush2.bf16.msra.mxu0 %v276
  %899 = vmatprep.subr.bf16.mxu0 0
  %900 = vmatpush2.bf16.msra.mxu0 %v275
  %901 = vmatprep.subr.bf16.mxu0 0
  %902 = vmatpush2.bf16.msra.mxu0 %v274
  %903 = vmatprep.subr.bf16.mxu0 0
  %904 = vmatpush2.bf16.msra.mxu0 %v273
  %905 = vmatprep.subr.bf16.mxu0 0
  %906 = vmatpush2.bf16.msra.mxu0 %v272
  %907 = vmatprep.mubr.bf16.mxu0 %v830
  %908 = vmatmul.mubr.bf16.gmra.mxu0 %v829
  %v909 = vpop.f32.mrf.mxu0
  %v910 = vadd.f32 %v870, %v909
  %v911 = vpop.f32.mrf.mxu0
  %v912 = vpop.f32.mrf.mxu0
  %v913 = vpop.f32.mrf.mxu0
  %914 = vdwg.mxu0
  %v915 = vmax.f32 %v910, 0.0
  %v916 = vpack.c.bf16 %v915, %v915
  %s917 = scalar_lea.vmem %s3, 96
  %v918 = vld [vmem:[%s917] sm:$0xf]
  %v919 = vld [vmem:[%s917 + $0x4] sm:$0xf]
  %v920 = vld [vmem:[%s917 + $0x8] sm:$0xf]
  %v921 = vld [vmem:[%s917 + $0xc] sm:$0xf]
  %v922 = vld [vmem:[%s917 + $0x10] sm:$0xf]
  %v923 = vld [vmem:[%s917 + $0x14] sm:$0xf]
  %v924 = vld [vmem:[%s917 + $0x18] sm:$0xf]
  %v925 = vld [vmem:[%s917 + $0x1c] sm:$0xf]
  %v934 = vunpack.c.l.b16 %v918
  %v935 = vunpack.c.l.b16 %v919
  %v936 = vunpack.c.l.b16 %v920
  %v937 = vunpack.c.l.b16 %v921
  %v938 = vunpack.c.l.b16 %v922
  %v939 = vunpack.c.l.b16 %v923
  %v940 = vunpack.c.l.b16 %v924
  %v941 = vunpack.c.l.b16 %v925
  %v942 = vpack.c.b16 %v935, %v934
  %v943 = vpack.c.b16 %v937, %v936
  %v944 = vpack.c.b16 %v939, %v938
  %v945 = vpack.c.b16 %v941, %v940
  %v951 = vsel %vm533, %v916, 0
  %953 = vmatprep.subr.bf16.mxu0 0
  %954 = vmatpush1.bf16.msra.mxu0 0
  %955 = vmatprep.subr.bf16.mxu0 0
  %956 = vmatpush1.bf16.msra.mxu0 0
  %957 = vmatprep.subr.bf16.mxu0 0
  %958 = vmatpush1.bf16.msra.mxu0 0
  %959 = vmatprep.subr.bf16.mxu0 0
  %960 = vmatpush1.bf16.msra.mxu0 0
  %961 = vmatprep.subr.bf16.mxu0 0
  %962 = vmatpush1.bf16.msra.mxu0 %v945
  %963 = vmatprep.subr.bf16.mxu0 0
  %964 = vmatpush1.bf16.msra.mxu0 %v944
  %965 = vmatprep.subr.bf16.mxu0 0
  %966 = vmatpush1.bf16.msra.mxu0 %v943
  %967 = vmatprep.subr.bf16.mxu0 0
  %968 = vmatpush1.bf16.msra.mxu0 %v942
  %969 = vmatprep.subr.bf16.mxu0 0
  %970 = vmatpush2.bf16.msra.mxu0 0
  %971 = vmatprep.subr.bf16.mxu0 0
  %972 = vmatpush2.bf16.msra.mxu0 0
  %973 = vmatprep.subr.bf16.mxu0 0
  %974 = vmatpush2.bf16.msra.mxu0 0
  %975 = vmatprep.subr.bf16.mxu0 0
  %976 = vmatpush2.bf16.msra.mxu0 0
  %977 = vmatprep.subr.bf16.mxu0 0
  %978 = vmatpush2.bf16.msra.mxu0 0
  %979 = vmatprep.subr.bf16.mxu0 0
  %980 = vmatpush2.bf16.msra.mxu0 0
  %981 = vmatprep.subr.bf16.mxu0 0
  %982 = vmatpush2.bf16.msra.mxu0 0
  %983 = vmatprep.subr.bf16.mxu0 0
  %984 = vmatpush2.bf16.msra.mxu0 0
  %985 = vmatprep.mubr.bf16.mxu0 0
  %986 = vmatmul.mubr.bf16.gmra.mxu0 %v951
  %v987 = vpop.f32.mrf.mxu0
  %v988 = vadd.f32 0.0, %v987
  %v989 = vpop.f32.mrf.mxu0
  %v990 = vpop.f32.mrf.mxu0
  %v991 = vpop.f32.mrf.mxu0
  %992 = vdwg.mxu0
  %v993 = vadd.f32 %v818, %v988
  %v994 = vld [vmem:[%s0 + $0x40] sm:$0xff]
  %v995 = vld [vmem:[%s0 + $0x48] sm:$0xff]
  %v998 = vunpack.c.l.b16 %v994
  %v999 = vunpack.c.h.b16 %v994
  %v1000 = vunpack.c.l.b16 %v995
  %v1001 = vunpack.c.h.b16 %v995
  %v1002 = vpack.c.b16 %v998, %v998
  %v1003 = vpack.c.b16 %v999, %v999
  %v1004 = vpack.c.b16 %v1000, %v1000
  %v1005 = vpack.c.b16 %v1001, %v1001
  %1010 = vmatprep.subr.bf16.mxu0 0
  %1011 = vmatpush1.bf16.msra.mxu0 %v255
  %1012 = vmatprep.subr.bf16.mxu0 0
  %1013 = vmatpush1.bf16.msra.mxu0 %v254
  %1014 = vmatprep.subr.bf16.mxu0 0
  %1015 = vmatpush1.bf16.msra.mxu0 %v253
  %1016 = vmatprep.subr.bf16.mxu0 0
  %1017 = vmatpush1.bf16.msra.mxu0 %v252
  %1018 = vmatprep.subr.bf16.mxu0 0
  %1019 = vmatpush1.bf16.msra.mxu0 %v251
  %1020 = vmatprep.subr.bf16.mxu0 0
  %1021 = vmatpush1.bf16.msra.mxu0 %v250
  %1022 = vmatprep.subr.bf16.mxu0 0
  %1023 = vmatpush1.bf16.msra.mxu0 %v249
  %1024 = vmatprep.subr.bf16.mxu0 0
  %1025 = vmatpush1.bf16.msra.mxu0 %v248
  %1026 = vmatprep.subr.bf16.mxu0 0
  %1027 = vmatpush2.bf16.msra.mxu0 %v263
  %1028 = vmatprep.subr.bf16.mxu0 0
  %1029 = vmatpush2.bf16.msra.mxu0 %v262
  %1030 = vmatprep.subr.bf16.mxu0 0
  %1031 = vmatpush2.bf16.msra.mxu0 %v261
  %1032 = vmatprep.subr.bf16.mxu0 0
  %1033 = vmatpush2.bf16.msra.mxu0 %v260
  %1034 = vmatprep.subr.bf16.mxu0 0
  %1035 = vmatpush2.bf16.msra.mxu0 %v259
  %1036 = vmatprep.subr.bf16.mxu0 0
  %1037 = vmatpush2.bf16.msra.mxu0 %v258
  %1038 = vmatprep.subr.bf16.mxu0 0
  %1039 = vmatpush2.bf16.msra.mxu0 %v257
  %1040 = vmatprep.subr.bf16.mxu0 0
  %1041 = vmatpush2.bf16.msra.mxu0 %v256
  %1042 = vmatprep.mubr.bf16.mxu0 %v1003
  %1043 = vmatmul.mubr.bf16.gmra.mxu0 %v1002
  %v1044 = vpop.f32.mrf.mxu0
  %v1045 = vadd.f32 %v104, %v1044
  %v1046 = vpop.f32.mrf.mxu0
  %v1047 = vpop.f32.mrf.mxu0
  %v1048 = vpop.f32.mrf.mxu0
  %1049 = vdwg.mxu0
  %1050 = vmatprep.subr.bf16.mxu0 0
  %1051 = vmatpush1.bf16.msra.mxu0 %v271
  %1052 = vmatprep.subr.bf16.mxu0 0
  %1053 = vmatpush1.bf16.msra.mxu0 %v270
  %1054 = vmatprep.subr.bf16.mxu0 0
  %1055 = vmatpush1.bf16.msra.mxu0 %v269
  %1056 = vmatprep.subr.bf16.mxu0 0
  %1057 = vmatpush1.bf16.msra.mxu0 %v268
  %1058 = vmatprep.subr.bf16.mxu0 0
  %1059 = vmatpush1.bf16.msra.mxu0 %v267
  %1060 = vmatprep.subr.bf16.mxu0 0
  %1061 = vmatpush1.bf16.msra.mxu0 %v266
  %1062 = vmatprep.subr.bf16.mxu0 0
  %1063 = vmatpush1.bf16.msra.mxu0 %v265
  %1064 = vmatprep.subr.bf16.mxu0 0
  %1065 = vmatpush1.bf16.msra.mxu0 %v264
  %1066 = vmatprep.subr.bf16.mxu0 0
  %1067 = vmatpush2.bf16.msra.mxu0 %v279
  %1068 = vmatprep.subr.bf16.mxu0 0
  %1069 = vmatpush2.bf16.msra.mxu0 %v278
  %1070 = vmatprep.subr.bf16.mxu0 0
  %1071 = vmatpush2.bf16.msra.mxu0 %v277
  %1072 = vmatprep.subr.bf16.mxu0 0
  %1073 = vmatpush2.bf16.msra.mxu0 %v276
  %1074 = vmatprep.subr.bf16.mxu0 0
  %1075 = vmatpush2.bf16.msra.mxu0 %v275
  %1076 = vmatprep.subr.bf16.mxu0 0
  %1077 = vmatpush2.bf16.msra.mxu0 %v274
  %1078 = vmatprep.subr.bf16.mxu0 0
  %1079 = vmatpush2.bf16.msra.mxu0 %v273
  %1080 = vmatprep.subr.bf16.mxu0 0
  %1081 = vmatpush2.bf16.msra.mxu0 %v272
  %1082 = vmatprep.mubr.bf16.mxu0 %v1005
  %1083 = vmatmul.mubr.bf16.gmra.mxu0 %v1004
  %v1084 = vpop.f32.mrf.mxu0
  %v1085 = vadd.f32 %v1045, %v1084
  %v1086 = vpop.f32.mrf.mxu0
  %v1087 = vpop.f32.mrf.mxu0
  %v1088 = vpop.f32.mrf.mxu0
  %1089 = vdwg.mxu0
  %v1090 = vmax.f32 %v1085, 0.0
  %v1091 = vpack.c.bf16 %v1090, %v1090
  %s1092 = scalar_lea.vmem %s3, 128
  %v1093 = vld [vmem:[%s1092] sm:$0xf]
  %v1094 = vld [vmem:[%s1092 + $0x4] sm:$0xf]
  %v1095 = vld [vmem:[%s1092 + $0x8] sm:$0xf]
  %v1096 = vld [vmem:[%s1092 + $0xc] sm:$0xf]
  %v1097 = vld [vmem:[%s1092 + $0x10] sm:$0xf]
  %v1098 = vld [vmem:[%s1092 + $0x14] sm:$0xf]
  %v1099 = vld [vmem:[%s1092 + $0x18] sm:$0xf]
  %v1100 = vld [vmem:[%s1092 + $0x1c] sm:$0xf]
  %v1109 = vunpack.c.l.b16 %v1093
  %v1110 = vunpack.c.l.b16 %v1094
  %v1111 = vunpack.c.l.b16 %v1095
  %v1112 = vunpack.c.l.b16 %v1096
  %v1113 = vunpack.c.l.b16 %v1097
  %v1114 = vunpack.c.l.b16 %v1098
  %v1115 = vunpack.c.l.b16 %v1099
  %v1116 = vunpack.c.l.b16 %v1100
  %v1117 = vpack.c.b16 %v1110, %v1109
  %v1118 = vpack.c.b16 %v1112, %v1111
  %v1119 = vpack.c.b16 %v1114, %v1113
  %v1120 = vpack.c.b16 %v1116, %v1115
  %v1126 = vsel %vm533, %v1091, 0
  %1128 = vmatprep.subr.bf16.mxu0 0
  %1129 = vmatpush1.bf16.msra.mxu0 0
  %1130 = vmatprep.subr.bf16.mxu0 0
  %1131 = vmatpush1.bf16.msra.mxu0 0
  %1132 = vmatprep.subr.bf16.mxu0 0
  %1133 = vmatpush1.bf16.msra.mxu0 0
  %1134 = vmatprep.subr.bf16.mxu0 0
  %1135 = vmatpush1.bf16.msra.mxu0 0
  %1136 = vmatprep.subr.bf16.mxu0 0
  %1137 = vmatpush1.bf16.msra.mxu0 %v1120
  %1138 = vmatprep.subr.bf16.mxu0 0
  %1139 = vmatpush1.bf16.msra.mxu0 %v1119
  %1140 = vmatprep.subr.bf16.mxu0 0
  %1141 = vmatpush1.bf16.msra.mxu0 %v1118
  %1142 = vmatprep.subr.bf16.mxu0 0
  %1143 = vmatpush1.bf16.msra.mxu0 %v1117
  %1144 = vmatprep.subr.bf16.mxu0 0
  %1145 = vmatpush2.bf16.msra.mxu0 0
  %1146 = vmatprep.subr.bf16.mxu0 0
  %1147 = vmatpush2.bf16.msra.mxu0 0
  %1148 = vmatprep.subr.bf16.mxu0 0
  %1149 = vmatpush2.bf16.msra.mxu0 0
  %1150 = vmatprep.subr.bf16.mxu0 0
  %1151 = vmatpush2.bf16.msra.mxu0 0
  %1152 = vmatprep.subr.bf16.mxu0 0
  %1153 = vmatpush2.bf16.msra.mxu0 0
  %1154 = vmatprep.subr.bf16.mxu0 0
  %1155 = vmatpush2.bf16.msra.mxu0 0
  %1156 = vmatprep.subr.bf16.mxu0 0
  %1157 = vmatpush2.bf16.msra.mxu0 0
  %1158 = vmatprep.subr.bf16.mxu0 0
  %1159 = vmatpush2.bf16.msra.mxu0 0
  %1160 = vmatprep.mubr.bf16.mxu0 0
  %1161 = vmatmul.mubr.bf16.gmra.mxu0 %v1126
  %v1162 = vpop.f32.mrf.mxu0
  %v1163 = vadd.f32 0.0, %v1162
  %v1164 = vpop.f32.mrf.mxu0
  %v1165 = vpop.f32.mrf.mxu0
  %v1166 = vpop.f32.mrf.mxu0
  %1167 = vdwg.mxu0
  %v1168 = vadd.f32 %v993, %v1163
  %v1169 = vld [vmem:[%s0 + $0x50] sm:$0xff]
  %v1170 = vld [vmem:[%s0 + $0x58] sm:$0xff]
  %v1173 = vunpack.c.l.b16 %v1169
  %v1174 = vunpack.c.h.b16 %v1169
  %v1175 = vunpack.c.l.b16 %v1170
  %v1176 = vunpack.c.h.b16 %v1170
  %v1177 = vpack.c.b16 %v1173, %v1173
  %v1178 = vpack.c.b16 %v1174, %v1174
  %v1179 = vpack.c.b16 %v1175, %v1175
  %v1180 = vpack.c.b16 %v1176, %v1176
  %1185 = vmatprep.subr.bf16.mxu0 0
  %1186 = vmatpush1.bf16.msra.mxu0 %v255
  %1187 = vmatprep.subr.bf16.mxu0 0
  %1188 = vmatpush1.bf16.msra.mxu0 %v254
  %1189 = vmatprep.subr.bf16.mxu0 0
  %1190 = vmatpush1.bf16.msra.mxu0 %v253
  %1191 = vmatprep.subr.bf16.mxu0 0
  %1192 = vmatpush1.bf16.msra.mxu0 %v252
  %1193 = vmatprep.subr.bf16.mxu0 0
  %1194 = vmatpush1.bf16.msra.mxu0 %v251
  %1195 = vmatprep.subr.bf16.mxu0 0
  %1196 = vmatpush1.bf16.msra.mxu0 %v250
  %1197 = vmatprep.subr.bf16.mxu0 0
  %1198 = vmatpush1.bf16.msra.mxu0 %v249
  %1199 = vmatprep.subr.bf16.mxu0 0
  %1200 = vmatpush1.bf16.msra.mxu0 %v248
  %1201 = vmatprep.subr.bf16.mxu0 0
  %1202 = vmatpush2.bf16.msra.mxu0 %v263
  %1203 = vmatprep.subr.bf16.mxu0 0
  %1204 = vmatpush2.bf16.msra.mxu0 %v262
  %1205 = vmatprep.subr.bf16.mxu0 0
  %1206 = vmatpush2.bf16.msra.mxu0 %v261
  %1207 = vmatprep.subr.bf16.mxu0 0
  %1208 = vmatpush2.bf16.msra.mxu0 %v260
  %1209 = vmatprep.subr.bf16.mxu0 0
  %1210 = vmatpush2.bf16.msra.mxu0 %v259
  %1211 = vmatprep.subr.bf16.mxu0 0
  %1212 = vmatpush2.bf16.msra.mxu0 %v258
  %1213 = vmatprep.subr.bf16.mxu0 0
  %1214 = vmatpush2.bf16.msra.mxu0 %v257
  %1215 = vmatprep.subr.bf16.mxu0 0
  %1216 = vmatpush2.bf16.msra.mxu0 %v256
  %1217 = vmatprep.mubr.bf16.mxu0 %v1178
  %1218 = vmatmul.mubr.bf16.gmra.mxu0 %v1177
  %v1219 = vpop.f32.mrf.mxu0
  %v1220 = vadd.f32 %v104, %v1219
  %v1221 = vpop.f32.mrf.mxu0
  %v1222 = vpop.f32.mrf.mxu0
  %v1223 = vpop.f32.mrf.mxu0
  %1224 = vdwg.mxu0
  %1225 = vmatprep.subr.bf16.mxu0 0
  %1226 = vmatpush1.bf16.msra.mxu0 %v271
  %1227 = vmatprep.subr.bf16.mxu0 0
  %1228 = vmatpush1.bf16.msra.mxu0 %v270
  %1229 = vmatprep.subr.bf16.mxu0 0
  %1230 = vmatpush1.bf16.msra.mxu0 %v269
  %1231 = vmatprep.subr.bf16.mxu0 0
  %1232 = vmatpush1.bf16.msra.mxu0 %v268
  %1233 = vmatprep.subr.bf16.mxu0 0
  %1234 = vmatpush1.bf16.msra.mxu0 %v267
  %1235 = vmatprep.subr.bf16.mxu0 0
  %1236 = vmatpush1.bf16.msra.mxu0 %v266
  %1237 = vmatprep.subr.bf16.mxu0 0
  %1238 = vmatpush1.bf16.msra.mxu0 %v265
  %1239 = vmatprep.subr.bf16.mxu0 0
  %1240 = vmatpush1.bf16.msra.mxu0 %v264
  %1241 = vmatprep.subr.bf16.mxu0 0
  %1242 = vmatpush2.bf16.msra.mxu0 %v279
  %1243 = vmatprep.subr.bf16.mxu0 0
  %1244 = vmatpush2.bf16.msra.mxu0 %v278
  %1245 = vmatprep.subr.bf16.mxu0 0
  %1246 = vmatpush2.bf16.msra.mxu0 %v277
  %1247 = vmatprep.subr.bf16.mxu0 0
  %1248 = vmatpush2.bf16.msra.mxu0 %v276
  %1249 = vmatprep.subr.bf16.mxu0 0
  %1250 = vmatpush2.bf16.msra.mxu0 %v275
  %1251 = vmatprep.subr.bf16.mxu0 0
  %1252 = vmatpush2.bf16.msra.mxu0 %v274
  %1253 = vmatprep.subr.bf16.mxu0 0
  %1254 = vmatpush2.bf16.msra.mxu0 %v273
  %1255 = vmatprep.subr.bf16.mxu0 0
  %1256 = vmatpush2.bf16.msra.mxu0 %v272
  %1257 = vmatprep.mubr.bf16.mxu0 %v1180
  %1258 = vmatmul.mubr.bf16.gmra.mxu0 %v1179
  %v1259 = vpop.f32.mrf.mxu0
  %v1260 = vadd.f32 %v1220, %v1259
  %v1261 = vpop.f32.mrf.mxu0
  %v1262 = vpop.f32.mrf.mxu0
  %v1263 = vpop.f32.mrf.mxu0
  %1264 = vdwg.mxu0
  %v1265 = vmax.f32 %v1260, 0.0
  %v1266 = vpack.c.bf16 %v1265, %v1265
  %s1267 = scalar_lea.vmem %s3, 160
  %v1268 = vld [vmem:[%s1267] sm:$0xf]
  %v1269 = vld [vmem:[%s1267 + $0x4] sm:$0xf]
  %v1270 = vld [vmem:[%s1267 + $0x8] sm:$0xf]
  %v1271 = vld [vmem:[%s1267 + $0xc] sm:$0xf]
  %v1272 = vld [vmem:[%s1267 + $0x10] sm:$0xf]
  %v1273 = vld [vmem:[%s1267 + $0x14] sm:$0xf]
  %v1274 = vld [vmem:[%s1267 + $0x18] sm:$0xf]
  %v1275 = vld [vmem:[%s1267 + $0x1c] sm:$0xf]
  %v1284 = vunpack.c.l.b16 %v1268
  %v1285 = vunpack.c.l.b16 %v1269
  %v1286 = vunpack.c.l.b16 %v1270
  %v1287 = vunpack.c.l.b16 %v1271
  %v1288 = vunpack.c.l.b16 %v1272
  %v1289 = vunpack.c.l.b16 %v1273
  %v1290 = vunpack.c.l.b16 %v1274
  %v1291 = vunpack.c.l.b16 %v1275
  %v1292 = vpack.c.b16 %v1285, %v1284
  %v1293 = vpack.c.b16 %v1287, %v1286
  %v1294 = vpack.c.b16 %v1289, %v1288
  %v1295 = vpack.c.b16 %v1291, %v1290
  %v1301 = vsel %vm533, %v1266, 0
  %1303 = vmatprep.subr.bf16.mxu0 0
  %1304 = vmatpush1.bf16.msra.mxu0 0
  %1305 = vmatprep.subr.bf16.mxu0 0
  %1306 = vmatpush1.bf16.msra.mxu0 0
  %1307 = vmatprep.subr.bf16.mxu0 0
  %1308 = vmatpush1.bf16.msra.mxu0 0
  %1309 = vmatprep.subr.bf16.mxu0 0
  %1310 = vmatpush1.bf16.msra.mxu0 0
  %1311 = vmatprep.subr.bf16.mxu0 0
  %1312 = vmatpush1.bf16.msra.mxu0 %v1295
  %1313 = vmatprep.subr.bf16.mxu0 0
  %1314 = vmatpush1.bf16.msra.mxu0 %v1294
  %1315 = vmatprep.subr.bf16.mxu0 0
  %1316 = vmatpush1.bf16.msra.mxu0 %v1293
  %1317 = vmatprep.subr.bf16.mxu0 0
  %1318 = vmatpush1.bf16.msra.mxu0 %v1292
  %1319 = vmatprep.subr.bf16.mxu0 0
  %1320 = vmatpush2.bf16.msra.mxu0 0
  %1321 = vmatprep.subr.bf16.mxu0 0
  %1322 = vmatpush2.bf16.msra.mxu0 0
  %1323 = vmatprep.subr.bf16.mxu0 0
  %1324 = vmatpush2.bf16.msra.mxu0 0
  %1325 = vmatprep.subr.bf16.mxu0 0
  %1326 = vmatpush2.bf16.msra.mxu0 0
  %1327 = vmatprep.subr.bf16.mxu0 0
  %1328 = vmatpush2.bf16.msra.mxu0 0
  %1329 = vmatprep.subr.bf16.mxu0 0
  %1330 = vmatpush2.bf16.msra.mxu0 0
  %1331 = vmatprep.subr.bf16.mxu0 0
  %1332 = vmatpush2.bf16.msra.mxu0 0
  %1333 = vmatprep.subr.bf16.mxu0 0
  %1334 = vmatpush2.bf16.msra.mxu0 0
  %1335 = vmatprep.mubr.bf16.mxu0 0
  %1336 = vmatmul.mubr.bf16.gmra.mxu0 %v1301
  %v1337 = vpop.f32.mrf.mxu0
  %v1338 = vadd.f32 0.0, %v1337
  %v1339 = vpop.f32.mrf.mxu0
  %v1340 = vpop.f32.mrf.mxu0
  %v1341 = vpop.f32.mrf.mxu0
  %1342 = vdwg.mxu0
  %v1343 = vadd.f32 %v1168, %v1338
  %v1344 = vld [vmem:[%s0 + $0x60] sm:$0xff]
  %v1345 = vld [vmem:[%s0 + $0x68] sm:$0xff]
  %v1348 = vunpack.c.l.b16 %v1344
  %v1349 = vunpack.c.h.b16 %v1344
  %v1350 = vunpack.c.l.b16 %v1345
  %v1351 = vunpack.c.h.b16 %v1345
  %v1352 = vpack.c.b16 %v1348, %v1348
  %v1353 = vpack.c.b16 %v1349, %v1349
  %v1354 = vpack.c.b16 %v1350, %v1350
  %v1355 = vpack.c.b16 %v1351, %v1351
  %1360 = vmatprep.subr.bf16.mxu0 0
  %1361 = vmatpush1.bf16.msra.mxu0 %v255
  %1362 = vmatprep.subr.bf16.mxu0 0
  %1363 = vmatpush1.bf16.msra.mxu0 %v254
  %1364 = vmatprep.subr.bf16.mxu0 0
  %1365 = vmatpush1.bf16.msra.mxu0 %v253
  %1366 = vmatprep.subr.bf16.mxu0 0
  %1367 = vmatpush1.bf16.msra.mxu0 %v252
  %1368 = vmatprep.subr.bf16.mxu0 0
  %1369 = vmatpush1.bf16.msra.mxu0 %v251
  %1370 = vmatprep.subr.bf16.mxu0 0
  %1371 = vmatpush1.bf16.msra.mxu0 %v250
  %1372 = vmatprep.subr.bf16.mxu0 0
  %1373 = vmatpush1.bf16.msra.mxu0 %v249
  %1374 = vmatprep.subr.bf16.mxu0 0
  %1375 = vmatpush1.bf16.msra.mxu0 %v248
  %1376 = vmatprep.subr.bf16.mxu0 0
  %1377 = vmatpush2.bf16.msra.mxu0 %v263
  %1378 = vmatprep.subr.bf16.mxu0 0
  %1379 = vmatpush2.bf16.msra.mxu0 %v262
  %1380 = vmatprep.subr.bf16.mxu0 0
  %1381 = vmatpush2.bf16.msra.mxu0 %v261
  %1382 = vmatprep.subr.bf16.mxu0 0
  %1383 = vmatpush2.bf16.msra.mxu0 %v260
  %1384 = vmatprep.subr.bf16.mxu0 0
  %1385 = vmatpush2.bf16.msra.mxu0 %v259
  %1386 = vmatprep.subr.bf16.mxu0 0
  %1387 = vmatpush2.bf16.msra.mxu0 %v258
  %1388 = vmatprep.subr.bf16.mxu0 0
  %1389 = vmatpush2.bf16.msra.mxu0 %v257
  %1390 = vmatprep.subr.bf16.mxu0 0
  %1391 = vmatpush2.bf16.msra.mxu0 %v256
  %1392 = vmatprep.mubr.bf16.mxu0 %v1353
  %1393 = vmatmul.mubr.bf16.gmra.mxu0 %v1352
  %v1394 = vpop.f32.mrf.mxu0
  %v1395 = vadd.f32 %v104, %v1394
  %v1396 = vpop.f32.mrf.mxu0
  %v1397 = vpop.f32.mrf.mxu0
  %v1398 = vpop.f32.mrf.mxu0
  %1399 = vdwg.mxu0
  %1400 = vmatprep.subr.bf16.mxu0 0
  %1401 = vmatpush1.bf16.msra.mxu0 %v271
  %1402 = vmatprep.subr.bf16.mxu0 0
  %1403 = vmatpush1.bf16.msra.mxu0 %v270
  %1404 = vmatprep.subr.bf16.mxu0 0
  %1405 = vmatpush1.bf16.msra.mxu0 %v269
  %1406 = vmatprep.subr.bf16.mxu0 0
  %1407 = vmatpush1.bf16.msra.mxu0 %v268
  %1408 = vmatprep.subr.bf16.mxu0 0
  %1409 = vmatpush1.bf16.msra.mxu0 %v267
  %1410 = vmatprep.subr.bf16.mxu0 0
  %1411 = vmatpush1.bf16.msra.mxu0 %v266
  %1412 = vmatprep.subr.bf16.mxu0 0
  %1413 = vmatpush1.bf16.msra.mxu0 %v265
  %1414 = vmatprep.subr.bf16.mxu0 0
  %1415 = vmatpush1.bf16.msra.mxu0 %v264
  %1416 = vmatprep.subr.bf16.mxu0 0
  %1417 = vmatpush2.bf16.msra.mxu0 %v279
  %1418 = vmatprep.subr.bf16.mxu0 0
  %1419 = vmatpush2.bf16.msra.mxu0 %v278
  %1420 = vmatprep.subr.bf16.mxu0 0
  %1421 = vmatpush2.bf16.msra.mxu0 %v277
  %1422 = vmatprep.subr.bf16.mxu0 0
  %1423 = vmatpush2.bf16.msra.mxu0 %v276
  %1424 = vmatprep.subr.bf16.mxu0 0
  %1425 = vmatpush2.bf16.msra.mxu0 %v275
  %1426 = vmatprep.subr.bf16.mxu0 0
  %1427 = vmatpush2.bf16.msra.mxu0 %v274
  %1428 = vmatprep.subr.bf16.mxu0 0
  %1429 = vmatpush2.bf16.msra.mxu0 %v273
  %1430 = vmatprep.subr.bf16.mxu0 0
  %1431 = vmatpush2.bf16.msra.mxu0 %v272
  %1432 = vmatprep.mubr.bf16.mxu0 %v1355
  %1433 = vmatmul.mubr.bf16.gmra.mxu0 %v1354
  %v1434 = vpop.f32.mrf.mxu0
  %v1435 = vadd.f32 %v1395, %v1434
  %v1436 = vpop.f32.mrf.mxu0
  %v1437 = vpop.f32.mrf.mxu0
  %v1438 = vpop.f32.mrf.mxu0
  %1439 = vdwg.mxu0
  %v1440 = vmax.f32 %v1435, 0.0
  %v1441 = vpack.c.bf16 %v1440, %v1440
  %s1442 = scalar_lea.vmem %s3, 192
  %v1443 = vld [vmem:[%s1442] sm:$0xf]
  %v1444 = vld [vmem:[%s1442 + $0x4] sm:$0xf]
  %v1445 = vld [vmem:[%s1442 + $0x8] sm:$0xf]
  %v1446 = vld [vmem:[%s1442 + $0xc] sm:$0xf]
  %v1447 = vld [vmem:[%s1442 + $0x10] sm:$0xf]
  %v1448 = vld [vmem:[%s1442 + $0x14] sm:$0xf]
  %v1449 = vld [vmem:[%s1442 + $0x18] sm:$0xf]
  %v1450 = vld [vmem:[%s1442 + $0x1c] sm:$0xf]
  %v1459 = vunpack.c.l.b16 %v1443
  %v1460 = vunpack.c.l.b16 %v1444
  %v1461 = vunpack.c.l.b16 %v1445
  %v1462 = vunpack.c.l.b16 %v1446
  %v1463 = vunpack.c.l.b16 %v1447
  %v1464 = vunpack.c.l.b16 %v1448
  %v1465 = vunpack.c.l.b16 %v1449
  %v1466 = vunpack.c.l.b16 %v1450
  %v1467 = vpack.c.b16 %v1460, %v1459
  %v1468 = vpack.c.b16 %v1462, %v1461
  %v1469 = vpack.c.b16 %v1464, %v1463
  %v1470 = vpack.c.b16 %v1466, %v1465
  %v1476 = vsel %vm533, %v1441, 0
  %1478 = vmatprep.subr.bf16.mxu0 0
  %1479 = vmatpush1.bf16.msra.mxu0 0
  %1480 = vmatprep.subr.bf16.mxu0 0
  %1481 = vmatpush1.bf16.msra.mxu0 0
  %1482 = vmatprep.subr.bf16.mxu0 0
  %1483 = vmatpush1.bf16.msra.mxu0 0
  %1484 = vmatprep.subr.bf16.mxu0 0
  %1485 = vmatpush1.bf16.msra.mxu0 0
  %1486 = vmatprep.subr.bf16.mxu0 0
  %1487 = vmatpush1.bf16.msra.mxu0 %v1470
  %1488 = vmatprep.subr.bf16.mxu0 0
  %1489 = vmatpush1.bf16.msra.mxu0 %v1469
  %1490 = vmatprep.subr.bf16.mxu0 0
  %1491 = vmatpush1.bf16.msra.mxu0 %v1468
  %1492 = vmatprep.subr.bf16.mxu0 0
  %1493 = vmatpush1.bf16.msra.mxu0 %v1467
  %1494 = vmatprep.subr.bf16.mxu0 0
  %1495 = vmatpush2.bf16.msra.mxu0 0
  %1496 = vmatprep.subr.bf16.mxu0 0
  %1497 = vmatpush2.bf16.msra.mxu0 0
  %1498 = vmatprep.subr.bf16.mxu0 0
  %1499 = vmatpush2.bf16.msra.mxu0 0
  %1500 = vmatprep.subr.bf16.mxu0 0
  %1501 = vmatpush2.bf16.msra.mxu0 0
  %1502 = vmatprep.subr.bf16.mxu0 0
  %1503 = vmatpush2.bf16.msra.mxu0 0
  %1504 = vmatprep.subr.bf16.mxu0 0
  %1505 = vmatpush2.bf16.msra.mxu0 0
  %1506 = vmatprep.subr.bf16.mxu0 0
  %1507 = vmatpush2.bf16.msra.mxu0 0
  %1508 = vmatprep.subr.bf16.mxu0 0
  %1509 = vmatpush2.bf16.msra.mxu0 0
  %1510 = vmatprep.mubr.bf16.mxu0 0
  %1511 = vmatmul.mubr.bf16.gmra.mxu0 %v1476
  %v1512 = vpop.f32.mrf.mxu0
  %v1513 = vadd.f32 0.0, %v1512
  %v1514 = vpop.f32.mrf.mxu0
  %v1515 = vpop.f32.mrf.mxu0
  %v1516 = vpop.f32.mrf.mxu0
  %1517 = vdwg.mxu0
  %v1518 = vadd.f32 %v1343, %v1513
  %v1519 = vld [vmem:[%s0 + $0x70] sm:$0xff]
  %v1520 = vld [vmem:[%s0 + $0x78] sm:$0xff]
  %v1523 = vunpack.c.l.b16 %v1519
  %v1524 = vunpack.c.h.b16 %v1519
  %v1525 = vunpack.c.l.b16 %v1520
  %v1526 = vunpack.c.h.b16 %v1520
  %v1527 = vpack.c.b16 %v1523, %v1523
  %v1528 = vpack.c.b16 %v1524, %v1524
  %v1529 = vpack.c.b16 %v1525, %v1525
  %v1530 = vpack.c.b16 %v1526, %v1526
  %1535 = vmatprep.subr.bf16.mxu0 0
  %1536 = vmatpush1.bf16.msra.mxu0 %v255
  %1537 = vmatprep.subr.bf16.mxu0 0
  %1538 = vmatpush1.bf16.msra.mxu0 %v254
  %1539 = vmatprep.subr.bf16.mxu0 0
  %1540 = vmatpush1.bf16.msra.mxu0 %v253
  %1541 = vmatprep.subr.bf16.mxu0 0
  %1542 = vmatpush1.bf16.msra.mxu0 %v252
  %1543 = vmatprep.subr.bf16.mxu0 0
  %1544 = vmatpush1.bf16.msra.mxu0 %v251
  %1545 = vmatprep.subr.bf16.mxu0 0
  %1546 = vmatpush1.bf16.msra.mxu0 %v250
  %1547 = vmatprep.subr.bf16.mxu0 0
  %1548 = vmatpush1.bf16.msra.mxu0 %v249
  %1549 = vmatprep.subr.bf16.mxu0 0
  %1550 = vmatpush1.bf16.msra.mxu0 %v248
  %1551 = vmatprep.subr.bf16.mxu0 0
  %1552 = vmatpush2.bf16.msra.mxu0 %v263
  %1553 = vmatprep.subr.bf16.mxu0 0
  %1554 = vmatpush2.bf16.msra.mxu0 %v262
  %1555 = vmatprep.subr.bf16.mxu0 0
  %1556 = vmatpush2.bf16.msra.mxu0 %v261
  %1557 = vmatprep.subr.bf16.mxu0 0
  %1558 = vmatpush2.bf16.msra.mxu0 %v260
  %1559 = vmatprep.subr.bf16.mxu0 0
  %1560 = vmatpush2.bf16.msra.mxu0 %v259
  %1561 = vmatprep.subr.bf16.mxu0 0
  %1562 = vmatpush2.bf16.msra.mxu0 %v258
  %1563 = vmatprep.subr.bf16.mxu0 0
  %1564 = vmatpush2.bf16.msra.mxu0 %v257
  %1565 = vmatprep.subr.bf16.mxu0 0
  %1566 = vmatpush2.bf16.msra.mxu0 %v256
  %1567 = vmatprep.mubr.bf16.mxu0 %v1528
  %1568 = vmatmul.mubr.bf16.gmra.mxu0 %v1527
  %v1569 = vpop.f32.mrf.mxu0
  %v1570 = vadd.f32 %v104, %v1569
  %v1571 = vpop.f32.mrf.mxu0
  %v1572 = vpop.f32.mrf.mxu0
  %v1573 = vpop.f32.mrf.mxu0
  %1574 = vdwg.mxu0
  %1575 = vmatprep.subr.bf16.mxu0 0
  %1576 = vmatpush1.bf16.msra.mxu0 %v271
  %1577 = vmatprep.subr.bf16.mxu0 0
  %1578 = vmatpush1.bf16.msra.mxu0 %v270
  %1579 = vmatprep.subr.bf16.mxu0 0
  %1580 = vmatpush1.bf16.msra.mxu0 %v269
  %1581 = vmatprep.subr.bf16.mxu0 0
  %1582 = vmatpush1.bf16.msra.mxu0 %v268
  %1583 = vmatprep.subr.bf16.mxu0 0
  %1584 = vmatpush1.bf16.msra.mxu0 %v267
  %1585 = vmatprep.subr.bf16.mxu0 0
  %1586 = vmatpush1.bf16.msra.mxu0 %v266
  %1587 = vmatprep.subr.bf16.mxu0 0
  %1588 = vmatpush1.bf16.msra.mxu0 %v265
  %1589 = vmatprep.subr.bf16.mxu0 0
  %1590 = vmatpush1.bf16.msra.mxu0 %v264
  %1591 = vmatprep.subr.bf16.mxu0 0
  %1592 = vmatpush2.bf16.msra.mxu0 %v279
  %1593 = vmatprep.subr.bf16.mxu0 0
  %1594 = vmatpush2.bf16.msra.mxu0 %v278
  %1595 = vmatprep.subr.bf16.mxu0 0
  %1596 = vmatpush2.bf16.msra.mxu0 %v277
  %1597 = vmatprep.subr.bf16.mxu0 0
  %1598 = vmatpush2.bf16.msra.mxu0 %v276
  %1599 = vmatprep.subr.bf16.mxu0 0
  %1600 = vmatpush2.bf16.msra.mxu0 %v275
  %1601 = vmatprep.subr.bf16.mxu0 0
  %1602 = vmatpush2.bf16.msra.mxu0 %v274
  %1603 = vmatprep.subr.bf16.mxu0 0
  %1604 = vmatpush2.bf16.msra.mxu0 %v273
  %1605 = vmatprep.subr.bf16.mxu0 0
  %1606 = vmatpush2.bf16.msra.mxu0 %v272
  %1607 = vmatprep.mubr.bf16.mxu0 %v1530
  %1608 = vmatmul.mubr.bf16.gmra.mxu0 %v1529
  %v1609 = vpop.f32.mrf.mxu0
  %v1610 = vadd.f32 %v1570, %v1609
  %v1611 = vpop.f32.mrf.mxu0
  %v1612 = vpop.f32.mrf.mxu0
  %v1613 = vpop.f32.mrf.mxu0
  %1614 = vdwg.mxu0
  %v1615 = vmax.f32 %v1610, 0.0
  %v1616 = vpack.c.bf16 %v1615, %v1615
  %s1617 = scalar_lea.vmem %s3, 224
  %v1618 = vld [vmem:[%s1617] sm:$0xf]
  %v1619 = vld [vmem:[%s1617 + $0x4] sm:$0xf]
  %v1620 = vld [vmem:[%s1617 + $0x8] sm:$0xf]
  %v1621 = vld [vmem:[%s1617 + $0xc] sm:$0xf]
  %v1622 = vld [vmem:[%s1617 + $0x10] sm:$0xf]
  %v1623 = vld [vmem:[%s1617 + $0x14] sm:$0xf]
  %v1624 = vld [vmem:[%s1617 + $0x18] sm:$0xf]
  %v1625 = vld [vmem:[%s1617 + $0x1c] sm:$0xf]
  %v1634 = vunpack.c.l.b16 %v1618
  %v1635 = vunpack.c.l.b16 %v1619
  %v1636 = vunpack.c.l.b16 %v1620
  %v1637 = vunpack.c.l.b16 %v1621
  %v1638 = vunpack.c.l.b16 %v1622
  %v1639 = vunpack.c.l.b16 %v1623
  %v1640 = vunpack.c.l.b16 %v1624
  %v1641 = vunpack.c.l.b16 %v1625
  %v1642 = vpack.c.b16 %v1635, %v1634
  %v1643 = vpack.c.b16 %v1637, %v1636
  %v1644 = vpack.c.b16 %v1639, %v1638
  %v1645 = vpack.c.b16 %v1641, %v1640
  %v1651 = vsel %vm533, %v1616, 0
  %1653 = vmatprep.subr.bf16.mxu0 0
  %1654 = vmatpush1.bf16.msra.mxu0 0
  %1655 = vmatprep.subr.bf16.mxu0 0
  %1656 = vmatpush1.bf16.msra.mxu0 0
  %1657 = vmatprep.subr.bf16.mxu0 0
  %1658 = vmatpush1.bf16.msra.mxu0 0
  %1659 = vmatprep.subr.bf16.mxu0 0
  %1660 = vmatpush1.bf16.msra.mxu0 0
  %1661 = vmatprep.subr.bf16.mxu0 0
  %1662 = vmatpush1.bf16.msra.mxu0 %v1645
  %1663 = vmatprep.subr.bf16.mxu0 0
  %1664 = vmatpush1.bf16.msra.mxu0 %v1644
  %1665 = vmatprep.subr.bf16.mxu0 0
  %1666 = vmatpush1.bf16.msra.mxu0 %v1643
  %1667 = vmatprep.subr.bf16.mxu0 0
  %1668 = vmatpush1.bf16.msra.mxu0 %v1642
  %1669 = vmatprep.subr.bf16.mxu0 0
  %1670 = vmatpush2.bf16.msra.mxu0 0
  %1671 = vmatprep.subr.bf16.mxu0 0
  %1672 = vmatpush2.bf16.msra.mxu0 0
  %1673 = vmatprep.subr.bf16.mxu0 0
  %1674 = vmatpush2.bf16.msra.mxu0 0
  %1675 = vmatprep.subr.bf16.mxu0 0
  %1676 = vmatpush2.bf16.msra.mxu0 0
  %1677 = vmatprep.subr.bf16.mxu0 0
  %1678 = vmatpush2.bf16.msra.mxu0 0
  %1679 = vmatprep.subr.bf16.mxu0 0
  %1680 = vmatpush2.bf16.msra.mxu0 0
  %1681 = vmatprep.subr.bf16.mxu0 0
  %1682 = vmatpush2.bf16.msra.mxu0 0
  %1683 = vmatprep.subr.bf16.mxu0 0
  %1684 = vmatpush2.bf16.msra.mxu0 0
  %1685 = vmatprep.mubr.bf16.mxu0 0
  %1686 = vmatmul.mubr.bf16.gmra.mxu0 %v1651
  %v1687 = vpop.f32.mrf.mxu0
  %v1688 = vadd.f32 0.0, %v1687
  %v1689 = vpop.f32.mrf.mxu0
  %v1690 = vpop.f32.mrf.mxu0
  %v1691 = vpop.f32.mrf.mxu0
  %1692 = vdwg.mxu0
  %v1693 = vadd.f32 %v1518, %v1688
  %v1694 = vld [vmem:[%s0 + $0x80] sm:$0xff]
  %v1695 = vld [vmem:[%s0 + $0x88] sm:$0xff]
  %v1698 = vunpack.c.l.b16 %v1694
  %v1699 = vunpack.c.h.b16 %v1694
  %v1700 = vunpack.c.l.b16 %v1695
  %v1701 = vunpack.c.h.b16 %v1695
  %v1702 = vpack.c.b16 %v1698, %v1698
  %v1703 = vpack.c.b16 %v1699, %v1699
  %v1704 = vpack.c.b16 %v1700, %v1700
  %v1705 = vpack.c.b16 %v1701, %v1701
  %1710 = vmatprep.subr.bf16.mxu0 0
  %1711 = vmatpush1.bf16.msra.mxu0 %v255
  %1712 = vmatprep.subr.bf16.mxu0 0
  %1713 = vmatpush1.bf16.msra.mxu0 %v254
  %1714 = vmatprep.subr.bf16.mxu0 0
  %1715 = vmatpush1.bf16.msra.mxu0 %v253
  %1716 = vmatprep.subr.bf16.mxu0 0
  %1717 = vmatpush1.bf16.msra.mxu0 %v252
  %1718 = vmatprep.subr.bf16.mxu0 0
  %1719 = vmatpush1.bf16.msra.mxu0 %v251
  %1720 = vmatprep.subr.bf16.mxu0 0
  %1721 = vmatpush1.bf16.msra.mxu0 %v250
  %1722 = vmatprep.subr.bf16.mxu0 0
  %1723 = vmatpush1.bf16.msra.mxu0 %v249
  %1724 = vmatprep.subr.bf16.mxu0 0
  %1725 = vmatpush1.bf16.msra.mxu0 %v248
  %1726 = vmatprep.subr.bf16.mxu0 0
  %1727 = vmatpush2.bf16.msra.mxu0 %v263
  %1728 = vmatprep.subr.bf16.mxu0 0
  %1729 = vmatpush2.bf16.msra.mxu0 %v262
  %1730 = vmatprep.subr.bf16.mxu0 0
  %1731 = vmatpush2.bf16.msra.mxu0 %v261
  %1732 = vmatprep.subr.bf16.mxu0 0
  %1733 = vmatpush2.bf16.msra.mxu0 %v260
  %1734 = vmatprep.subr.bf16.mxu0 0
  %1735 = vmatpush2.bf16.msra.mxu0 %v259
  %1736 = vmatprep.subr.bf16.mxu0 0
  %1737 = vmatpush2.bf16.msra.mxu0 %v258
  %1738 = vmatprep.subr.bf16.mxu0 0
  %1739 = vmatpush2.bf16.msra.mxu0 %v257
  %1740 = vmatprep.subr.bf16.mxu0 0
  %1741 = vmatpush2.bf16.msra.mxu0 %v256
  %1742 = vmatprep.mubr.bf16.mxu0 %v1703
  %1743 = vmatmul.mubr.bf16.gmra.mxu0 %v1702
  %v1744 = vpop.f32.mrf.mxu0
  %v1745 = vadd.f32 %v104, %v1744
  %v1746 = vpop.f32.mrf.mxu0
  %v1747 = vpop.f32.mrf.mxu0
  %v1748 = vpop.f32.mrf.mxu0
  %1749 = vdwg.mxu0
  %1750 = vmatprep.subr.bf16.mxu0 0
  %1751 = vmatpush1.bf16.msra.mxu0 %v271
  %1752 = vmatprep.subr.bf16.mxu0 0
  %1753 = vmatpush1.bf16.msra.mxu0 %v270
  %1754 = vmatprep.subr.bf16.mxu0 0
  %1755 = vmatpush1.bf16.msra.mxu0 %v269
  %1756 = vmatprep.subr.bf16.mxu0 0
  %1757 = vmatpush1.bf16.msra.mxu0 %v268
  %1758 = vmatprep.subr.bf16.mxu0 0
  %1759 = vmatpush1.bf16.msra.mxu0 %v267
  %1760 = vmatprep.subr.bf16.mxu0 0
  %1761 = vmatpush1.bf16.msra.mxu0 %v266
  %1762 = vmatprep.subr.bf16.mxu0 0
  %1763 = vmatpush1.bf16.msra.mxu0 %v265
  %1764 = vmatprep.subr.bf16.mxu0 0
  %1765 = vmatpush1.bf16.msra.mxu0 %v264
  %1766 = vmatprep.subr.bf16.mxu0 0
  %1767 = vmatpush2.bf16.msra.mxu0 %v279
  %1768 = vmatprep.subr.bf16.mxu0 0
  %1769 = vmatpush2.bf16.msra.mxu0 %v278
  %1770 = vmatprep.subr.bf16.mxu0 0
  %1771 = vmatpush2.bf16.msra.mxu0 %v277
  %1772 = vmatprep.subr.bf16.mxu0 0
  %1773 = vmatpush2.bf16.msra.mxu0 %v276
  %1774 = vmatprep.subr.bf16.mxu0 0
  %1775 = vmatpush2.bf16.msra.mxu0 %v275
  %1776 = vmatprep.subr.bf16.mxu0 0
  %1777 = vmatpush2.bf16.msra.mxu0 %v274
  %1778 = vmatprep.subr.bf16.mxu0 0
  %1779 = vmatpush2.bf16.msra.mxu0 %v273
  %1780 = vmatprep.subr.bf16.mxu0 0
  %1781 = vmatpush2.bf16.msra.mxu0 %v272
  %1782 = vmatprep.mubr.bf16.mxu0 %v1705
  %1783 = vmatmul.mubr.bf16.gmra.mxu0 %v1704
  %v1784 = vpop.f32.mrf.mxu0
  %v1785 = vadd.f32 %v1745, %v1784
  %v1786 = vpop.f32.mrf.mxu0
  %v1787 = vpop.f32.mrf.mxu0
  %v1788 = vpop.f32.mrf.mxu0
  %1789 = vdwg.mxu0
  %v1790 = vmax.f32 %v1785, 0.0
  %v1791 = vpack.c.bf16 %v1790, %v1790
  %s1792 = scalar_lea.vmem %s3, 256
  %v1793 = vld [vmem:[%s1792] sm:$0xf]
  %v1794 = vld [vmem:[%s1792 + $0x4] sm:$0xf]
  %v1795 = vld [vmem:[%s1792 + $0x8] sm:$0xf]
  %v1796 = vld [vmem:[%s1792 + $0xc] sm:$0xf]
  %v1797 = vld [vmem:[%s1792 + $0x10] sm:$0xf]
  %v1798 = vld [vmem:[%s1792 + $0x14] sm:$0xf]
  %v1799 = vld [vmem:[%s1792 + $0x18] sm:$0xf]
  %v1800 = vld [vmem:[%s1792 + $0x1c] sm:$0xf]
  %v1809 = vunpack.c.l.b16 %v1793
  %v1810 = vunpack.c.l.b16 %v1794
  %v1811 = vunpack.c.l.b16 %v1795
  %v1812 = vunpack.c.l.b16 %v1796
  %v1813 = vunpack.c.l.b16 %v1797
  %v1814 = vunpack.c.l.b16 %v1798
  %v1815 = vunpack.c.l.b16 %v1799
  %v1816 = vunpack.c.l.b16 %v1800
  %v1817 = vpack.c.b16 %v1810, %v1809
  %v1818 = vpack.c.b16 %v1812, %v1811
  %v1819 = vpack.c.b16 %v1814, %v1813
  %v1820 = vpack.c.b16 %v1816, %v1815
  %v1826 = vsel %vm533, %v1791, 0
  %1828 = vmatprep.subr.bf16.mxu0 0
  %1829 = vmatpush1.bf16.msra.mxu0 0
  %1830 = vmatprep.subr.bf16.mxu0 0
  %1831 = vmatpush1.bf16.msra.mxu0 0
  %1832 = vmatprep.subr.bf16.mxu0 0
  %1833 = vmatpush1.bf16.msra.mxu0 0
  %1834 = vmatprep.subr.bf16.mxu0 0
  %1835 = vmatpush1.bf16.msra.mxu0 0
  %1836 = vmatprep.subr.bf16.mxu0 0
  %1837 = vmatpush1.bf16.msra.mxu0 %v1820
  %1838 = vmatprep.subr.bf16.mxu0 0
  %1839 = vmatpush1.bf16.msra.mxu0 %v1819
  %1840 = vmatprep.subr.bf16.mxu0 0
  %1841 = vmatpush1.bf16.msra.mxu0 %v1818
  %1842 = vmatprep.subr.bf16.mxu0 0
  %1843 = vmatpush1.bf16.msra.mxu0 %v1817
  %1844 = vmatprep.subr.bf16.mxu0 0
  %1845 = vmatpush2.bf16.msra.mxu0 0
  %1846 = vmatprep.subr.bf16.mxu0 0
  %1847 = vmatpush2.bf16.msra.mxu0 0
  %1848 = vmatprep.subr.bf16.mxu0 0
  %1849 = vmatpush2.bf16.msra.mxu0 0
  %1850 = vmatprep.subr.bf16.mxu0 0
  %1851 = vmatpush2.bf16.msra.mxu0 0
  %1852 = vmatprep.subr.bf16.mxu0 0
  %1853 = vmatpush2.bf16.msra.mxu0 0
  %1854 = vmatprep.subr.bf16.mxu0 0
  %1855 = vmatpush2.bf16.msra.mxu0 0
  %1856 = vmatprep.subr.bf16.mxu0 0
  %1857 = vmatpush2.bf16.msra.mxu0 0
  %1858 = vmatprep.subr.bf16.mxu0 0
  %1859 = vmatpush2.bf16.msra.mxu0 0
  %1860 = vmatprep.mubr.bf16.mxu0 0
  %1861 = vmatmul.mubr.bf16.gmra.mxu0 %v1826
  %v1862 = vpop.f32.mrf.mxu0
  %v1863 = vadd.f32 0.0, %v1862
  %v1864 = vpop.f32.mrf.mxu0
  %v1865 = vpop.f32.mrf.mxu0
  %v1866 = vpop.f32.mrf.mxu0
  %1867 = vdwg.mxu0
  %v1868 = vadd.f32 %v1693, %v1863
  %v1869 = vld [vmem:[%s4] sm:$0x1]
  %v1871 = vlaneseq
  %v1872 = vshrl.u32 %v1871, 7
  %v1873 = vsub.s32 0, %v1872
  %v1874 = vrot.slane %v1869, %v1873
  %v1876 = vadd.f32 %v1868, %v1874
  %v1877 = vmax.f32 %v1876, 0.0
  %v1878 = vpack.c.bf16 %v1877, %v1877
  %v1879 = vld [vmem:[%s5] sm:$0xff]
  %v1880 = vld [vmem:[%s5 + $0x8] sm:$0xff]
  %v1881 = vld [vmem:[%s5 + $0x10] sm:$0xff]
  %v1882 = vld [vmem:[%s5 + $0x18] sm:$0xff]
  %v1883 = vld [vmem:[%s5 + $0x20] sm:$0xff]
  %v1884 = vld [vmem:[%s5 + $0x28] sm:$0xff]
  %v1885 = vld [vmem:[%s5 + $0x30] sm:$0xff]
  %v1886 = vld [vmem:[%s5 + $0x38] sm:$0xff]
  %v1887 = vld [vmem:[%s5 + $0x40] sm:$0xff]
  %v1888 = vld [vmem:[%s5 + $0x48] sm:$0xff]
  %v1889 = vld [vmem:[%s5 + $0x50] sm:$0xff]
  %v1890 = vld [vmem:[%s5 + $0x58] sm:$0xff]
  %v1891 = vld [vmem:[%s5 + $0x60] sm:$0xff]
  %v1892 = vld [vmem:[%s5 + $0x68] sm:$0xff]
  %v1893 = vld [vmem:[%s5 + $0x70] sm:$0xff]
  %v1894 = vld [vmem:[%s5 + $0x78] sm:$0xff]
  %v1895 = vld [vmem:[%s6] sm:$0xf]
  %v1897 = vlaneseq
  %v1898 = vshrl.u32 %v1897, 7
  %v1899 = vsub.s32 0, %v1898
  %v1900 = vrot.slane %v1895, %v1899
  %v1901 = vlaneseq
  %v1902 = vshrl.u32 %v1901, 7
  %v1903 = vsub.s32 1, %v1902
  %v1904 = vrot.slane %v1895, %v1903
  %v1905 = vlaneseq
  %v1906 = vshrl.u32 %v1905, 7
  %v1907 = vsub.s32 2, %v1906
  %v1908 = vrot.slane %v1895, %v1907
  %v1909 = vlaneseq
  %v1910 = vshrl.u32 %v1909, 7
  %v1911 = vsub.s32 3, %v1910
  %v1912 = vrot.slane %v1895, %v1911
  %v1933 = vunpack.c.l.b16 %v1879
  %v1934 = vunpack.c.h.b16 %v1879
  %v1935 = vunpack.c.l.b16 %v1880
  %v1936 = vunpack.c.h.b16 %v1880
  %v1937 = vunpack.c.l.b16 %v1881
  %v1938 = vunpack.c.h.b16 %v1881
  %v1939 = vunpack.c.l.b16 %v1882
  %v1940 = vunpack.c.h.b16 %v1882
  %v1941 = vunpack.c.l.b16 %v1883
  %v1942 = vunpack.c.h.b16 %v1883
  %v1943 = vunpack.c.l.b16 %v1884
  %v1944 = vunpack.c.h.b16 %v1884
  %v1945 = vunpack.c.l.b16 %v1885
  %v1946 = vunpack.c.h.b16 %v1885
  %v1947 = vunpack.c.l.b16 %v1886
  %v1948 = vunpack.c.h.b16 %v1886
  %v1949 = vunpack.c.l.b16 %v1887
  %v1950 = vunpack.c.h.b16 %v1887
  %v1951 = vunpack.c.l.b16 %v1888
  %v1952 = vunpack.c.h.b16 %v1888
  %v1953 = vunpack.c.l.b16 %v1889
  %v1954 = vunpack.c.h.b16 %v1889
  %v1955 = vunpack.c.l.b16 %v1890
  %v1956 = vunpack.c.h.b16 %v1890
  %v1957 = vunpack.c.l.b16 %v1891
  %v1958 = vunpack.c.h.b16 %v1891
  %v1959 = vunpack.c.l.b16 %v1892
  %v1960 = vunpack.c.h.b16 %v1892
  %v1961 = vunpack.c.l.b16 %v1893
  %v1962 = vunpack.c.h.b16 %v1893
  %v1963 = vunpack.c.l.b16 %v1894
  %v1964 = vunpack.c.h.b16 %v1894
  %v1965 = vpack.c.b16 %v1937, %v1933
  %v1966 = vpack.c.b16 %v1938, %v1934
  %v1967 = vpack.c.b16 %v1939, %v1935
  %v1968 = vpack.c.b16 %v1940, %v1936
  %v1969 = vpack.c.b16 %v1945, %v1941
  %v1970 = vpack.c.b16 %v1946, %v1942
  %v1971 = vpack.c.b16 %v1947, %v1943
  %v1972 = vpack.c.b16 %v1948, %v1944
  %v1973 = vpack.c.b16 %v1953, %v1949
  %v1974 = vpack.c.b16 %v1954, %v1950
  %v1975 = vpack.c.b16 %v1955, %v1951
  %v1976 = vpack.c.b16 %v1956, %v1952
  %v1977 = vpack.c.b16 %v1961, %v1957
  %v1978 = vpack.c.b16 %v1962, %v1958
  %v1979 = vpack.c.b16 %v1963, %v1959
  %v1980 = vpack.c.b16 %v1964, %v1960
  %v1998 = vsel %vm533, %v1878, 0
  %2000 = vmatprep.subr.bf16.mxu0 0
  %2001 = vmatpush1.bf16.msra.mxu0 0
  %2002 = vmatprep.subr.bf16.mxu0 0
  %2003 = vmatpush1.bf16.msra.mxu0 0
  %2004 = vmatprep.subr.bf16.mxu0 0
  %2005 = vmatpush1.bf16.msra.mxu0 0
  %2006 = vmatprep.subr.bf16.mxu0 0
  %2007 = vmatpush1.bf16.msra.mxu0 0
  %2008 = vmatprep.subr.bf16.mxu0 %v1978
  %2009 = vmatpush1.bf16.msra.mxu0 %v1977
  %2010 = vmatprep.subr.bf16.mxu0 %v1974
  %2011 = vmatpush1.bf16.msra.mxu0 %v1973
  %2012 = vmatprep.subr.bf16.mxu0 %v1970
  %2013 = vmatpush1.bf16.msra.mxu0 %v1969
  %2014 = vmatprep.subr.bf16.mxu0 %v1966
  %2015 = vmatpush1.bf16.msra.mxu0 %v1965
  %2016 = vmatprep.subr.bf16.mxu0 0
  %2017 = vmatpush2.bf16.msra.mxu0 0
  %2018 = vmatprep.subr.bf16.mxu0 0
  %2019 = vmatpush2.bf16.msra.mxu0 0
  %2020 = vmatprep.subr.bf16.mxu0 0
  %2021 = vmatpush2.bf16.msra.mxu0 0
  %2022 = vmatprep.subr.bf16.mxu0 0
  %2023 = vmatpush2.bf16.msra.mxu0 0
  %2024 = vmatprep.subr.bf16.mxu0 0
  %2025 = vmatpush2.bf16.msra.mxu0 0
  %2026 = vmatprep.subr.bf16.mxu0 0
  %2027 = vmatpush2.bf16.msra.mxu0 0
  %2028 = vmatprep.subr.bf16.mxu0 0
  %2029 = vmatpush2.bf16.msra.mxu0 0
  %2030 = vmatprep.subr.bf16.mxu0 0
  %2031 = vmatpush2.bf16.msra.mxu0 0
  %2032 = vmatprep.mubr.bf16.mxu0 0
  %2033 = vmatmul.mubr.bf16.gmra.mxu0 %v1998
  %v2034 = vpop.f32.mrf.mxu0
  %v2035 = vadd.f32 %v1900, %v2034
  %v2036 = vpop.f32.mrf.mxu0
  %v2037 = vadd.f32 %v1904, %v2036
  %v2038 = vpop.f32.mrf.mxu0
  %v2039 = vpop.f32.mrf.mxu0
  %2040 = vdwg.mxu0
  %2041 = vmatprep.subr.bf16.mxu0 0
  %2042 = vmatpush1.bf16.msra.mxu0 0
  %2043 = vmatprep.subr.bf16.mxu0 0
  %2044 = vmatpush1.bf16.msra.mxu0 0
  %2045 = vmatprep.subr.bf16.mxu0 0
  %2046 = vmatpush1.bf16.msra.mxu0 0
  %2047 = vmatprep.subr.bf16.mxu0 0
  %2048 = vmatpush1.bf16.msra.mxu0 0
  %2049 = vmatprep.subr.bf16.mxu0 %v1980
  %2050 = vmatpush1.bf16.msra.mxu0 %v1979
  %2051 = vmatprep.subr.bf16.mxu0 %v1976
  %2052 = vmatpush1.bf16.msra.mxu0 %v1975
  %2053 = vmatprep.subr.bf16.mxu0 %v1972
  %2054 = vmatpush1.bf16.msra.mxu0 %v1971
  %2055 = vmatprep.subr.bf16.mxu0 %v1968
  %2056 = vmatpush1.bf16.msra.mxu0 %v1967
  %2057 = vmatprep.subr.bf16.mxu0 0
  %2058 = vmatpush2.bf16.msra.mxu0 0
  %2059 = vmatprep.subr.bf16.mxu0 0
  %2060 = vmatpush2.bf16.msra.mxu0 0
  %2061 = vmatprep.subr.bf16.mxu0 0
  %2062 = vmatpush2.bf16.msra.mxu0 0
  %2063 = vmatprep.subr.bf16.mxu0 0
  %2064 = vmatpush2.bf16.msra.mxu0 0
  %2065 = vmatprep.subr.bf16.mxu0 0
  %2066 = vmatpush2.bf16.msra.mxu0 0
  %2067 = vmatprep.subr.bf16.mxu0 0
  %2068 = vmatpush2.bf16.msra.mxu0 0
  %2069 = vmatprep.subr.bf16.mxu0 0
  %2070 = vmatpush2.bf16.msra.mxu0 0
  %2071 = vmatprep.subr.bf16.mxu0 0
  %2072 = vmatpush2.bf16.msra.mxu0 0
  %2073 = vmatprep.mubr.bf16.mxu0 0
  %2074 = vmatmul.mubr.bf16.gmra.mxu0 %v1998
  %v2075 = vpop.f32.mrf.mxu0
  %v2076 = vadd.f32 %v1908, %v2075
  %v2077 = vpop.f32.mrf.mxu0
  %v2078 = vadd.f32 %v1912, %v2077
  %v2079 = vpop.f32.mrf.mxu0
  %v2080 = vpop.f32.mrf.mxu0
  %2081 = vdwg.mxu0
  %v2082 = vmax.f32 %v2035, 0.0
  %v2083 = vmax.f32 %v2037, 0.0
  %v2084 = vmax.f32 %v2076, 0.0
  %v2085 = vmax.f32 %v2078, 0.0
  %v2086 = vpack.c.bf16 %v2082, %v2082
  %v2087 = vpack.c.bf16 %v2083, %v2083
  %v2088 = vpack.c.bf16 %v2084, %v2084
  %v2089 = vpack.c.bf16 %v2085, %v2085
  %v2090 = vld [vmem:[%s7] sm:$0xff]
  %v2091 = vld [vmem:[%s7 + $0x8] sm:$0xff]
  %v2092 = vld [vmem:[%s7 + $0x10] sm:$0xff]
  %v2093 = vld [vmem:[%s7 + $0x18] sm:$0xff]
  %v2094 = vld [vmem:[%s7 + $0x20] sm:$0xff]
  %v2095 = vld [vmem:[%s7 + $0x28] sm:$0xff]
  %v2096 = vld [vmem:[%s7 + $0x30] sm:$0xff]
  %v2097 = vld [vmem:[%s7 + $0x38] sm:$0xff]
  %v2098 = vld [vmem:[%s7 + $0x40] sm:$0xff]
  %v2099 = vld [vmem:[%s7 + $0x48] sm:$0xff]
  %v2100 = vld [vmem:[%s7 + $0x50] sm:$0xff]
  %v2101 = vld [vmem:[%s7 + $0x58] sm:$0xff]
  %v2102 = vld [vmem:[%s7 + $0x60] sm:$0xff]
  %v2103 = vld [vmem:[%s7 + $0x68] sm:$0xff]
  %v2104 = vld [vmem:[%s7 + $0x70] sm:$0xff]
  %v2105 = vld [vmem:[%s7 + $0x78] sm:$0xff]
  %v2106 = vld [vmem:[%s7 + $0x80] sm:$0xff]
  %v2107 = vld [vmem:[%s7 + $0x88] sm:$0xff]
  %v2108 = vld [vmem:[%s7 + $0x90] sm:$0xff]
  %v2109 = vld [vmem:[%s7 + $0x98] sm:$0xff]
  %v2110 = vld [vmem:[%s7 + $0xa0] sm:$0xff]
  %v2111 = vld [vmem:[%s7 + $0xa8] sm:$0xff]
  %v2112 = vld [vmem:[%s7 + $0xb0] sm:$0xff]
  %v2113 = vld [vmem:[%s7 + $0xb8] sm:$0xff]
  %v2114 = vld [vmem:[%s7 + $0xc0] sm:$0xff]
  %v2115 = vld [vmem:[%s7 + $0xc8] sm:$0xff]
  %v2116 = vld [vmem:[%s7 + $0xd0] sm:$0xff]
  %v2117 = vld [vmem:[%s7 + $0xd8] sm:$0xff]
  %v2118 = vld [vmem:[%s7 + $0xe0] sm:$0xff]
  %v2119 = vld [vmem:[%s7 + $0xe8] sm:$0xff]
  %v2120 = vld [vmem:[%s7 + $0xf0] sm:$0xff]
  %v2121 = vld [vmem:[%s7 + $0xf8] sm:$0xff]
  %v2122 = vld [vmem:[%s7 + $0x100] sm:$0xff]
  %v2123 = vld [vmem:[%s7 + $0x108] sm:$0xff]
  %v2124 = vld [vmem:[%s7 + $0x110] sm:$0xff]
  %v2125 = vld [vmem:[%s7 + $0x118] sm:$0xff]
  %v2126 = vld [vmem:[%s7 + $0x120] sm:$0xff]
  %v2127 = vld [vmem:[%s7 + $0x128] sm:$0xff]
  %v2128 = vld [vmem:[%s7 + $0x130] sm:$0xff]
  %v2129 = vld [vmem:[%s7 + $0x138] sm:$0xff]
  %v2130 = vld [vmem:[%s7 + $0x140] sm:$0xff]
  %v2131 = vld [vmem:[%s7 + $0x148] sm:$0xff]
  %v2132 = vld [vmem:[%s7 + $0x150] sm:$0xff]
  %v2133 = vld [vmem:[%s7 + $0x158] sm:$0xff]
  %v2134 = vld [vmem:[%s7 + $0x160] sm:$0xff]
  %v2135 = vld [vmem:[%s7 + $0x168] sm:$0xff]
  %v2136 = vld [vmem:[%s7 + $0x170] sm:$0xff]
  %v2137 = vld [vmem:[%s7 + $0x178] sm:$0xff]
  %v2138 = vld [vmem:[%s7 + $0x180] sm:$0xff]
  %v2139 = vld [vmem:[%s7 + $0x188] sm:$0xff]
  %v2140 = vld [vmem:[%s7 + $0x190] sm:$0xff]
  %v2141 = vld [vmem:[%s7 + $0x198] sm:$0xff]
  %v2142 = vld [vmem:[%s7 + $0x1a0] sm:$0xff]
  %v2143 = vld [vmem:[%s7 + $0x1a8] sm:$0xff]
  %v2144 = vld [vmem:[%s7 + $0x1b0] sm:$0xff]
  %v2145 = vld [vmem:[%s7 + $0x1b8] sm:$0xff]
  %v2146 = vld [vmem:[%s7 + $0x1c0] sm:$0xff]
  %v2147 = vld [vmem:[%s7 + $0x1c8] sm:$0xff]
  %v2148 = vld [vmem:[%s7 + $0x1d0] sm:$0xff]
  %v2149 = vld [vmem:[%s7 + $0x1d8] sm:$0xff]
  %v2150 = vld [vmem:[%s7 + $0x1e0] sm:$0xff]
  %v2151 = vld [vmem:[%s7 + $0x1e8] sm:$0xff]
  %v2152 = vld [vmem:[%s7 + $0x1f0] sm:$0xff]
  %v2153 = vld [vmem:[%s7 + $0x1f8] sm:$0xff]
  %v2154 = vld [vmem:[%s7 + $0x200] sm:$0xff]
  %v2155 = vld [vmem:[%s7 + $0x208] sm:$0xff]
  %v2156 = vld [vmem:[%s7 + $0x210] sm:$0xff]
  %v2157 = vld [vmem:[%s7 + $0x218] sm:$0xff]
  %v2158 = vld [vmem:[%s7 + $0x220] sm:$0xff]
  %v2159 = vld [vmem:[%s7 + $0x228] sm:$0xff]
  %v2160 = vld [vmem:[%s7 + $0x230] sm:$0xff]
  %v2161 = vld [vmem:[%s7 + $0x238] sm:$0xff]
  %v2162 = vld [vmem:[%s7 + $0x240] sm:$0xff]
  %v2163 = vld [vmem:[%s7 + $0x248] sm:$0xff]
  %v2164 = vld [vmem:[%s7 + $0x250] sm:$0xff]
  %v2165 = vld [vmem:[%s7 + $0x258] sm:$0xff]
  %v2166 = vld [vmem:[%s7 + $0x260] sm:$0xff]
  %v2167 = vld [vmem:[%s7 + $0x268] sm:$0xff]
  %v2168 = vld [vmem:[%s7 + $0x270] sm:$0xff]
  %v2169 = vld [vmem:[%s7 + $0x278] sm:$0xff]
  %v2170 = vld [vmem:[%s7 + $0x280] sm:$0xff]
  %v2171 = vld [vmem:[%s7 + $0x288] sm:$0xff]
  %v2172 = vld [vmem:[%s7 + $0x290] sm:$0xff]
  %v2173 = vld [vmem:[%s7 + $0x298] sm:$0xff]
  %v2174 = vld [vmem:[%s7 + $0x2a0] sm:$0xff]
  %v2175 = vld [vmem:[%s7 + $0x2a8] sm:$0xff]
  %v2176 = vld [vmem:[%s7 + $0x2b0] sm:$0xff]
  %v2177 = vld [vmem:[%s7 + $0x2b8] sm:$0xff]
  %v2178 = vld [vmem:[%s7 + $0x2c0] sm:$0xff]
  %v2179 = vld [vmem:[%s7 + $0x2c8] sm:$0xff]
  %v2180 = vld [vmem:[%s7 + $0x2d0] sm:$0xff]
  %v2181 = vld [vmem:[%s7 + $0x2d8] sm:$0xff]
  %v2182 = vld [vmem:[%s7 + $0x2e0] sm:$0xff]
  %v2183 = vld [vmem:[%s7 + $0x2e8] sm:$0xff]
  %v2184 = vld [vmem:[%s7 + $0x2f0] sm:$0xff]
  %v2185 = vld [vmem:[%s7 + $0x2f8] sm:$0xff]
  %v2186 = vld [vmem:[%s7 + $0x300] sm:$0xff]
  %v2187 = vld [vmem:[%s7 + $0x308] sm:$0xff]
  %v2188 = vld [vmem:[%s7 + $0x310] sm:$0xff]
  %v2189 = vld [vmem:[%s7 + $0x318] sm:$0xff]
  %v2190 = vld [vmem:[%s7 + $0x320] sm:$0xff]
  %v2191 = vld [vmem:[%s7 + $0x328] sm:$0xff]
  %v2192 = vld [vmem:[%s7 + $0x330] sm:$0xff]
  %v2193 = vld [vmem:[%s7 + $0x338] sm:$0xff]
  %v2194 = vld [vmem:[%s7 + $0x340] sm:$0xff]
  %v2195 = vld [vmem:[%s7 + $0x348] sm:$0xff]
  %v2196 = vld [vmem:[%s7 + $0x350] sm:$0xff]
  %v2197 = vld [vmem:[%s7 + $0x358] sm:$0xff]
  %v2198 = vld [vmem:[%s7 + $0x360] sm:$0xff]
  %v2199 = vld [vmem:[%s7 + $0x368] sm:$0xff]
  %v2200 = vld [vmem:[%s7 + $0x370] sm:$0xff]
  %v2201 = vld [vmem:[%s7 + $0x378] sm:$0xff]
  %v2202 = vld [vmem:[%s7 + $0x380] sm:$0xff]
  %v2203 = vld [vmem:[%s7 + $0x388] sm:$0xff]
  %v2204 = vld [vmem:[%s7 + $0x390] sm:$0xff]
  %v2205 = vld [vmem:[%s7 + $0x398] sm:$0xff]
  %v2206 = vld [vmem:[%s7 + $0x3a0] sm:$0xff]
  %v2207 = vld [vmem:[%s7 + $0x3a8] sm:$0xff]
  %v2208 = vld [vmem:[%s7 + $0x3b0] sm:$0xff]
  %v2209 = vld [vmem:[%s7 + $0x3b8] sm:$0xff]
  %v2210 = vld [vmem:[%s7 + $0x3c0] sm:$0xff]
  %v2211 = vld [vmem:[%s7 + $0x3c8] sm:$0xff]
  %v2212 = vld [vmem:[%s7 + $0x3d0] sm:$0xff]
  %v2213 = vld [vmem:[%s7 + $0x3d8] sm:$0xff]
  %v2214 = vld [vmem:[%s7 + $0x3e0] sm:$0xff]
  %v2215 = vld [vmem:[%s7 + $0x3e8] sm:$0xff]
  %v2216 = vld [vmem:[%s7 + $0x3f0] sm:$0xff]
  %v2217 = vld [vmem:[%s7 + $0x3f8] sm:$0xff]
  %v2218 = vld [vmem:[%s8] sm:$0xf]
  %v2220 = vlaneseq
  %v2221 = vshrl.u32 %v2220, 7
  %v2222 = vsub.s32 0, %v2221
  %v2223 = vrot.slane %v2218, %v2222
  %v2224 = vlaneseq
  %v2225 = vshrl.u32 %v2224, 7
  %v2226 = vsub.s32 1, %v2225
  %v2227 = vrot.slane %v2218, %v2226
  %v2228 = vlaneseq
  %v2229 = vshrl.u32 %v2228, 7
  %v2230 = vsub.s32 2, %v2229
  %v2231 = vrot.slane %v2218, %v2230
  %v2232 = vlaneseq
  %v2233 = vshrl.u32 %v2232, 7
  %v2234 = vsub.s32 3, %v2233
  %v2235 = vrot.slane %v2218, %v2234
  %v2368 = vunpack.c.l.b16 %v2090
  %v2369 = vunpack.c.h.b16 %v2090
  %v2370 = vunpack.c.l.b16 %v2091
  %v2371 = vunpack.c.h.b16 %v2091
  %v2372 = vunpack.c.l.b16 %v2092
  %v2373 = vunpack.c.h.b16 %v2092
  %v2374 = vunpack.c.l.b16 %v2093
  %v2375 = vunpack.c.h.b16 %v2093
  %v2376 = vunpack.c.l.b16 %v2094
  %v2377 = vunpack.c.h.b16 %v2094
  %v2378 = vunpack.c.l.b16 %v2095
  %v2379 = vunpack.c.h.b16 %v2095
  %v2380 = vunpack.c.l.b16 %v2096
  %v2381 = vunpack.c.h.b16 %v2096
  %v2382 = vunpack.c.l.b16 %v2097
  %v2383 = vunpack.c.h.b16 %v2097
  %v2384 = vunpack.c.l.b16 %v2098
  %v2385 = vunpack.c.h.b16 %v2098
  %v2386 = vunpack.c.l.b16 %v2099
  %v2387 = vunpack.c.h.b16 %v2099
  %v2388 = vunpack.c.l.b16 %v2100
  %v2389 = vunpack.c.h.b16 %v2100
  %v2390 = vunpack.c.l.b16 %v2101
  %v2391 = vunpack.c.h.b16 %v2101
  %v2392 = vunpack.c.l.b16 %v2102
  %v2393 = vunpack.c.h.b16 %v2102
  %v2394 = vunpack.c.l.b16 %v2103
  %v2395 = vunpack.c.h.b16 %v2103
  %v2396 = vunpack.c.l.b16 %v2104
  %v2397 = vunpack.c.h.b16 %v2104
  %v2398 = vunpack.c.l.b16 %v2105
  %v2399 = vunpack.c.h.b16 %v2105
  %v2400 = vunpack.c.l.b16 %v2106
  %v2401 = vunpack.c.h.b16 %v2106
  %v2402 = vunpack.c.l.b16 %v2107
  %v2403 = vunpack.c.h.b16 %v2107
  %v2404 = vunpack.c.l.b16 %v2108
  %v2405 = vunpack.c.h.b16 %v2108
  %v2406 = vunpack.c.l.b16 %v2109
  %v2407 = vunpack.c.h.b16 %v2109
  %v2408 = vunpack.c.l.b16 %v2110
  %v2409 = vunpack.c.h.b16 %v2110
  %v2410 = vunpack.c.l.b16 %v2111
  %v2411 = vunpack.c.h.b16 %v2111
  %v2412 = vunpack.c.l.b16 %v2112
  %v2413 = vunpack.c.h.b16 %v2112
  %v2414 = vunpack.c.l.b16 %v2113
  %v2415 = vunpack.c.h.b16 %v2113
  %v2416 = vunpack.c.l.b16 %v2114
  %v2417 = vunpack.c.h.b16 %v2114
  %v2418 = vunpack.c.l.b16 %v2115
  %v2419 = vunpack.c.h.b16 %v2115
  %v2420 = vunpack.c.l.b16 %v2116
  %v2421 = vunpack.c.h.b16 %v2116
  %v2422 = vunpack.c.l.b16 %v2117
  %v2423 = vunpack.c.h.b16 %v2117
  %v2424 = vunpack.c.l.b16 %v2118
  %v2425 = vunpack.c.h.b16 %v2118
  %v2426 = vunpack.c.l.b16 %v2119
  %v2427 = vunpack.c.h.b16 %v2119
  %v2428 = vunpack.c.l.b16 %v2120
  %v2429 = vunpack.c.h.b16 %v2120
  %v2430 = vunpack.c.l.b16 %v2121
  %v2431 = vunpack.c.h.b16 %v2121
  %v2432 = vunpack.c.l.b16 %v2122
  %v2433 = vunpack.c.h.b16 %v2122
  %v2434 = vunpack.c.l.b16 %v2123
  %v2435 = vunpack.c.h.b16 %v2123
  %v2436 = vunpack.c.l.b16 %v2124
  %v2437 = vunpack.c.h.b16 %v2124
  %v2438 = vunpack.c.l.b16 %v2125
  %v2439 = vunpack.c.h.b16 %v2125
  %v2440 = vunpack.c.l.b16 %v2126
  %v2441 = vunpack.c.h.b16 %v2126
  %v2442 = vunpack.c.l.b16 %v2127
  %v2443 = vunpack.c.h.b16 %v2127
  %v2444 = vunpack.c.l.b16 %v2128
  %v2445 = vunpack.c.h.b16 %v2128
  %v2446 = vunpack.c.l.b16 %v2129
  %v2447 = vunpack.c.h.b16 %v2129
  %v2448 = vunpack.c.l.b16 %v2130
  %v2449 = vunpack.c.h.b16 %v2130
  %v2450 = vunpack.c.l.b16 %v2131
  %v2451 = vunpack.c.h.b16 %v2131
  %v2452 = vunpack.c.l.b16 %v2132
  %v2453 = vunpack.c.h.b16 %v2132
  %v2454 = vunpack.c.l.b16 %v2133
  %v2455 = vunpack.c.h.b16 %v2133
  %v2456 = vunpack.c.l.b16 %v2134
  %v2457 = vunpack.c.h.b16 %v2134
  %v2458 = vunpack.c.l.b16 %v2135
  %v2459 = vunpack.c.h.b16 %v2135
  %v2460 = vunpack.c.l.b16 %v2136
  %v2461 = vunpack.c.h.b16 %v2136
  %v2462 = vunpack.c.l.b16 %v2137
  %v2463 = vunpack.c.h.b16 %v2137
  %v2464 = vunpack.c.l.b16 %v2138
  %v2465 = vunpack.c.h.b16 %v2138
  %v2466 = vunpack.c.l.b16 %v2139
  %v2467 = vunpack.c.h.b16 %v2139
  %v2468 = vunpack.c.l.b16 %v2140
  %v2469 = vunpack.c.h.b16 %v2140
  %v2470 = vunpack.c.l.b16 %v2141
  %v2471 = vunpack.c.h.b16 %v2141
  %v2472 = vunpack.c.l.b16 %v2142
  %v2473 = vunpack.c.h.b16 %v2142
  %v2474 = vunpack.c.l.b16 %v2143
  %v2475 = vunpack.c.h.b16 %v2143
  %v2476 = vunpack.c.l.b16 %v2144
  %v2477 = vunpack.c.h.b16 %v2144
  %v2478 = vunpack.c.l.b16 %v2145
  %v2479 = vunpack.c.h.b16 %v2145
  %v2480 = vunpack.c.l.b16 %v2146
  %v2481 = vunpack.c.h.b16 %v2146
  %v2482 = vunpack.c.l.b16 %v2147
  %v2483 = vunpack.c.h.b16 %v2147
  %v2484 = vunpack.c.l.b16 %v2148
  %v2485 = vunpack.c.h.b16 %v2148
  %v2486 = vunpack.c.l.b16 %v2149
  %v2487 = vunpack.c.h.b16 %v2149
  %v2488 = vunpack.c.l.b16 %v2150
  %v2489 = vunpack.c.h.b16 %v2150
  %v2490 = vunpack.c.l.b16 %v2151
  %v2491 = vunpack.c.h.b16 %v2151
  %v2492 = vunpack.c.l.b16 %v2152
  %v2493 = vunpack.c.h.b16 %v2152
  %v2494 = vunpack.c.l.b16 %v2153
  %v2495 = vunpack.c.h.b16 %v2153
  %v2496 = vunpack.c.l.b16 %v2154
  %v2497 = vunpack.c.h.b16 %v2154
  %v2498 = vunpack.c.l.b16 %v2155
  %v2499 = vunpack.c.h.b16 %v2155
  %v2500 = vunpack.c.l.b16 %v2156
  %v2501 = vunpack.c.h.b16 %v2156
  %v2502 = vunpack.c.l.b16 %v2157
  %v2503 = vunpack.c.h.b16 %v2157
  %v2504 = vunpack.c.l.b16 %v2158
  %v2505 = vunpack.c.h.b16 %v2158
  %v2506 = vunpack.c.l.b16 %v2159
  %v2507 = vunpack.c.h.b16 %v2159
  %v2508 = vunpack.c.l.b16 %v2160
  %v2509 = vunpack.c.h.b16 %v2160
  %v2510 = vunpack.c.l.b16 %v2161
  %v2511 = vunpack.c.h.b16 %v2161
  %v2512 = vunpack.c.l.b16 %v2162
  %v2513 = vunpack.c.h.b16 %v2162
  %v2514 = vunpack.c.l.b16 %v2163
  %v2515 = vunpack.c.h.b16 %v2163
  %v2516 = vunpack.c.l.b16 %v2164
  %v2517 = vunpack.c.h.b16 %v2164
  %v2518 = vunpack.c.l.b16 %v2165
  %v2519 = vunpack.c.h.b16 %v2165
  %v2520 = vunpack.c.l.b16 %v2166
  %v2521 = vunpack.c.h.b16 %v2166
  %v2522 = vunpack.c.l.b16 %v2167
  %v2523 = vunpack.c.h.b16 %v2167
  %v2524 = vunpack.c.l.b16 %v2168
  %v2525 = vunpack.c.h.b16 %v2168
  %v2526 = vunpack.c.l.b16 %v2169
  %v2527 = vunpack.c.h.b16 %v2169
  %v2528 = vunpack.c.l.b16 %v2170
  %v2529 = vunpack.c.h.b16 %v2170
  %v2530 = vunpack.c.l.b16 %v2171
  %v2531 = vunpack.c.h.b16 %v2171
  %v2532 = vunpack.c.l.b16 %v2172
  %v2533 = vunpack.c.h.b16 %v2172
  %v2534 = vunpack.c.l.b16 %v2173
  %v2535 = vunpack.c.h.b16 %v2173
  %v2536 = vunpack.c.l.b16 %v2174
  %v2537 = vunpack.c.h.b16 %v2174
  %v2538 = vunpack.c.l.b16 %v2175
  %v2539 = vunpack.c.h.b16 %v2175
  %v2540 = vunpack.c.l.b16 %v2176
  %v2541 = vunpack.c.h.b16 %v2176
  %v2542 = vunpack.c.l.b16 %v2177
  %v2543 = vunpack.c.h.b16 %v2177
  %v2544 = vunpack.c.l.b16 %v2178
  %v2545 = vunpack.c.h.b16 %v2178
  %v2546 = vunpack.c.l.b16 %v2179
  %v2547 = vunpack.c.h.b16 %v2179
  %v2548 = vunpack.c.l.b16 %v2180
  %v2549 = vunpack.c.h.b16 %v2180
  %v2550 = vunpack.c.l.b16 %v2181
  %v2551 = vunpack.c.h.b16 %v2181
  %v2552 = vunpack.c.l.b16 %v2182
  %v2553 = vunpack.c.h.b16 %v2182
  %v2554 = vunpack.c.l.b16 %v2183
  %v2555 = vunpack.c.h.b16 %v2183
  %v2556 = vunpack.c.l.b16 %v2184
  %v2557 = vunpack.c.h.b16 %v2184
  %v2558 = vunpack.c.l.b16 %v2185
  %v2559 = vunpack.c.h.b16 %v2185
  %v2560 = vunpack.c.l.b16 %v2186
  %v2561 = vunpack.c.h.b16 %v2186
  %v2562 = vunpack.c.l.b16 %v2187
  %v2563 = vunpack.c.h.b16 %v2187
  %v2564 = vunpack.c.l.b16 %v2188
  %v2565 = vunpack.c.h.b16 %v2188
  %v2566 = vunpack.c.l.b16 %v2189
  %v2567 = vunpack.c.h.b16 %v2189
  %v2568 = vunpack.c.l.b16 %v2190
  %v2569 = vunpack.c.h.b16 %v2190
  %v2570 = vunpack.c.l.b16 %v2191
  %v2571 = vunpack.c.h.b16 %v2191
  %v2572 = vunpack.c.l.b16 %v2192
  %v2573 = vunpack.c.h.b16 %v2192
  %v2574 = vunpack.c.l.b16 %v2193
  %v2575 = vunpack.c.h.b16 %v2193
  %v2576 = vunpack.c.l.b16 %v2194
  %v2577 = vunpack.c.h.b16 %v2194
  %v2578 = vunpack.c.l.b16 %v2195
  %v2579 = vunpack.c.h.b16 %v2195
  %v2580 = vunpack.c.l.b16 %v2196
  %v2581 = vunpack.c.h.b16 %v2196
  %v2582 = vunpack.c.l.b16 %v2197
  %v2583 = vunpack.c.h.b16 %v2197
  %v2584 = vunpack.c.l.b16 %v2198
  %v2585 = vunpack.c.h.b16 %v2198
  %v2586 = vunpack.c.l.b16 %v2199
  %v2587 = vunpack.c.h.b16 %v2199
  %v2588 = vunpack.c.l.b16 %v2200
  %v2589 = vunpack.c.h.b16 %v2200
  %v2590 = vunpack.c.l.b16 %v2201
  %v2591 = vunpack.c.h.b16 %v2201
  %v2592 = vunpack.c.l.b16 %v2202
  %v2593 = vunpack.c.h.b16 %v2202
  %v2594 = vunpack.c.l.b16 %v2203
  %v2595 = vunpack.c.h.b16 %v2203
  %v2596 = vunpack.c.l.b16 %v2204
  %v2597 = vunpack.c.h.b16 %v2204
  %v2598 = vunpack.c.l.b16 %v2205
  %v2599 = vunpack.c.h.b16 %v2205
  %v2600 = vunpack.c.l.b16 %v2206
  %v2601 = vunpack.c.h.b16 %v2206
  %v2602 = vunpack.c.l.b16 %v2207
  %v2603 = vunpack.c.h.b16 %v2207
  %v2604 = vunpack.c.l.b16 %v2208
  %v2605 = vunpack.c.h.b16 %v2208
  %v2606 = vunpack.c.l.b16 %v2209
  %v2607 = vunpack.c.h.b16 %v2209
  %v2608 = vunpack.c.l.b16 %v2210
  %v2609 = vunpack.c.h.b16 %v2210
  %v2610 = vunpack.c.l.b16 %v2211
  %v2611 = vunpack.c.h.b16 %v2211
  %v2612 = vunpack.c.l.b16 %v2212
  %v2613 = vunpack.c.h.b16 %v2212
  %v2614 = vunpack.c.l.b16 %v2213
  %v2615 = vunpack.c.h.b16 %v2213
  %v2616 = vunpack.c.l.b16 %v2214
  %v2617 = vunpack.c.h.b16 %v2214
  %v2618 = vunpack.c.l.b16 %v2215
  %v2619 = vunpack.c.h.b16 %v2215
  %v2620 = vunpack.c.l.b16 %v2216
  %v2621 = vunpack.c.h.b16 %v2216
  %v2622 = vunpack.c.l.b16 %v2217
  %v2623 = vunpack.c.h.b16 %v2217
  %v2624 = vpack.c.b16 %v2372, %v2368
  %v2625 = vpack.c.b16 %v2373, %v2369
  %v2626 = vpack.c.b16 %v2374, %v2370
  %v2627 = vpack.c.b16 %v2375, %v2371
  %v2628 = vpack.c.b16 %v2380, %v2376
  %v2629 = vpack.c.b16 %v2381, %v2377
  %v2630 = vpack.c.b16 %v2382, %v2378
  %v2631 = vpack.c.b16 %v2383, %v2379
  %v2632 = vpack.c.b16 %v2388, %v2384
  %v2633 = vpack.c.b16 %v2389, %v2385
  %v2634 = vpack.c.b16 %v2390, %v2386
  %v2635 = vpack.c.b16 %v2391, %v2387
  %v2636 = vpack.c.b16 %v2396, %v2392
  %v2637 = vpack.c.b16 %v2397, %v2393
  %v2638 = vpack.c.b16 %v2398, %v2394
  %v2639 = vpack.c.b16 %v2399, %v2395
  %v2640 = vpack.c.b16 %v2404, %v2400
  %v2641 = vpack.c.b16 %v2405, %v2401
  %v2642 = vpack.c.b16 %v2406, %v2402
  %v2643 = vpack.c.b16 %v2407, %v2403
  %v2644 = vpack.c.b16 %v2412, %v2408
  %v2645 = vpack.c.b16 %v2413, %v2409
  %v2646 = vpack.c.b16 %v2414, %v2410
  %v2647 = vpack.c.b16 %v2415, %v2411
  %v2648 = vpack.c.b16 %v2420, %v2416
  %v2649 = vpack.c.b16 %v2421, %v2417
  %v2650 = vpack.c.b16 %v2422, %v2418
  %v2651 = vpack.c.b16 %v2423, %v2419
  %v2652 = vpack.c.b16 %v2428, %v2424
  %v2653 = vpack.c.b16 %v2429, %v2425
  %v2654 = vpack.c.b16 %v2430, %v2426
  %v2655 = vpack.c.b16 %v2431, %v2427
  %v2656 = vpack.c.b16 %v2436, %v2432
  %v2657 = vpack.c.b16 %v2437, %v2433
  %v2658 = vpack.c.b16 %v2438, %v2434
  %v2659 = vpack.c.b16 %v2439, %v2435
  %v2660 = vpack.c.b16 %v2444, %v2440
  %v2661 = vpack.c.b16 %v2445, %v2441
  %v2662 = vpack.c.b16 %v2446, %v2442
  %v2663 = vpack.c.b16 %v2447, %v2443
  %v2664 = vpack.c.b16 %v2452, %v2448
  %v2665 = vpack.c.b16 %v2453, %v2449
  %v2666 = vpack.c.b16 %v2454, %v2450
  %v2667 = vpack.c.b16 %v2455, %v2451
  %v2668 = vpack.c.b16 %v2460, %v2456
  %v2669 = vpack.c.b16 %v2461, %v2457
  %v2670 = vpack.c.b16 %v2462, %v2458
  %v2671 = vpack.c.b16 %v2463, %v2459
  %v2672 = vpack.c.b16 %v2468, %v2464
  %v2673 = vpack.c.b16 %v2469, %v2465
  %v2674 = vpack.c.b16 %v2470, %v2466
  %v2675 = vpack.c.b16 %v2471, %v2467
  %v2676 = vpack.c.b16 %v2476, %v2472
  %v2677 = vpack.c.b16 %v2477, %v2473
  %v2678 = vpack.c.b16 %v2478, %v2474
  %v2679 = vpack.c.b16 %v2479, %v2475
  %v2680 = vpack.c.b16 %v2484, %v2480
  %v2681 = vpack.c.b16 %v2485, %v2481
  %v2682 = vpack.c.b16 %v2486, %v2482
  %v2683 = vpack.c.b16 %v2487, %v2483
  %v2684 = vpack.c.b16 %v2492, %v2488
  %v2685 = vpack.c.b16 %v2493, %v2489
  %v2686 = vpack.c.b16 %v2494, %v2490
  %v2687 = vpack.c.b16 %v2495, %v2491
  %v2688 = vpack.c.b16 %v2500, %v2496
  %v2689 = vpack.c.b16 %v2501, %v2497
  %v2690 = vpack.c.b16 %v2502, %v2498
  %v2691 = vpack.c.b16 %v2503, %v2499
  %v2692 = vpack.c.b16 %v2508, %v2504
  %v2693 = vpack.c.b16 %v2509, %v2505
  %v2694 = vpack.c.b16 %v2510, %v2506
  %v2695 = vpack.c.b16 %v2511, %v2507
  %v2696 = vpack.c.b16 %v2516, %v2512
  %v2697 = vpack.c.b16 %v2517, %v2513
  %v2698 = vpack.c.b16 %v2518, %v2514
  %v2699 = vpack.c.b16 %v2519, %v2515
  %v2700 = vpack.c.b16 %v2524, %v2520
  %v2701 = vpack.c.b16 %v2525, %v2521
  %v2702 = vpack.c.b16 %v2526, %v2522
  %v2703 = vpack.c.b16 %v2527, %v2523
  %v2704 = vpack.c.b16 %v2532, %v2528
  %v2705 = vpack.c.b16 %v2533, %v2529
  %v2706 = vpack.c.b16 %v2534, %v2530
  %v2707 = vpack.c.b16 %v2535, %v2531
  %v2708 = vpack.c.b16 %v2540, %v2536
  %v2709 = vpack.c.b16 %v2541, %v2537
  %v2710 = vpack.c.b16 %v2542, %v2538
  %v2711 = vpack.c.b16 %v2543, %v2539
  %v2712 = vpack.c.b16 %v2548, %v2544
  %v2713 = vpack.c.b16 %v2549, %v2545
  %v2714 = vpack.c.b16 %v2550, %v2546
  %v2715 = vpack.c.b16 %v2551, %v2547
  %v2716 = vpack.c.b16 %v2556, %v2552
  %v2717 = vpack.c.b16 %v2557, %v2553
  %v2718 = vpack.c.b16 %v2558, %v2554
  %v2719 = vpack.c.b16 %v2559, %v2555
  %v2720 = vpack.c.b16 %v2564, %v2560
  %v2721 = vpack.c.b16 %v2565, %v2561
  %v2722 = vpack.c.b16 %v2566, %v2562
  %v2723 = vpack.c.b16 %v2567, %v2563
  %v2724 = vpack.c.b16 %v2572, %v2568
  %v2725 = vpack.c.b16 %v2573, %v2569
  %v2726 = vpack.c.b16 %v2574, %v2570
  %v2727 = vpack.c.b16 %v2575, %v2571
  %v2728 = vpack.c.b16 %v2580, %v2576
  %v2729 = vpack.c.b16 %v2581, %v2577
  %v2730 = vpack.c.b16 %v2582, %v2578
  %v2731 = vpack.c.b16 %v2583, %v2579
  %v2732 = vpack.c.b16 %v2588, %v2584
  %v2733 = vpack.c.b16 %v2589, %v2585
  %v2734 = vpack.c.b16 %v2590, %v2586
  %v2735 = vpack.c.b16 %v2591, %v2587
  %v2736 = vpack.c.b16 %v2596, %v2592
  %v2737 = vpack.c.b16 %v2597, %v2593
  %v2738 = vpack.c.b16 %v2598, %v2594
  %v2739 = vpack.c.b16 %v2599, %v2595
  %v2740 = vpack.c.b16 %v2604, %v2600
  %v2741 = vpack.c.b16 %v2605, %v2601
  %v2742 = vpack.c.b16 %v2606, %v2602
  %v2743 = vpack.c.b16 %v2607, %v2603
  %v2744 = vpack.c.b16 %v2612, %v2608
  %v2745 = vpack.c.b16 %v2613, %v2609
  %v2746 = vpack.c.b16 %v2614, %v2610
  %v2747 = vpack.c.b16 %v2615, %v2611
  %v2748 = vpack.c.b16 %v2620, %v2616
  %v2749 = vpack.c.b16 %v2621, %v2617
  %v2750 = vpack.c.b16 %v2622, %v2618
  %v2751 = vpack.c.b16 %v2623, %v2619
  %2880 = vmatprep.subr.bf16.mxu0 %v2653
  %2881 = vmatpush1.bf16.msra.mxu0 %v2652
  %2882 = vmatprep.subr.bf16.mxu0 %v2649
  %2883 = vmatpush1.bf16.msra.mxu0 %v2648
  %2884 = vmatprep.subr.bf16.mxu0 %v2645
  %2885 = vmatpush1.bf16.msra.mxu0 %v2644
  %2886 = vmatprep.subr.bf16.mxu0 %v2641
  %2887 = vmatpush1.bf16.msra.mxu0 %v2640
  %2888 = vmatprep.subr.bf16.mxu0 %v2637
  %2889 = vmatpush1.bf16.msra.mxu0 %v2636
  %2890 = vmatprep.subr.bf16.mxu0 %v2633
  %2891 = vmatpush1.bf16.msra.mxu0 %v2632
  %2892 = vmatprep.subr.bf16.mxu0 %v2629
  %2893 = vmatpush1.bf16.msra.mxu0 %v2628
  %2894 = vmatprep.subr.bf16.mxu0 %v2625
  %2895 = vmatpush1.bf16.msra.mxu0 %v2624
  %2896 = vmatprep.subr.bf16.mxu0 %v2685
  %2897 = vmatpush2.bf16.msra.mxu0 %v2684
  %2898 = vmatprep.subr.bf16.mxu0 %v2681
  %2899 = vmatpush2.bf16.msra.mxu0 %v2680
  %2900 = vmatprep.subr.bf16.mxu0 %v2677
  %2901 = vmatpush2.bf16.msra.mxu0 %v2676
  %2902 = vmatprep.subr.bf16.mxu0 %v2673
  %2903 = vmatpush2.bf16.msra.mxu0 %v2672
  %2904 = vmatprep.subr.bf16.mxu0 %v2669
  %2905 = vmatpush2.bf16.msra.mxu0 %v2668
  %2906 = vmatprep.subr.bf16.mxu0 %v2665
  %2907 = vmatpush2.bf16.msra.mxu0 %v2664
  %2908 = vmatprep.subr.bf16.mxu0 %v2661
  %2909 = vmatpush2.bf16.msra.mxu0 %v2660
  %2910 = vmatprep.subr.bf16.mxu0 %v2657
  %2911 = vmatpush2.bf16.msra.mxu0 %v2656
  %2912 = vmatprep.mubr.bf16.mxu0 %v2087
  %2913 = vmatmul.mubr.bf16.gmra.mxu0 %v2086
  %v2914 = vpop.f32.mrf.mxu0
  %v2915 = vadd.f32 %v2223, %v2914
  %v2916 = vpop.f32.mrf.mxu0
  %v2917 = vadd.f32 %v2227, %v2916
  %v2918 = vpop.f32.mrf.mxu0
  %v2919 = vpop.f32.mrf.mxu0
  %2920 = vdwg.mxu0
  %2921 = vmatprep.subr.bf16.mxu0 %v2717
  %2922 = vmatpush1.bf16.msra.mxu0 %v2716
  %2923 = vmatprep.subr.bf16.mxu0 %v2713
  %2924 = vmatpush1.bf16.msra.mxu0 %v2712
  %2925 = vmatprep.subr.bf16.mxu0 %v2709
  %2926 = vmatpush1.bf16.msra.mxu0 %v2708
  %2927 = vmatprep.subr.bf16.mxu0 %v2705
  %2928 = vmatpush1.bf16.msra.mxu0 %v2704
  %2929 = vmatprep.subr.bf16.mxu0 %v2701
  %2930 = vmatpush1.bf16.msra.mxu0 %v2700
  %2931 = vmatprep.subr.bf16.mxu0 %v2697
  %2932 = vmatpush1.bf16.msra.mxu0 %v2696
  %2933 = vmatprep.subr.bf16.mxu0 %v2693
  %2934 = vmatpush1.bf16.msra.mxu0 %v2692
  %2935 = vmatprep.subr.bf16.mxu0 %v2689
  %2936 = vmatpush1.bf16.msra.mxu0 %v2688
  %2937 = vmatprep.subr.bf16.mxu0 %v2749
  %2938 = vmatpush2.bf16.msra.mxu0 %v2748
  %2939 = vmatprep.subr.bf16.mxu0 %v2745
  %2940 = vmatpush2.bf16.msra.mxu0 %v2744
  %2941 = vmatprep.subr.bf16.mxu0 %v2741
  %2942 = vmatpush2.bf16.msra.mxu0 %v2740
  %2943 = vmatprep.subr.bf16.mxu0 %v2737
  %2944 = vmatpush2.bf16.msra.mxu0 %v2736
  %2945 = vmatprep.subr.bf16.mxu0 %v2733
  %2946 = vmatpush2.bf16.msra.mxu0 %v2732
  %2947 = vmatprep.subr.bf16.mxu0 %v2729
  %2948 = vmatpush2.bf16.msra.mxu0 %v2728
  %2949 = vmatprep.subr.bf16.mxu0 %v2725
  %2950 = vmatpush2.bf16.msra.mxu0 %v2724
  %2951 = vmatprep.subr.bf16.mxu0 %v2721
  %2952 = vmatpush2.bf16.msra.mxu0 %v2720
  %2953 = vmatprep.mubr.bf16.mxu0 %v2089
  %2954 = vmatmul.mubr.bf16.gmra.mxu0 %v2088
  %v2955 = vpop.f32.mrf.mxu0
  %v2956 = vadd.f32 %v2915, %v2955
  %v2957 = vpop.f32.mrf.mxu0
  %v2958 = vadd.f32 %v2917, %v2957
  %v2959 = vpop.f32.mrf.mxu0
  %v2960 = vpop.f32.mrf.mxu0
  %2961 = vdwg.mxu0
  %2962 = vmatprep.subr.bf16.mxu0 %v2655
  %2963 = vmatpush1.bf16.msra.mxu0 %v2654
  %2964 = vmatprep.subr.bf16.mxu0 %v2651
  %2965 = vmatpush1.bf16.msra.mxu0 %v2650
  %2966 = vmatprep.subr.bf16.mxu0 %v2647
  %2967 = vmatpush1.bf16.msra.mxu0 %v2646
  %2968 = vmatprep.subr.bf16.mxu0 %v2643
  %2969 = vmatpush1.bf16.msra.mxu0 %v2642
  %2970 = vmatprep.subr.bf16.mxu0 %v2639
  %2971 = vmatpush1.bf16.msra.mxu0 %v2638
  %2972 = vmatprep.subr.bf16.mxu0 %v2635
  %2973 = vmatpush1.bf16.msra.mxu0 %v2634
  %2974 = vmatprep.subr.bf16.mxu0 %v2631
  %2975 = vmatpush1.bf16.msra.mxu0 %v2630
  %2976 = vmatprep.subr.bf16.mxu0 %v2627
  %2977 = vmatpush1.bf16.msra.mxu0 %v2626
  %2978 = vmatprep.subr.bf16.mxu0 %v2687
  %2979 = vmatpush2.bf16.msra.mxu0 %v2686
  %2980 = vmatprep.subr.bf16.mxu0 %v2683
  %2981 = vmatpush2.bf16.msra.mxu0 %v2682
  %2982 = vmatprep.subr.bf16.mxu0 %v2679
  %2983 = vmatpush2.bf16.msra.mxu0 %v2678
  %2984 = vmatprep.subr.bf16.mxu0 %v2675
  %2985 = vmatpush2.bf16.msra.mxu0 %v2674
  %2986 = vmatprep.subr.bf16.mxu0 %v2671
  %2987 = vmatpush2.bf16.msra.mxu0 %v2670
  %2988 = vmatprep.subr.bf16.mxu0 %v2667
  %2989 = vmatpush2.bf16.msra.mxu0 %v2666
  %2990 = vmatprep.subr.bf16.mxu0 %v2663
  %2991 = vmatpush2.bf16.msra.mxu0 %v2662
  %2992 = vmatprep.subr.bf16.mxu0 %v2659
  %2993 = vmatpush2.bf16.msra.mxu0 %v2658
  %2994 = vmatprep.mubr.bf16.mxu0 %v2087
  %2995 = vmatmul.mubr.bf16.gmra.mxu0 %v2086
  %v2996 = vpop.f32.mrf.mxu0
  %v2997 = vadd.f32 %v2231, %v2996
  %v2998 = vpop.f32.mrf.mxu0
  %v2999 = vadd.f32 %v2235, %v2998
  %v3000 = vpop.f32.mrf.mxu0
  %v3001 = vpop.f32.mrf.mxu0
  %3002 = vdwg.mxu0
  %3003 = vmatprep.subr.bf16.mxu0 %v2719
  %3004 = vmatpush1.bf16.msra.mxu0 %v2718
  %3005 = vmatprep.subr.bf16.mxu0 %v2715
  %3006 = vmatpush1.bf16.msra.mxu0 %v2714
  %3007 = vmatprep.subr.bf16.mxu0 %v2711
  %3008 = vmatpush1.bf16.msra.mxu0 %v2710
  %3009 = vmatprep.subr.bf16.mxu0 %v2707
  %3010 = vmatpush1.bf16.msra.mxu0 %v2706
  %3011 = vmatprep.subr.bf16.mxu0 %v2703
  %3012 = vmatpush1.bf16.msra.mxu0 %v2702
  %3013 = vmatprep.subr.bf16.mxu0 %v2699
  %3014 = vmatpush1.bf16.msra.mxu0 %v2698
  %3015 = vmatprep.subr.bf16.mxu0 %v2695
  %3016 = vmatpush1.bf16.msra.mxu0 %v2694
  %3017 = vmatprep.subr.bf16.mxu0 %v2691
  %3018 = vmatpush1.bf16.msra.mxu0 %v2690
  %3019 = vmatprep.subr.bf16.mxu0 %v2751
  %3020 = vmatpush2.bf16.msra.mxu0 %v2750
  %3021 = vmatprep.subr.bf16.mxu0 %v2747
  %3022 = vmatpush2.bf16.msra.mxu0 %v2746
  %3023 = vmatprep.subr.bf16.mxu0 %v2743
  %3024 = vmatpush2.bf16.msra.mxu0 %v2742
  %3025 = vmatprep.subr.bf16.mxu0 %v2739
  %3026 = vmatpush2.bf16.msra.mxu0 %v2738
  %3027 = vmatprep.subr.bf16.mxu0 %v2735
  %3028 = vmatpush2.bf16.msra.mxu0 %v2734
  %3029 = vmatprep.subr.bf16.mxu0 %v2731
  %3030 = vmatpush2.bf16.msra.mxu0 %v2730
  %3031 = vmatprep.subr.bf16.mxu0 %v2727
  %3032 = vmatpush2.bf16.msra.mxu0 %v2726
  %3033 = vmatprep.subr.bf16.mxu0 %v2723
  %3034 = vmatpush2.bf16.msra.mxu0 %v2722
  %3035 = vmatprep.mubr.bf16.mxu0 %v2089
  %3036 = vmatmul.mubr.bf16.gmra.mxu0 %v2088
  %v3037 = vpop.f32.mrf.mxu0
  %v3038 = vadd.f32 %v2997, %v3037
  %v3039 = vpop.f32.mrf.mxu0
  %v3040 = vadd.f32 %v2999, %v3039
  %v3041 = vpop.f32.mrf.mxu0
  %v3042 = vpop.f32.mrf.mxu0
  %3043 = vdwg.mxu0
  %3044 = vmax.xlane.f32.xlu0 %v2956
  %v3045 = vpop.xlane.xlu0 %3044
  %v3046 = vsub.f32 %v2956, %v3045
  %v3047 = vmul.f32 %v3046, 1.442695
  %v3048 = vpow.pop %v3047
  %3049 = vadd.xlane.f32.xlu0 %v3048
  %v3050 = vpop.xlane.xlu0 %3049
  %v3051 = vrcp.pop %v3050
  %v3052 = vmul.f32 %v3048, %v3051
  %3053 = vmax.xlane.f32.xlu0 %v2958
  %v3054 = vpop.xlane.xlu0 %3053
  %v3055 = vsub.f32 %v2958, %v3054
  %v3056 = vmul.f32 %v3055, 1.442695
  %v3057 = vpow.pop %v3056
  %3058 = vadd.xlane.f32.xlu0 %v3057
  %v3059 = vpop.xlane.xlu0 %3058
  %v3060 = vrcp.pop %v3059
  %v3061 = vmul.f32 %v3057, %v3060
  %3062 = vmax.xlane.f32.xlu0 %v3038
  %v3063 = vpop.xlane.xlu0 %3062
  %v3064 = vsub.f32 %v3038, %v3063
  %v3065 = vmul.f32 %v3064, 1.442695
  %v3066 = vpow.pop %v3065
  %3067 = vadd.xlane.f32.xlu0 %v3066
  %v3068 = vpop.xlane.xlu0 %3067
  %v3069 = vrcp.pop %v3068
  %v3070 = vmul.f32 %v3066, %v3069
  %3071 = vmax.xlane.f32.xlu0 %v3040
  %v3072 = vpop.xlane.xlu0 %3071
  %v3073 = vsub.f32 %v3040, %v3072
  %v3074 = vmul.f32 %v3073, 1.442695
  %v3075 = vpow.pop %v3074
  %3076 = vadd.xlane.f32.xlu0 %v3075
  %v3077 = vpop.xlane.xlu0 %3076
  %v3078 = vrcp.pop %v3077
  %v3079 = vmul.f32 %v3075, %v3078
  %3080 = vst [vmem:[%s9] sm:$0xff] %v3052
  %3081 = vst [vmem:[%s9 + $0x8] sm:$0xff] %v3061
  %3082 = vst [vmem:[%s9 + $0x10] sm:$0xff] %v3070
  %3083 = vst [vmem:[%s9 + $0x18] sm:$0xff] %v3079
  // Predicated region
  $region38: #{_forward_impl.3} parent=0 // pred_check
    _
  $region39: #{_forward_impl.3} parent=0 // pred_check_branch
    %3085 = sbr.rel (0) target = $region41
  $region40: #{_forward_impl.3} parent=0 // pred_region
    _
  $region41: #{_forward_impl.3} parent=0 // pred_fallthru
    _
  // Predicated region
  $region42: #{_forward_impl.3} parent=0 // pred_check
    _
  $region43: #{_forward_impl.3} parent=0 // pred_check_branch
    %3087 = sbr.rel (0) target = $region45
  $region44: #{_forward_impl.3} parent=0 // pred_region
    _
  $region45: #{_forward_impl.3} parent=0 // pred_fallthru
    _

</llo_original>
